<compile_context>
chip_gen: v7x
topology: tpu7x:2x2x1
jax: 0.10.0
libtpu: 0.0.40
codegen_flags: <defaults>
</compile_context>

<pallas_src>
import jax
import jax.numpy as jnp
from jax.experimental import pallas as pl
from jax.experimental.pallas import tpu as pltpu

OMEGA = 0.95        # DCP omega
T0 = 0.1            # transmission floor
HIDDEN = 32         # UNet-surrogate hidden width


def _inverse_normalize(img_norm):
    # Approximation of torchvision inverse-normalization to [0, 255] pixels.
    return jnp.clip((img_norm * 0.225 + 0.45) * 255.0, 0.0, 255.0)


def _min_pool3_replicate(x):
    """Separable 3x3 min-pool with replicate-edge padding on an (H, W) plane."""
    left = jnp.concatenate([x[:, :1], x[:, :-1]], axis=1)      # x[:, j-1]
    right = jnp.concatenate([x[:, 1:], x[:, -1:]], axis=1)     # x[:, j+1]
    r = jnp.minimum(jnp.minimum(left, x), right)
    up = jnp.concatenate([r[:1, :], r[:-1, :]], axis=0)        # r[i-1, :]
    down = jnp.concatenate([r[1:, :], r[-1:, :]], axis=0)      # r[i+1, :]
    return jnp.minimum(jnp.minimum(up, r), down)


def _vmem_limit_bytes(estimate_bytes):
    # Keep whole-image blocks viable on v5e (16 MiB default scoped VMEM) without
    # exceeding v7x's 64 MiB physical VMEM.
    return int(min(max(estimate_bytes, 32 * 1024 * 1024), 56 * 1024 * 1024))


# ----------------------------------------------------------------------------
# Kernel A: dark channel + atmospheric light + UNet surrogate (fused).
# ----------------------------------------------------------------------------
def _dark_a_unet_kernel(imgs_ref, w1_ref, b1_ref, w2_ref, b2_ref, a_ref, preda_ref):
    b = pl.program_id(0)
    _, _, H, W = imgs_ref.shape

    x0 = imgs_ref[0, 0]                    # normalized planes (UNet input channels)
    x1 = imgs_ref[0, 1]
    x2 = imgs_ref[0, 2]
    i0 = _inverse_normalize(x0)            # [0, 255] pixels
    i1 = _inverse_normalize(x1)
    i2 = _inverse_normalize(x2)

    # --- dark channel of I (kept in VMEM, never written to HBM) ---
    cmin = jnp.minimum(jnp.minimum(i0, i1), i2)
    dark = _min_pool3_replicate(cmin)                                  # (H, W)

    # --- atmospheric light: image value at the first argmax of the dark channel ---
    row = jax.lax.broadcasted_iota(jnp.int32, (H, W), 0)
    col = jax.lax.broadcasted_iota(jnp.int32, (H, W), 1)
    flat = row * W + col
    dmax = jnp.max(dark, keepdims=True)                                # (1, 1)
    first = jnp.min(jnp.where(dark >= dmax, flat, H * W), keepdims=True)
    mask = flat == first                                               # one-hot (H, W)
    a0 = jnp.sum(jnp.where(mask, i0, 0.0), keepdims=True)              # (1, 1)
    a1 = jnp.sum(jnp.where(mask, i1, 0.0), keepdims=True)
    a2 = jnp.sum(jnp.where(mask, i2, 0.0), keepdims=True)
    a_ref[0] = jnp.maximum(jnp.concatenate([a0, a1, a2], axis=1), 1.0)  # (1, 3)

    # --- UNet surrogate (1x1-conv MLP 4 -> 32 -> 3), batch 0 only ---
    # Only pred_A[0] is consumed downstream (as in the torch forward pass).
    # Weights live in SMEM and are read as scalars, so the whole MLP is plain
    # scalar-times-plane VPU work with no layout changes.
    @pl.when(b == 0)
    def _unet():
        acc0 = jnp.zeros((H, W), jnp.float32)
        acc1 = jnp.zeros((H, W), jnp.float32)
        acc2 = jnp.zeros((H, W), jnp.float32)
        for k in range(HIDDEN):                      # static unroll (HIDDEN = 32)
            h = (x0 * w1_ref[4 * k + 0] + x1 * w1_ref[4 * k + 1]
                 + x2 * w1_ref[4 * k + 2] + dark * w1_ref[4 * k + 3]
                 + b1_ref[k])
            h = jnp.maximum(h, 0.0)
            acc0 = acc0 + h * w2_ref[k]
            acc1 = acc1 + h * w2_ref[HIDDEN + k]
            acc2 = acc2 + h * w2_ref[2 * HIDDEN + k]
        preda_ref[0] = jax.nn.sigmoid(acc0 + b2_ref[0]) * 255.0
        preda_ref[1] = jax.nn.sigmoid(acc1 + b2_ref[1]) * 255.0
        preda_ref[2] = jax.nn.sigmoid(acc2 + b2_ref[2]) * 255.0


def dark_a_unet(imgs_nchw, params):
    """imgs_nchw: (B, 3, H, W) normalized f32.
    Returns a_dcp (B, 1, 3) in [1, 255] and pred_a0 (3, H, W) in [0, 255]."""
    B, _, H, W = imgs_nchw.shape
    smem = pl.BlockSpec(memory_space=pltpu.MemorySpace.SMEM)
    est = 3 * H * W * 4 * 10   # double-buffered image block + resident pred + temps
    return pl.pallas_call(
        _dark_a_unet_kernel,
        out_shape=(
            jax.ShapeDtypeStruct((B, 1, 3), jnp.float32),
            jax.ShapeDtypeStruct((3, H, W), jnp.float32),
        ),
        grid_spec=pltpu.PrefetchScalarGridSpec(
            num_scalar_prefetch=0,
            grid=(B,),
            in_specs=[
                pl.BlockSpec((1, 3, H, W), lambda b: (b, 0, 0, 0)),
                smem, smem, smem, smem,
            ],
            out_specs=[
                pl.BlockSpec((1, 1, 3), lambda b: (b, 0, 0)),
                pl.BlockSpec((3, H, W), lambda b: (0, 0, 0)),
            ],
        ),
        # pred_a0 is a resident output written only at b == 0, so the batch axis must
        # stay "arbitrary" (sequential) for this kernel.
        compiler_params=pltpu.CompilerParams(
            dimension_semantics=("arbitrary",),
            vmem_limit_bytes=_vmem_limit_bytes(est),
        ),
    )(
        imgs_nchw,
        params["w1t"].reshape(-1),
        params["b1"].reshape(-1),
        params["w2t"].reshape(-1),
        params["b2"].reshape(-1),
    )


# ----------------------------------------------------------------------------
# Kernel C (fused): dark(I/A) + transmission + dual dehaze + per-batch SSE.
# ----------------------------------------------------------------------------
def _fused_dehaze_kernel(imgs_ref, a_sm, preda_ref, dcp_ref, pred_ref, sse_ref):
    b = pl.program_id(0)

    i0 = _inverse_normalize(imgs_ref[0, 0])
    i1 = _inverse_normalize(imgs_ref[0, 1])
    i2 = _inverse_normalize(imgs_ref[0, 2])

    # Per-image atmospheric light as SMEM scalars (no tiny VMEM DMA, no broadcasts).
    a0 = a_sm[b, 0]
    a1 = a_sm[b, 1]
    a2 = a_sm[b, 2]

    # dark channel of I/A — scalar reciprocals hoisted (3 scalar divides per image).
    cmin = jnp.minimum(jnp.minimum(i0 * (1.0 / a0), i1 * (1.0 / a1)), i2 * (1.0 / a2))
    dark_norm = _min_pool3_replicate(cmin)

    # transmission map; exact 1/t is shared by both dehaze outputs and the loss.
    t = jnp.maximum(1.0 - OMEGA * dark_norm, T0)
    inv_t = 1.0 / t

    pa0 = preda_ref[0]
    pa1 = preda_ref[1]
    pa2 = preda_ref[2]

    dcp_ref[0, 0] = (i0 - a0) * inv_t + a0
    dcp_ref[0, 1] = (i1 - a1) * inv_t + a1
    dcp_ref[0, 2] = (i2 - a2) * inv_t + a2
    pred_ref[0, 0] = (i0 - pa0) * inv_t + pa0
    pred_ref[0, 1] = (i1 - pa1) * inv_t + pa1
    pred_ref[0, 2] = (i2 - pa2) * inv_t + pa2

    # pred_dehaze - dcp_dehaze == (A - pred_A) * (1/t - 1); SSE per batch element.
    g = inv_t - 1.0
    d0 = (a0 - pa0) * g
    d1 = (a1 - pa1) * g
    d2 = (a2 - pa2) * g
    sse_ref[0] = jnp.sum(d0 * d0 + d1 * d1 + d2 * d2, keepdims=True)


def fused_dehaze(imgs_nchw, a_dcp, pred_a0):
    """imgs: (B,3,H,W) normalized; a_dcp: (B,3); pred_a0: (3,H,W) in [0,255].
    Returns dcp_dehaze (B,3,H,W), pred_dehaze (B,3,H,W), per-batch SSE (B,1,1)."""
    B, _, H, W = imgs_nchw.shape
    est = 3 * H * W * 4 * 16
    return pl.pallas_call(
        _fused_dehaze_kernel,
        out_shape=(
            jax.ShapeDtypeStruct((B, 3, H, W), jnp.float32),
            jax.ShapeDtypeStruct((B, 3, H, W), jnp.float32),
            jax.ShapeDtypeStruct((B, 1, 1), jnp.float32),
        ),
        grid_spec=pltpu.PrefetchScalarGridSpec(
            num_scalar_prefetch=0,
            grid=(B,),
            in_specs=[
                pl.BlockSpec((1, 3, H, W), lambda b: (b, 0, 0, 0)),
                pl.BlockSpec(memory_space=pltpu.MemorySpace.SMEM),
                pl.BlockSpec((3, H, W), lambda b: (0, 0, 0)),
            ],
            out_specs=[
                pl.BlockSpec((1, 3, H, W), lambda b: (b, 0, 0, 0)),
                pl.BlockSpec((1, 3, H, W), lambda b: (b, 0, 0, 0)),
                pl.BlockSpec((1, 1, 1), lambda b: (b, 0, 0)),
            ],
        ),
        # SSE is per-batch (summed in the wrapper) so the batch axis is "parallel"
        # and can be split across v7x's two TensorCores.
        compiler_params=pltpu.CompilerParams(
            dimension_semantics=("parallel",),
            vmem_limit_bytes=_vmem_limit_bytes(est),
        ),
    )(imgs_nchw, a_dcp, pred_a0)


# ----------------------------------------------------------------------------
# Glue / wrapper (plain JAX): params, loss scalars.
# ----------------------------------------------------------------------------
def init_params(key):
    # Mirrors weights_init: xavier_uniform on 1x1-conv weights, biases zeroed.
    k1, k2 = jax.random.split(key)
    lim1 = (6.0 / (4 + HIDDEN)) ** 0.5
    lim2 = (6.0 / (HIDDEN + 3)) ** 0.5
    return {
        "w1t": jax.random.uniform(k1, (HIDDEN, 4), jnp.float32, -lim1, lim1),
        "b1": jnp.zeros((HIDDEN,), jnp.float32),
        "w2t": jax.random.uniform(k2, (3, HIDDEN), jnp.float32, -lim2, lim2),
        "b2": jnp.zeros((3,), jnp.float32),
    }


@jax.jit
def trainer_forward(imgs_nchw, params):
    """Trainer.forward / get_dehaze compute path.

    imgs_nchw: (B, 3, H, W) normalized images (PyTorch layout).
    Returns (losses dict, dcp_dehaze NCHW, pred_dehaze NCHW).
    """
    B, _, H, W = imgs_nchw.shape

    # Kernel A: dark channel + atmospheric light + UNet surrogate (pred_A[0]).
    a_out, pred_a0 = dark_a_unet(imgs_nchw, params)
    a_dcp = a_out.reshape(B, 3)                       # free reshape, feeds SMEM spec

    # Kernel C: dark(I/A) + transmission + dual dehaze + per-batch SSE.
    dcp_dehaze, pred_dehaze, sse = fused_dehaze(imgs_nchw, a_dcp, pred_a0)
    dehaze_loss = jnp.sum(sse) / jnp.float32(B * 3 * H * W)    # MSE(pred, dcp)

    det_loss = jnp.float32(0.0)   # TODO(synk): detector losses not implemented
    losses = {
        "dehaze_loss": dehaze_loss,
        "det_loss": det_loss,
        "total_loss": 10.0 * dehaze_loss + det_loss,
    }
    return losses, dcp_dehaze, pred_dehaze


if __name__ == "__main__":
    key = jax.random.PRNGKey(0)
    k_img, k_par = jax.random.split(key)
    B, C, H, W = 2, 3, 16, 16
    imgs = jax.random.normal(k_img, (B, C, H, W), jnp.float32)   # normalized NCHW input
    params = init_params(k_par)

    losses, dcp_dehaze, pred_dehaze = trainer_forward(imgs, params)
    jax.block_until_ready((losses, dcp_dehaze, pred_dehaze))

    assert dcp_dehaze.shape == (B, 3, H, W)
    assert pred_dehaze.shape == (B, 3, H, W)
    assert bool(jnp.isfinite(losses["total_loss"]))
    print("KERNEL_OK")
</pallas_src>

<mosaic_0001>
module attributes {stable_mosaic.version = 11 : i64} {
  func.func @_dark_a_unet_kernel(%arg0: i32, %arg1: memref<1x3x16x16xf32, #tpu.memory_space<vmem>>, %arg2: memref<128xf32, #tpu.memory_space<smem>>, %arg3: memref<32xf32, #tpu.memory_space<smem>>, %arg4: memref<96xf32, #tpu.memory_space<smem>>, %arg5: memref<3xf32, #tpu.memory_space<smem>>, %arg6: memref<1x1x3xf32, #tpu.memory_space<vmem>>, %arg7: memref<3x16x16xf32, #tpu.memory_space<vmem>>) attributes {dimension_semantics = [#tpu.dimension_semantics<arbitrary>], iteration_bounds = array<i64: 2>, scalar_prefetch = 0 : i64, scratch_operands = 0 : i64, tpu.core_type = #tpu.core_type<tc>, window_params = [{transform_indices = @transform_0, window_bounds = array<i64: 1, 3, 16, 16>}, {transform_indices = @transform_1, window_bounds = array<i64: 128>}, {transform_indices = @transform_2, window_bounds = array<i64: 32>}, {transform_indices = @transform_3, window_bounds = array<i64: 96>}, {transform_indices = @transform_4, window_bounds = array<i64: 3>}, {transform_indices = @transform_5, window_bounds = array<i64: 1, 1, 3>}, {pipeline_mode = #tpu.pipeline_mode<synchronous>, transform_indices = @transform_6, window_bounds = array<i64: 3, 16, 16>}]} {
    %c0 = arith.constant 0 : index
    %c0_0 = arith.constant 0 : index
    %c0_1 = arith.constant 0 : index
    %c0_2 = arith.constant 0 : index
    %0 = vector.load %arg1[%c0, %c0_0, %c0_1, %c0_2] : memref<1x3x16x16xf32, #tpu.memory_space<vmem>>, vector<1x1x16x16xf32>
    %1 = vector.shape_cast %0 : vector<1x1x16x16xf32> to vector<16x16xf32>
    %c0_3 = arith.constant 0 : index
    %c1 = arith.constant 1 : index
    %c0_4 = arith.constant 0 : index
    %c0_5 = arith.constant 0 : index
    %2 = vector.load %arg1[%c0_3, %c1, %c0_4, %c0_5] : memref<1x3x16x16xf32, #tpu.memory_space<vmem>>, vector<1x1x16x16xf32>
    %3 = vector.shape_cast %2 : vector<1x1x16x16xf32> to vector<16x16xf32>
    %c0_6 = arith.constant 0 : index
    %c2 = arith.constant 2 : index
    %c0_7 = arith.constant 0 : index
    %c0_8 = arith.constant 0 : index
    %4 = vector.load %arg1[%c0_6, %c2, %c0_7, %c0_8] : memref<1x3x16x16xf32, #tpu.memory_space<vmem>>, vector<1x1x16x16xf32>
    %5 = vector.shape_cast %4 : vector<1x1x16x16xf32> to vector<16x16xf32>
    %cst = arith.constant 2.250000e-01 : f32
    %6 = vector.broadcast %cst : f32 to vector<16x16xf32>
    %7 = arith.mulf %1, %6 : vector<16x16xf32>
    %cst_9 = arith.constant 4.500000e-01 : f32
    %8 = vector.broadcast %cst_9 : f32 to vector<16x16xf32>
    %9 = arith.addf %7, %8 : vector<16x16xf32>
    %cst_10 = arith.constant 2.550000e+02 : f32
    %10 = vector.broadcast %cst_10 : f32 to vector<16x16xf32>
    %11 = arith.mulf %9, %10 : vector<16x16xf32>
    %cst_11 = arith.constant 0.000000e+00 : f32
    %cst_12 = arith.constant 2.550000e+02 : f32
    %12 = vector.broadcast %cst_11 : f32 to vector<16x16xf32>
    %13 = arith.maximumf %12, %11 : vector<16x16xf32>
    %14 = vector.broadcast %cst_12 : f32 to vector<16x16xf32>
    %15 = arith.minimumf %14, %13 : vector<16x16xf32>
    %cst_13 = arith.constant 2.250000e-01 : f32
    %16 = vector.broadcast %cst_13 : f32 to vector<16x16xf32>
    %17 = arith.mulf %3, %16 : vector<16x16xf32>
    %cst_14 = arith.constant 4.500000e-01 : f32
    %18 = vector.broadcast %cst_14 : f32 to vector<16x16xf32>
    %19 = arith.addf %17, %18 : vector<16x16xf32>
    %cst_15 = arith.constant 2.550000e+02 : f32
    %20 = vector.broadcast %cst_15 : f32 to vector<16x16xf32>
    %21 = arith.mulf %19, %20 : vector<16x16xf32>
    %cst_16 = arith.constant 0.000000e+00 : f32
    %cst_17 = arith.constant 2.550000e+02 : f32
    %22 = vector.broadcast %cst_16 : f32 to vector<16x16xf32>
    %23 = arith.maximumf %22, %21 : vector<16x16xf32>
    %24 = vector.broadcast %cst_17 : f32 to vector<16x16xf32>
    %25 = arith.minimumf %24, %23 : vector<16x16xf32>
    %cst_18 = arith.constant 2.250000e-01 : f32
    %26 = vector.broadcast %cst_18 : f32 to vector<16x16xf32>
    %27 = arith.mulf %5, %26 : vector<16x16xf32>
    %cst_19 = arith.constant 4.500000e-01 : f32
    %28 = vector.broadcast %cst_19 : f32 to vector<16x16xf32>
    %29 = arith.addf %27, %28 : vector<16x16xf32>
    %cst_20 = arith.constant 2.550000e+02 : f32
    %30 = vector.broadcast %cst_20 : f32 to vector<16x16xf32>
    %31 = arith.mulf %29, %30 : vector<16x16xf32>
    %cst_21 = arith.constant 0.000000e+00 : f32
    %cst_22 = arith.constant 2.550000e+02 : f32
    %32 = vector.broadcast %cst_21 : f32 to vector<16x16xf32>
    %33 = arith.maximumf %32, %31 : vector<16x16xf32>
    %34 = vector.broadcast %cst_22 : f32 to vector<16x16xf32>
    %35 = arith.minimumf %34, %33 : vector<16x16xf32>
    %36 = arith.minimumf %15, %25 : vector<16x16xf32>
    %37 = arith.minimumf %36, %35 : vector<16x16xf32>
    %38 = vector.extract_strided_slice %37 {offsets = [0, 0], sizes = [16, 1], strides = [1, 1]} : vector<16x16xf32> to vector<16x1xf32>
    %39 = vector.extract_strided_slice %37 {offsets = [0, 0], sizes = [16, 15], strides = [1, 1]} : vector<16x16xf32> to vector<16x15xf32>
    %40 = tpu.concatenate %38, %39 in 1 : vector<16x1xf32>, vector<16x15xf32> -> vector<16x16xf32>
    %41 = vector.extract_strided_slice %37 {offsets = [0, 1], sizes = [16, 15], strides = [1, 1]} : vector<16x16xf32> to vector<16x15xf32>
    %42 = vector.extract_strided_slice %37 {offsets = [0, 15], sizes = [16, 1], strides = [1, 1]} : vector<16x16xf32> to vector<16x1xf32>
    %43 = tpu.concatenate %41, %42 in 1 : vector<16x15xf32>, vector<16x1xf32> -> vector<16x16xf32>
    %44 = arith.minimumf %40, %37 : vector<16x16xf32>
    %45 = arith.minimumf %44, %43 : vector<16x16xf32>
    %46 = vector.extract_strided_slice %45 {offsets = [0, 0], sizes = [1, 16], strides = [1, 1]} : vector<16x16xf32> to vector<1x16xf32>
    %47 = vector.extract_strided_slice %45 {offsets = [0, 0], sizes = [15, 16], strides = [1, 1]} : vector<16x16xf32> to vector<15x16xf32>
    %48 = tpu.concatenate %46, %47 in 0 : vector<1x16xf32>, vector<15x16xf32> -> vector<16x16xf32>
    %49 = vector.extract_strided_slice %45 {offsets = [1, 0], sizes = [15, 16], strides = [1, 1]} : vector<16x16xf32> to vector<15x16xf32>
    %50 = vector.extract_strided_slice %45 {offsets = [15, 0], sizes = [1, 16], strides = [1, 1]} : vector<16x16xf32> to vector<1x16xf32>
    %51 = tpu.concatenate %49, %50 in 0 : vector<15x16xf32>, vector<1x16xf32> -> vector<16x16xf32>
    %52 = arith.minimumf %48, %45 : vector<16x16xf32>
    %53 = arith.minimumf %52, %51 : vector<16x16xf32>
    %54 = tpu.iota {dimensions = array<i32: 0>} : vector<16x16xi32>
    %55 = tpu.iota {dimensions = array<i32: 1>} : vector<16x16xi32>
    %c16_i32 = arith.constant 16 : i32
    %56 = vector.broadcast %c16_i32 : i32 to vector<16x16xi32>
    %57 = arith.muli %54, %56 : vector<16x16xi32>
    %58 = arith.addi %57, %55 : vector<16x16xi32>
    %59 = vector.shape_cast %53 : vector<16x16xf32> to vector<1x16x16xf32>
    %cst_23 = arith.constant dense<0xFF800000> : vector<1xf32>
    %60 = vector.multi_reduction <maximumf>, %59, %cst_23 [1, 2] : vector<1x16x16xf32> to vector<1xf32>
    %61 = vector.shape_cast %60 : vector<1xf32> to vector<1x1x1xf32>
    %62 = vector.extract %61[0, 0, 0] : f32 from vector<1x1x1xf32>
    %63 = vector.broadcast %62 : f32 to vector<1x1xf32>
    %64 = vector.broadcast %63 : vector<1x1xf32> to vector<16x16xf32>
    %65 = arith.cmpf oge, %53, %64 : vector<16x16xf32>
    %c256_i32 = arith.constant 256 : i32
    %66 = vector.broadcast %c256_i32 : i32 to vector<16x16xi32>
    %67 = arith.select %65, %58, %66 : vector<16x16xi1>, vector<16x16xi32>
    %68 = vector.shape_cast %67 : vector<16x16xi32> to vector<1x16x16xi32>
    %cst_24 = arith.constant dense<2147483647> : vector<1xi32>
    %69 = vector.multi_reduction <minsi>, %68, %cst_24 [1, 2] : vector<1x16x16xi32> to vector<1xi32>
    %70 = vector.shape_cast %69 : vector<1xi32> to vector<1x1x1xi32>
    %71 = vector.extract %70[0, 0, 0] : i32 from vector<1x1x1xi32>
    %72 = vector.broadcast %71 : i32 to vector<1x1xi32>
    %73 = vector.broadcast %72 : vector<1x1xi32> to vector<16x16xi32>
    %74 = arith.cmpi eq, %58, %73 : vector<16x16xi32>
    %cst_25 = arith.constant 0.000000e+00 : f32
    %75 = vector.broadcast %cst_25 : f32 to vector<16x16xf32>
    %76 = arith.select %74, %15, %75 : vector<16x16xi1>, vector<16x16xf32>
    %77 = vector.shape_cast %76 : vector<16x16xf32> to vector<1x16x16xf32>
    %cst_26 = arith.constant dense<0.000000e+00> : vector<1xf32>
    %78 = vector.multi_reduction <add>, %77, %cst_26 [1, 2] : vector<1x16x16xf32> to vector<1xf32>
    %79 = vector.shape_cast %78 : vector<1xf32> to vector<1x1x1xf32>
    %80 = vector.extract %79[0, 0, 0] : f32 from vector<1x1x1xf32>
    %81 = vector.broadcast %80 : f32 to vector<1x1xf32>
    %cst_27 = arith.constant 0.000000e+00 : f32
    %82 = vector.broadcast %cst_27 : f32 to vector<16x16xf32>
    %83 = arith.select %74, %25, %82 : vector<16x16xi1>, vector<16x16xf32>
    %84 = vector.shape_cast %83 : vector<16x16xf32> to vector<1x16x16xf32>
    %cst_28 = arith.constant dense<0.000000e+00> : vector<1xf32>
    %85 = vector.multi_reduction <add>, %84, %cst_28 [1, 2] : vector<1x16x16xf32> to vector<1xf32>
    %86 = vector.shape_cast %85 : vector<1xf32> to vector<1x1x1xf32>
    %87 = vector.extract %86[0, 0, 0] : f32 from vector<1x1x1xf32>
    %88 = vector.broadcast %87 : f32 to vector<1x1xf32>
    %cst_29 = arith.constant 0.000000e+00 : f32
    %89 = vector.broadcast %cst_29 : f32 to vector<16x16xf32>
    %90 = arith.select %74, %35, %89 : vector<16x16xi1>, vector<16x16xf32>
    %91 = vector.shape_cast %90 : vector<16x16xf32> to vector<1x16x16xf32>
    %cst_30 = arith.constant dense<0.000000e+00> : vector<1xf32>
    %92 = vector.multi_reduction <add>, %91, %cst_30 [1, 2] : vector<1x16x16xf32> to vector<1xf32>
    %93 = vector.shape_cast %92 : vector<1xf32> to vector<1x1x1xf32>
    %94 = vector.extract %93[0, 0, 0] : f32 from vector<1x1x1xf32>
    %95 = vector.broadcast %94 : f32 to vector<1x1xf32>
    %96 = tpu.concatenate %81, %88, %95 in 1 : vector<1x1xf32>, vector<1x1xf32>, vector<1x1xf32> -> vector<1x3xf32>
    %cst_31 = arith.constant 1.000000e+00 : f32
    %97 = vector.broadcast %cst_31 : f32 to vector<1x3xf32>
    %98 = arith.maximumf %96, %97 : vector<1x3xf32>
    %c0_32 = arith.constant 0 : index
    %c0_33 = arith.constant 0 : index
    %c0_34 = arith.constant 0 : index
    %99 = vector.load %arg6[%c0_32, %c0_33, %c0_34] : memref<1x1x3xf32, #tpu.memory_space<vmem>>, vector<1x1x3xf32>
    %100 = vector.shape_cast %99 : vector<1x1x3xf32> to vector<1x3xf32>
    %101 = vector.shape_cast %98 : vector<1x3xf32> to vector<1x1x3xf32>
    tpu.vector_store %arg6[%c0_32, %c0_33, %c0_34], %101 {strides = array<i32>} : memref<1x1x3xf32, #tpu.memory_space<vmem>>, vector<1x1x3xf32>,
    %c0_i32 = arith.constant 0 : i32
    %102 = arith.cmpi eq, %arg0, %c0_i32 : i32
    %103 = arith.extui %102 : i1 to i32
    %c0_i32_35 = arith.constant 0 : i32
    %104 = arith.cmpi ne, %103, %c0_i32_35 : i32
    scf.if %104 {
      %cst_36 = arith.constant 0.000000e+00 : f32
      %105 = vector.broadcast %cst_36 : f32 to vector<16x16xf32>
      %cst_37 = arith.constant 0.000000e+00 : f32
      %106 = vector.broadcast %cst_37 : f32 to vector<16x16xf32>
      %cst_38 = arith.constant 0.000000e+00 : f32
      %107 = vector.broadcast %cst_38 : f32 to vector<16x16xf32>
      %c0_39 = arith.constant 0 : index
      %108 = memref.load %arg2[%c0_39] : memref<128xf32, #tpu.memory_space<smem>>
      %109 = vector.broadcast %108 : f32 to vector<16x16xf32>
      %110 = arith.mulf %1, %109 : vector<16x16xf32>
      %c1_40 = arith.constant 1 : index
      %111 = memref.load %arg2[%c1_40] : memref<128xf32, #tpu.memory_space<smem>>
      %112 = vector.broadcast %111 : f32 to vector<16x16xf32>
      %113 = arith.mulf %3, %112 : vector<16x16xf32>
      %114 = arith.addf %110, %113 : vector<16x16xf32>
      %c2_41 = arith.constant 2 : index
      %115 = memref.load %arg2[%c2_41] : memref<128xf32, #tpu.memory_space<smem>>
      %116 = vector.broadcast %115 : f32 to vector<16x16xf32>
      %117 = arith.mulf %5, %116 : vector<16x16xf32>
      %118 = arith.addf %114, %117 : vector<16x16xf32>
      %c3 = arith.constant 3 : index
      %119 = memref.load %arg2[%c3] : memref<128xf32, #tpu.memory_space<smem>>
      %120 = vector.broadcast %119 : f32 to vector<16x16xf32>
      %121 = arith.mulf %53, %120 : vector<16x16xf32>
      %122 = arith.addf %118, %121 : vector<16x16xf32>
      %c0_42 = arith.constant 0 : index
      %123 = memref.load %arg3[%c0_42] : memref<32xf32, #tpu.memory_space<smem>>
      %124 = vector.broadcast %123 : f32 to vector<16x16xf32>
      %125 = arith.addf %122, %124 : vector<16x16xf32>
      %cst_43 = arith.constant 0.000000e+00 : f32
      %126 = vector.broadcast %cst_43 : f32 to vector<16x16xf32>
      %127 = arith.maximumf %125, %126 : vector<16x16xf32>
      %c0_44 = arith.constant 0 : index
      %128 = memref.load %arg4[%c0_44] : memref<96xf32, #tpu.memory_space<smem>>
      %129 = vector.broadcast %128 : f32 to vector<16x16xf32>
      %130 = arith.mulf %127, %129 : vector<16x16xf32>
      %131 = arith.addf %105, %130 : vector<16x16xf32>
      %c32 = arith.constant 32 : index
      %132 = memref.load %arg4[%c32] : memref<96xf32, #tpu.memory_space<smem>>
      %133 = vector.broadcast %132 : f32 to vector<16x16xf32>
      %134 = arith.mulf %127, %133 : vector<16x16xf32>
      %135 = arith.addf %106, %134 : vector<16x16xf32>
      %c64 = arith.constant 64 : index
      %136 = memref.load %arg4[%c64] : memref<96xf32, #tpu.memory_space<smem>>
      %137 = vector.broadcast %136 : f32 to vector<16x16xf32>
      %138 = arith.mulf %127, %137 : vector<16x16xf32>
      %139 = arith.addf %107, %138 : vector<16x16xf32>
      %c4 = arith.constant 4 : index
      %140 = memref.load %arg2[%c4] : memref<128xf32, #tpu.memory_space<smem>>
      %141 = vector.broadcast %140 : f32 to vector<16x16xf32>
      %142 = arith.mulf %1, %141 : vector<16x16xf32>
      %c5 = arith.constant 5 : index
      %143 = memref.load %arg2[%c5] : memref<128xf32, #tpu.memory_space<smem>>
      %144 = vector.broadcast %143 : f32 to vector<16x16xf32>
      %145 = arith.mulf %3, %144 : vector<16x16xf32>
      %146 = arith.addf %142, %145 : vector<16x16xf32>
      %c6 = arith.constant 6 : index
      %147 = memref.load %arg2[%c6] : memref<128xf32, #tpu.memory_space<smem>>
      %148 = vector.broadcast %147 : f32 to vector<16x16xf32>
      %149 = arith.mulf %5, %148 : vector<16x16xf32>
      %150 = arith.addf %146, %149 : vector<16x16xf32>
      %c7 = arith.constant 7 : index
      %151 = memref.load %arg2[%c7] : memref<128xf32, #tpu.memory_space<smem>>
      %152 = vector.broadcast %151 : f32 to vector<16x16xf32>
      %153 = arith.mulf %53, %152 : vector<16x16xf32>
      %154 = arith.addf %150, %153 : vector<16x16xf32>
      %c1_45 = arith.constant 1 : index
      %155 = memref.load %arg3[%c1_45] : memref<32xf32, #tpu.memory_space<smem>>
      %156 = vector.broadcast %155 : f32 to vector<16x16xf32>
      %157 = arith.addf %154, %156 : vector<16x16xf32>
      %cst_46 = arith.constant 0.000000e+00 : f32
      %158 = vector.broadcast %cst_46 : f32 to vector<16x16xf32>
      %159 = arith.maximumf %157, %158 : vector<16x16xf32>
      %c1_47 = arith.constant 1 : index
      %160 = memref.load %arg4[%c1_47] : memref<96xf32, #tpu.memory_space<smem>>
      %161 = vector.broadcast %160 : f32 to vector<16x16xf32>
      %162 = arith.mulf %159, %161 : vector<16x16xf32>
      %163 = arith.addf %131, %162 : vector<16x16xf32>
      %c33 = arith.constant 33 : index
      %164 = memref.load %arg4[%c33] : memref<96xf32, #tpu.memory_space<smem>>
      %165 = vector.broadcast %164 : f32 to vector<16x16xf32>
      %166 = arith.mulf %159, %165 : vector<16x16xf32>
      %167 = arith.addf %135, %166 : vector<16x16xf32>
      %c65 = arith.constant 65 : index
      %168 = memref.load %arg4[%c65] : memref<96xf32, #tpu.memory_space<smem>>
      %169 = vector.broadcast %168 : f32 to vector<16x16xf32>
      %170 = arith.mulf %159, %169 : vector<16x16xf32>
      %171 = arith.addf %139, %170 : vector<16x16xf32>
      %c8 = arith.constant 8 : index
      %172 = memref.load %arg2[%c8] : memref<128xf32, #tpu.memory_space<smem>>
      %173 = vector.broadcast %172 : f32 to vector<16x16xf32>
      %174 = arith.mulf %1, %173 : vector<16x16xf32>
      %c9 = arith.constant 9 : index
      %175 = memref.load %arg2[%c9] : memref<128xf32, #tpu.memory_space<smem>>
      %176 = vector.broadcast %175 : f32 to vector<16x16xf32>
      %177 = arith.mulf %3, %176 : vector<16x16xf32>
      %178 = arith.addf %174, %177 : vector<16x16xf32>
      %c10 = arith.constant 10 : index
      %179 = memref.load %arg2[%c10] : memref<128xf32, #tpu.memory_space<smem>>
      %180 = vector.broadcast %179 : f32 to vector<16x16xf32>
      %181 = arith.mulf %5, %180 : vector<16x16xf32>
      %182 = arith.addf %178, %181 : vector<16x16xf32>
      %c11 = arith.constant 11 : index
      %183 = memref.load %arg2[%c11] : memref<128xf32, #tpu.memory_space<smem>>
      %184 = vector.broadcast %183 : f32 to vector<16x16xf32>
      %185 = arith.mulf %53, %184 : vector<16x16xf32>
      %186 = arith.addf %182, %185 : vector<16x16xf32>
      %c2_48 = arith.constant 2 : index
      %187 = memref.load %arg3[%c2_48] : memref<32xf32, #tpu.memory_space<smem>>
      %188 = vector.broadcast %187 : f32 to vector<16x16xf32>
      %189 = arith.addf %186, %188 : vector<16x16xf32>
      %cst_49 = arith.constant 0.000000e+00 : f32
      %190 = vector.broadcast %cst_49 : f32 to vector<16x16xf32>
      %191 = arith.maximumf %189, %190 : vector<16x16xf32>
      %c2_50 = arith.constant 2 : index
      %192 = memref.load %arg4[%c2_50] : memref<96xf32, #tpu.memory_space<smem>>
      %193 = vector.broadcast %192 : f32 to vector<16x16xf32>
      %194 = arith.mulf %191, %193 : vector<16x16xf32>
      %195 = arith.addf %163, %194 : vector<16x16xf32>
      %c34 = arith.constant 34 : index
      %196 = memref.load %arg4[%c34] : memref<96xf32, #tpu.memory_space<smem>>
      %197 = vector.broadcast %196 : f32 to vector<16x16xf32>
      %198 = arith.mulf %191, %197 : vector<16x16xf32>
      %199 = arith.addf %167, %198 : vector<16x16xf32>
      %c66 = arith.constant 66 : index
      %200 = memref.load %arg4[%c66] : memref<96xf32, #tpu.memory_space<smem>>
      %201 = vector.broadcast %200 : f32 to vector<16x16xf32>
      %202 = arith.mulf %191, %201 : vector<16x16xf32>
      %203 = arith.addf %171, %202 : vector<16x16xf32>
      %c12 = arith.constant 12 : index
      %204 = memref.load %arg2[%c12] : memref<128xf32, #tpu.memory_space<smem>>
      %205 = vector.broadcast %204 : f32 to vector<16x16xf32>
      %206 = arith.mulf %1, %205 : vector<16x16xf32>
      %c13 = arith.constant 13 : index
      %207 = memref.load %arg2[%c13] : memref<128xf32, #tpu.memory_space<smem>>
      %208 = vector.broadcast %207 : f32 to vector<16x16xf32>
      %209 = arith.mulf %3, %208 : vector<16x16xf32>
      %210 = arith.addf %206, %209 : vector<16x16xf32>
      %c14 = arith.constant 14 : index
      %211 = memref.load %arg2[%c14] : memref<128xf32, #tpu.memory_space<smem>>
      %212 = vector.broadcast %211 : f32 to vector<16x16xf32>
      %213 = arith.mulf %5, %212 : vector<16x16xf32>
      %214 = arith.addf %210, %213 : vector<16x16xf32>
      %c15 = arith.constant 15 : index
      %215 = memref.load %arg2[%c15] : memref<128xf32, #tpu.memory_space<smem>>
      %216 = vector.broadcast %215 : f32 to vector<16x16xf32>
      %217 = arith.mulf %53, %216 : vector<16x16xf32>
      %218 = arith.addf %214, %217 : vector<16x16xf32>
      %c3_51 = arith.constant 3 : index
      %219 = memref.load %arg3[%c3_51] : memref<32xf32, #tpu.memory_space<smem>>
      %220 = vector.broadcast %219 : f32 to vector<16x16xf32>
      %221 = arith.addf %218, %220 : vector<16x16xf32>
      %cst_52 = arith.constant 0.000000e+00 : f32
      %222 = vector.broadcast %cst_52 : f32 to vector<16x16xf32>
      %223 = arith.maximumf %221, %222 : vector<16x16xf32>
      %c3_53 = arith.constant 3 : index
      %224 = memref.load %arg4[%c3_53] : memref<96xf32, #tpu.memory_space<smem>>
      %225 = vector.broadcast %224 : f32 to vector<16x16xf32>
      %226 = arith.mulf %223, %225 : vector<16x16xf32>
      %227 = arith.addf %195, %226 : vector<16x16xf32>
      %c35 = arith.constant 35 : index
      %228 = memref.load %arg4[%c35] : memref<96xf32, #tpu.memory_space<smem>>
      %229 = vector.broadcast %228 : f32 to vector<16x16xf32>
      %230 = arith.mulf %223, %229 : vector<16x16xf32>
      %231 = arith.addf %199, %230 : vector<16x16xf32>
      %c67 = arith.constant 67 : index
      %232 = memref.load %arg4[%c67] : memref<96xf32, #tpu.memory_space<smem>>
      %233 = vector.broadcast %232 : f32 to vector<16x16xf32>
      %234 = arith.mulf %223, %233 : vector<16x16xf32>
      %235 = arith.addf %203, %234 : vector<16x16xf32>
      %c16 = arith.constant 16 : index
      %236 = memref.load %arg2[%c16] : memref<128xf32, #tpu.memory_space<smem>>
      %237 = vector.broadcast %236 : f32 to vector<16x16xf32>
      %238 = arith.mulf %1, %237 : vector<16x16xf32>
      %c17 = arith.constant 17 : index
      %239 = memref.load %arg2[%c17] : memref<128xf32, #tpu.memory_space<smem>>
      %240 = vector.broadcast %239 : f32 to vector<16x16xf32>
      %241 = arith.mulf %3, %240 : vector<16x16xf32>
      %242 = arith.addf %238, %241 : vector<16x16xf32>
      %c18 = arith.constant 18 : index
      %243 = memref.load %arg2[%c18] : memref<128xf32, #tpu.memory_space<smem>>
      %244 = vector.broadcast %243 : f32 to vector<16x16xf32>
      %245 = arith.mulf %5, %244 : vector<16x16xf32>
      %246 = arith.addf %242, %245 : vector<16x16xf32>
      %c19 = arith.constant 19 : index
      %247 = memref.load %arg2[%c19] : memref<128xf32, #tpu.memory_space<smem>>
      %248 = vector.broadcast %247 : f32 to vector<16x16xf32>
      %249 = arith.mulf %53, %248 : vector<16x16xf32>
      %250 = arith.addf %246, %249 : vector<16x16xf32>
      %c4_54 = arith.constant 4 : index
      %251 = memref.load %arg3[%c4_54] : memref<32xf32, #tpu.memory_space<smem>>
      %252 = vector.broadcast %251 : f32 to vector<16x16xf32>
      %253 = arith.addf %250, %252 : vector<16x16xf32>
      %cst_55 = arith.constant 0.000000e+00 : f32
      %254 = vector.broadcast %cst_55 : f32 to vector<16x16xf32>
      %255 = arith.maximumf %253, %254 : vector<16x16xf32>
      %c4_56 = arith.constant 4 : index
      %256 = memref.load %arg4[%c4_56] : memref<96xf32, #tpu.memory_space<smem>>
      %257 = vector.broadcast %256 : f32 to vector<16x16xf32>
      %258 = arith.mulf %255, %257 : vector<16x16xf32>
      %259 = arith.addf %227, %258 : vector<16x16xf32>
      %c36 = arith.constant 36 : index
      %260 = memref.load %arg4[%c36] : memref<96xf32, #tpu.memory_space<smem>>
      %261 = vector.broadcast %260 : f32 to vector<16x16xf32>
      %262 = arith.mulf %255, %261 : vector<16x16xf32>
      %263 = arith.addf %231, %262 : vector<16x16xf32>
      %c68 = arith.constant 68 : index
      %264 = memref.load %arg4[%c68] : memref<96xf32, #tpu.memory_space<smem>>
      %265 = vector.broadcast %264 : f32 to vector<16x16xf32>
      %266 = arith.mulf %255, %265 : vector<16x16xf32>
      %267 = arith.addf %235, %266 : vector<16x16xf32>
      %c20 = arith.constant 20 : index
      %268 = memref.load %arg2[%c20] : memref<128xf32, #tpu.memory_space<smem>>
      %269 = vector.broadcast %268 : f32 to vector<16x16xf32>
      %270 = arith.mulf %1, %269 : vector<16x16xf32>
      %c21 = arith.constant 21 : index
      %271 = memref.load %arg2[%c21] : memref<128xf32, #tpu.memory_space<smem>>
      %272 = vector.broadcast %271 : f32 to vector<16x16xf32>
      %273 = arith.mulf %3, %272 : vector<16x16xf32>
      %274 = arith.addf %270, %273 : vector<16x16xf32>
      %c22 = arith.constant 22 : index
      %275 = memref.load %arg2[%c22] : memref<128xf32, #tpu.memory_space<smem>>
      %276 = vector.broadcast %275 : f32 to vector<16x16xf32>
      %277 = arith.mulf %5, %276 : vector<16x16xf32>
      %278 = arith.addf %274, %277 : vector<16x16xf32>
      %c23 = arith.constant 23 : index
      %279 = memref.load %arg2[%c23] : memref<128xf32, #tpu.memory_space<smem>>
      %280 = vector.broadcast %279 : f32 to vector<16x16xf32>
      %281 = arith.mulf %53, %280 : vector<16x16xf32>
      %282 = arith.addf %278, %281 : vector<16x16xf32>
      %c5_57 = arith.constant 5 : index
      %283 = memref.load %arg3[%c5_57] : memref<32xf32, #tpu.memory_space<smem>>
      %284 = vector.broadcast %283 : f32 to vector<16x16xf32>
      %285 = arith.addf %282, %284 : vector<16x16xf32>
      %cst_58 = arith.constant 0.000000e+00 : f32
      %286 = vector.broadcast %cst_58 : f32 to vector<16x16xf32>
      %287 = arith.maximumf %285, %286 : vector<16x16xf32>
      %c5_59 = arith.constant 5 : index
      %288 = memref.load %arg4[%c5_59] : memref<96xf32, #tpu.memory_space<smem>>
      %289 = vector.broadcast %288 : f32 to vector<16x16xf32>
      %290 = arith.mulf %287, %289 : vector<16x16xf32>
      %291 = arith.addf %259, %290 : vector<16x16xf32>
      %c37 = arith.constant 37 : index
      %292 = memref.load %arg4[%c37] : memref<96xf32, #tpu.memory_space<smem>>
      %293 = vector.broadcast %292 : f32 to vector<16x16xf32>
      %294 = arith.mulf %287, %293 : vector<16x16xf32>
      %295 = arith.addf %263, %294 : vector<16x16xf32>
      %c69 = arith.constant 69 : index
      %296 = memref.load %arg4[%c69] : memref<96xf32, #tpu.memory_space<smem>>
      %297 = vector.broadcast %296 : f32 to vector<16x16xf32>
      %298 = arith.mulf %287, %297 : vector<16x16xf32>
      %299 = arith.addf %267, %298 : vector<16x16xf32>
      %c24 = arith.constant 24 : index
      %300 = memref.load %arg2[%c24] : memref<128xf32, #tpu.memory_space<smem>>
      %301 = vector.broadcast %300 : f32 to vector<16x16xf32>
      %302 = arith.mulf %1, %301 : vector<16x16xf32>
      %c25 = arith.constant 25 : index
      %303 = memref.load %arg2[%c25] : memref<128xf32, #tpu.memory_space<smem>>
      %304 = vector.broadcast %303 : f32 to vector<16x16xf32>
      %305 = arith.mulf %3, %304 : vector<16x16xf32>
      %306 = arith.addf %302, %305 : vector<16x16xf32>
      %c26 = arith.constant 26 : index
      %307 = memref.load %arg2[%c26] : memref<128xf32, #tpu.memory_space<smem>>
      %308 = vector.broadcast %307 : f32 to vector<16x16xf32>
      %309 = arith.mulf %5, %308 : vector<16x16xf32>
      %310 = arith.addf %306, %309 : vector<16x16xf32>
      %c27 = arith.constant 27 : index
      %311 = memref.load %arg2[%c27] : memref<128xf32, #tpu.memory_space<smem>>
      %312 = vector.broadcast %311 : f32 to vector<16x16xf32>
      %313 = arith.mulf %53, %312 : vector<16x16xf32>
      %314 = arith.addf %310, %313 : vector<16x16xf32>
      %c6_60 = arith.constant 6 : index
      %315 = memref.load %arg3[%c6_60] : memref<32xf32, #tpu.memory_space<smem>>
      %316 = vector.broadcast %315 : f32 to vector<16x16xf32>
      %317 = arith.addf %314, %316 : vector<16x16xf32>
      %cst_61 = arith.constant 0.000000e+00 : f32
      %318 = vector.broadcast %cst_61 : f32 to vector<16x16xf32>
      %319 = arith.maximumf %317, %318 : vector<16x16xf32>
      %c6_62 = arith.constant 6 : index
      %320 = memref.load %arg4[%c6_62] : memref<96xf32, #tpu.memory_space<smem>>
      %321 = vector.broadcast %320 : f32 to vector<16x16xf32>
      %322 = arith.mulf %319, %321 : vector<16x16xf32>
      %323 = arith.addf %291, %322 : vector<16x16xf32>
      %c38 = arith.constant 38 : index
      %324 = memref.load %arg4[%c38] : memref<96xf32, #tpu.memory_space<smem>>
      %325 = vector.broadcast %324 : f32 to vector<16x16xf32>
      %326 = arith.mulf %319, %325 : vector<16x16xf32>
      %327 = arith.addf %295, %326 : vector<16x16xf32>
      %c70 = arith.constant 70 : index
      %328 = memref.load %arg4[%c70] : memref<96xf32, #tpu.memory_space<smem>>
      %329 = vector.broadcast %328 : f32 to vector<16x16xf32>
      %330 = arith.mulf %319, %329 : vector<16x16xf32>
      %331 = arith.addf %299, %330 : vector<16x16xf32>
      %c28 = arith.constant 28 : index
      %332 = memref.load %arg2[%c28] : memref<128xf32, #tpu.memory_space<smem>>
      %333 = vector.broadcast %332 : f32 to vector<16x16xf32>
      %334 = arith.mulf %1, %333 : vector<16x16xf32>
      %c29 = arith.constant 29 : index
      %335 = memref.load %arg2[%c29] : memref<128xf32, #tpu.memory_space<smem>>
      %336 = vector.broadcast %335 : f32 to vector<16x16xf32>
      %337 = arith.mulf %3, %336 : vector<16x16xf32>
      %338 = arith.addf %334, %337 : vector<16x16xf32>
      %c30 = arith.constant 30 : index
      %339 = memref.load %arg2[%c30] : memref<128xf32, #tpu.memory_space<smem>>
      %340 = vector.broadcast %339 : f32 to vector<16x16xf32>
      %341 = arith.mulf %5, %340 : vector<16x16xf32>
      %342 = arith.addf %338, %341 : vector<16x16xf32>
      %c31 = arith.constant 31 : index
      %343 = memref.load %arg2[%c31] : memref<128xf32, #tpu.memory_space<smem>>
      %344 = vector.broadcast %343 : f32 to vector<16x16xf32>
      %345 = arith.mulf %53, %344 : vector<16x16xf32>
      %346 = arith.addf %342, %345 : vector<16x16xf32>
      %c7_63 = arith.constant 7 : index
      %347 = memref.load %arg3[%c7_63] : memref<32xf32, #tpu.memory_space<smem>>
      %348 = vector.broadcast %347 : f32 to vector<16x16xf32>
      %349 = arith.addf %346, %348 : vector<16x16xf32>
      %cst_64 = arith.constant 0.000000e+00 : f32
      %350 = vector.broadcast %cst_64 : f32 to vector<16x16xf32>
      %351 = arith.maximumf %349, %350 : vector<16x16xf32>
      %c7_65 = arith.constant 7 : index
      %352 = memref.load %arg4[%c7_65] : memref<96xf32, #tpu.memory_space<smem>>
      %353 = vector.broadcast %352 : f32 to vector<16x16xf32>
      %354 = arith.mulf %351, %353 : vector<16x16xf32>
      %355 = arith.addf %323, %354 : vector<16x16xf32>
      %c39 = arith.constant 39 : index
      %356 = memref.load %arg4[%c39] : memref<96xf32, #tpu.memory_space<smem>>
      %357 = vector.broadcast %356 : f32 to vector<16x16xf32>
      %358 = arith.mulf %351, %357 : vector<16x16xf32>
      %359 = arith.addf %327, %358 : vector<16x16xf32>
      %c71 = arith.constant 71 : index
      %360 = memref.load %arg4[%c71] : memref<96xf32, #tpu.memory_space<smem>>
      %361 = vector.broadcast %360 : f32 to vector<16x16xf32>
      %362 = arith.mulf %351, %361 : vector<16x16xf32>
      %363 = arith.addf %331, %362 : vector<16x16xf32>
      %c32_66 = arith.constant 32 : index
      %364 = memref.load %arg2[%c32_66] : memref<128xf32, #tpu.memory_space<smem>>
      %365 = vector.broadcast %364 : f32 to vector<16x16xf32>
      %366 = arith.mulf %1, %365 : vector<16x16xf32>
      %c33_67 = arith.constant 33 : index
      %367 = memref.load %arg2[%c33_67] : memref<128xf32, #tpu.memory_space<smem>>
      %368 = vector.broadcast %367 : f32 to vector<16x16xf32>
      %369 = arith.mulf %3, %368 : vector<16x16xf32>
      %370 = arith.addf %366, %369 : vector<16x16xf32>
      %c34_68 = arith.constant 34 : index
      %371 = memref.load %arg2[%c34_68] : memref<128xf32, #tpu.memory_space<smem>>
      %372 = vector.broadcast %371 : f32 to vector<16x16xf32>
      %373 = arith.mulf %5, %372 : vector<16x16xf32>
      %374 = arith.addf %370, %373 : vector<16x16xf32>
      %c35_69 = arith.constant 35 : index
      %375 = memref.load %arg2[%c35_69] : memref<128xf32, #tpu.memory_space<smem>>
      %376 = vector.broadcast %375 : f32 to vector<16x16xf32>
      %377 = arith.mulf %53, %376 : vector<16x16xf32>
      %378 = arith.addf %374, %377 : vector<16x16xf32>
      %c8_70 = arith.constant 8 : index
      %379 = memref.load %arg3[%c8_70] : memref<32xf32, #tpu.memory_space<smem>>
      %380 = vector.broadcast %379 : f32 to vector<16x16xf32>
      %381 = arith.addf %378, %380 : vector<16x16xf32>
      %cst_71 = arith.constant 0.000000e+00 : f32
      %382 = vector.broadcast %cst_71 : f32 to vector<16x16xf32>
      %383 = arith.maximumf %381, %382 : vector<16x16xf32>
      %c8_72 = arith.constant 8 : index
      %384 = memref.load %arg4[%c8_72] : memref<96xf32, #tpu.memory_space<smem>>
      %385 = vector.broadcast %384 : f32 to vector<16x16xf32>
      %386 = arith.mulf %383, %385 : vector<16x16xf32>
      %387 = arith.addf %355, %386 : vector<16x16xf32>
      %c40 = arith.constant 40 : index
      %388 = memref.load %arg4[%c40] : memref<96xf32, #tpu.memory_space<smem>>
      %389 = vector.broadcast %388 : f32 to vector<16x16xf32>
      %390 = arith.mulf %383, %389 : vector<16x16xf32>
      %391 = arith.addf %359, %390 : vector<16x16xf32>
      %c72 = arith.constant 72 : index
      %392 = memref.load %arg4[%c72] : memref<96xf32, #tpu.memory_space<smem>>
      %393 = vector.broadcast %392 : f32 to vector<16x16xf32>
      %394 = arith.mulf %383, %393 : vector<16x16xf32>
      %395 = arith.addf %363, %394 : vector<16x16xf32>
      %c36_73 = arith.constant 36 : index
      %396 = memref.load %arg2[%c36_73] : memref<128xf32, #tpu.memory_space<smem>>
      %397 = vector.broadcast %396 : f32 to vector<16x16xf32>
      %398 = arith.mulf %1, %397 : vector<16x16xf32>
      %c37_74 = arith.constant 37 : index
      %399 = memref.load %arg2[%c37_74] : memref<128xf32, #tpu.memory_space<smem>>
      %400 = vector.broadcast %399 : f32 to vector<16x16xf32>
      %401 = arith.mulf %3, %400 : vector<16x16xf32>
      %402 = arith.addf %398, %401 : vector<16x16xf32>
      %c38_75 = arith.constant 38 : index
      %403 = memref.load %arg2[%c38_75] : memref<128xf32, #tpu.memory_space<smem>>
      %404 = vector.broadcast %403 : f32 to vector<16x16xf32>
      %405 = arith.mulf %5, %404 : vector<16x16xf32>
      %406 = arith.addf %402, %405 : vector<16x16xf32>
      %c39_76 = arith.constant 39 : index
      %407 = memref.load %arg2[%c39_76] : memref<128xf32, #tpu.memory_space<smem>>
      %408 = vector.broadcast %407 : f32 to vector<16x16xf32>
      %409 = arith.mulf %53, %408 : vector<16x16xf32>
      %410 = arith.addf %406, %409 : vector<16x16xf32>
      %c9_77 = arith.constant 9 : index
      %411 = memref.load %arg3[%c9_77] : memref<32xf32, #tpu.memory_space<smem>>
      %412 = vector.broadcast %411 : f32 to vector<16x16xf32>
      %413 = arith.addf %410, %412 : vector<16x16xf32>
      %cst_78 = arith.constant 0.000000e+00 : f32
      %414 = vector.broadcast %cst_78 : f32 to vector<16x16xf32>
      %415 = arith.maximumf %413, %414 : vector<16x16xf32>
      %c9_79 = arith.constant 9 : index
      %416 = memref.load %arg4[%c9_79] : memref<96xf32, #tpu.memory_space<smem>>
      %417 = vector.broadcast %416 : f32 to vector<16x16xf32>
      %418 = arith.mulf %415, %417 : vector<16x16xf32>
      %419 = arith.addf %387, %418 : vector<16x16xf32>
      %c41 = arith.constant 41 : index
      %420 = memref.load %arg4[%c41] : memref<96xf32, #tpu.memory_space<smem>>
      %421 = vector.broadcast %420 : f32 to vector<16x16xf32>
      %422 = arith.mulf %415, %421 : vector<16x16xf32>
      %423 = arith.addf %391, %422 : vector<16x16xf32>
      %c73 = arith.constant 73 : index
      %424 = memref.load %arg4[%c73] : memref<96xf32, #tpu.memory_space<smem>>
      %425 = vector.broadcast %424 : f32 to vector<16x16xf32>
      %426 = arith.mulf %415, %425 : vector<16x16xf32>
      %427 = arith.addf %395, %426 : vector<16x16xf32>
      %c40_80 = arith.constant 40 : index
      %428 = memref.load %arg2[%c40_80] : memref<128xf32, #tpu.memory_space<smem>>
      %429 = vector.broadcast %428 : f32 to vector<16x16xf32>
      %430 = arith.mulf %1, %429 : vector<16x16xf32>
      %c41_81 = arith.constant 41 : index
      %431 = memref.load %arg2[%c41_81] : memref<128xf32, #tpu.memory_space<smem>>
      %432 = vector.broadcast %431 : f32 to vector<16x16xf32>
      %433 = arith.mulf %3, %432 : vector<16x16xf32>
      %434 = arith.addf %430, %433 : vector<16x16xf32>
      %c42 = arith.constant 42 : index
      %435 = memref.load %arg2[%c42] : memref<128xf32, #tpu.memory_space<smem>>
      %436 = vector.broadcast %435 : f32 to vector<16x16xf32>
      %437 = arith.mulf %5, %436 : vector<16x16xf32>
      %438 = arith.addf %434, %437 : vector<16x16xf32>
      %c43 = arith.constant 43 : index
      %439 = memref.load %arg2[%c43] : memref<128xf32, #tpu.memory_space<smem>>
      %440 = vector.broadcast %439 : f32 to vector<16x16xf32>
      %441 = arith.mulf %53, %440 : vector<16x16xf32>
      %442 = arith.addf %438, %441 : vector<16x16xf32>
      %c10_82 = arith.constant 10 : index
      %443 = memref.load %arg3[%c10_82] : memref<32xf32, #tpu.memory_space<smem>>
      %444 = vector.broadcast %443 : f32 to vector<16x16xf32>
      %445 = arith.addf %442, %444 : vector<16x16xf32>
      %cst_83 = arith.constant 0.000000e+00 : f32
      %446 = vector.broadcast %cst_83 : f32 to vector<16x16xf32>
      %447 = arith.maximumf %445, %446 : vector<16x16xf32>
      %c10_84 = arith.constant 10 : index
      %448 = memref.load %arg4[%c10_84] : memref<96xf32, #tpu.memory_space<smem>>
      %449 = vector.broadcast %448 : f32 to vector<16x16xf32>
      %450 = arith.mulf %447, %449 : vector<16x16xf32>
      %451 = arith.addf %419, %450 : vector<16x16xf32>
      %c42_85 = arith.constant 42 : index
      %452 = memref.load %arg4[%c42_85] : memref<96xf32, #tpu.memory_space<smem>>
      %453 = vector.broadcast %452 : f32 to vector<16x16xf32>
      %454 = arith.mulf %447, %453 : vector<16x16xf32>
      %455 = arith.addf %423, %454 : vector<16x16xf32>
      %c74 = arith.constant 74 : index
      %456 = memref.load %arg4[%c74] : memref<96xf32, #tpu.memory_space<smem>>
      %457 = vector.broadcast %456 : f32 to vector<16x16xf32>
      %458 = arith.mulf %447, %457 : vector<16x16xf32>
      %459 = arith.addf %427, %458 : vector<16x16xf32>
      %c44 = arith.constant 44 : index
      %460 = memref.load %arg2[%c44] : memref<128xf32, #tpu.memory_space<smem>>
      %461 = vector.broadcast %460 : f32 to vector<16x16xf32>
      %462 = arith.mulf %1, %461 : vector<16x16xf32>
      %c45 = arith.constant 45 : index
      %463 = memref.load %arg2[%c45] : memref<128xf32, #tpu.memory_space<smem>>
      %464 = vector.broadcast %463 : f32 to vector<16x16xf32>
      %465 = arith.mulf %3, %464 : vector<16x16xf32>
      %466 = arith.addf %462, %465 : vector<16x16xf32>
      %c46 = arith.constant 46 : index
      %467 = memref.load %arg2[%c46] : memref<128xf32, #tpu.memory_space<smem>>
      %468 = vector.broadcast %467 : f32 to vector<16x16xf32>
      %469 = arith.mulf %5, %468 : vector<16x16xf32>
      %470 = arith.addf %466, %469 : vector<16x16xf32>
      %c47 = arith.constant 47 : index
      %471 = memref.load %arg2[%c47] : memref<128xf32, #tpu.memory_space<smem>>
      %472 = vector.broadcast %471 : f32 to vector<16x16xf32>
      %473 = arith.mulf %53, %472 : vector<16x16xf32>
      %474 = arith.addf %470, %473 : vector<16x16xf32>
      %c11_86 = arith.constant 11 : index
      %475 = memref.load %arg3[%c11_86] : memref<32xf32, #tpu.memory_space<smem>>
      %476 = vector.broadcast %475 : f32 to vector<16x16xf32>
      %477 = arith.addf %474, %476 : vector<16x16xf32>
      %cst_87 = arith.constant 0.000000e+00 : f32
      %478 = vector.broadcast %cst_87 : f32 to vector<16x16xf32>
      %479 = arith.maximumf %477, %478 : vector<16x16xf32>
      %c11_88 = arith.constant 11 : index
      %480 = memref.load %arg4[%c11_88] : memref<96xf32, #tpu.memory_space<smem>>
      %481 = vector.broadcast %480 : f32 to vector<16x16xf32>
      %482 = arith.mulf %479, %481 : vector<16x16xf32>
      %483 = arith.addf %451, %482 : vector<16x16xf32>
      %c43_89 = arith.constant 43 : index
      %484 = memref.load %arg4[%c43_89] : memref<96xf32, #tpu.memory_space<smem>>
      %485 = vector.broadcast %484 : f32 to vector<16x16xf32>
      %486 = arith.mulf %479, %485 : vector<16x16xf32>
      %487 = arith.addf %455, %486 : vector<16x16xf32>
      %c75 = arith.constant 75 : index
      %488 = memref.load %arg4[%c75] : memref<96xf32, #tpu.memory_space<smem>>
      %489 = vector.broadcast %488 : f32 to vector<16x16xf32>
      %490 = arith.mulf %479, %489 : vector<16x16xf32>
      %491 = arith.addf %459, %490 : vector<16x16xf32>
      %c48 = arith.constant 48 : index
      %492 = memref.load %arg2[%c48] : memref<128xf32, #tpu.memory_space<smem>>
      %493 = vector.broadcast %492 : f32 to vector<16x16xf32>
      %494 = arith.mulf %1, %493 : vector<16x16xf32>
      %c49 = arith.constant 49 : index
      %495 = memref.load %arg2[%c49] : memref<128xf32, #tpu.memory_space<smem>>
      %496 = vector.broadcast %495 : f32 to vector<16x16xf32>
      %497 = arith.mulf %3, %496 : vector<16x16xf32>
      %498 = arith.addf %494, %497 : vector<16x16xf32>
      %c50 = arith.constant 50 : index
      %499 = memref.load %arg2[%c50] : memref<128xf32, #tpu.memory_space<smem>>
      %500 = vector.broadcast %499 : f32 to vector<16x16xf32>
      %501 = arith.mulf %5, %500 : vector<16x16xf32>
      %502 = arith.addf %498, %501 : vector<16x16xf32>
      %c51 = arith.constant 51 : index
      %503 = memref.load %arg2[%c51] : memref<128xf32, #tpu.memory_space<smem>>
      %504 = vector.broadcast %503 : f32 to vector<16x16xf32>
      %505 = arith.mulf %53, %504 : vector<16x16xf32>
      %506 = arith.addf %502, %505 : vector<16x16xf32>
      %c12_90 = arith.constant 12 : index
      %507 = memref.load %arg3[%c12_90] : memref<32xf32, #tpu.memory_space<smem>>
      %508 = vector.broadcast %507 : f32 to vector<16x16xf32>
      %509 = arith.addf %506, %508 : vector<16x16xf32>
      %cst_91 = arith.constant 0.000000e+00 : f32
      %510 = vector.broadcast %cst_91 : f32 to vector<16x16xf32>
      %511 = arith.maximumf %509, %510 : vector<16x16xf32>
      %c12_92 = arith.constant 12 : index
      %512 = memref.load %arg4[%c12_92] : memref<96xf32, #tpu.memory_space<smem>>
      %513 = vector.broadcast %512 : f32 to vector<16x16xf32>
      %514 = arith.mulf %511, %513 : vector<16x16xf32>
      %515 = arith.addf %483, %514 : vector<16x16xf32>
      %c44_93 = arith.constant 44 : index
      %516 = memref.load %arg4[%c44_93] : memref<96xf32, #tpu.memory_space<smem>>
      %517 = vector.broadcast %516 : f32 to vector<16x16xf32>
      %518 = arith.mulf %511, %517 : vector<16x16xf32>
      %519 = arith.addf %487, %518 : vector<16x16xf32>
      %c76 = arith.constant 76 : index
      %520 = memref.load %arg4[%c76] : memref<96xf32, #tpu.memory_space<smem>>
      %521 = vector.broadcast %520 : f32 to vector<16x16xf32>
      %522 = arith.mulf %511, %521 : vector<16x16xf32>
      %523 = arith.addf %491, %522 : vector<16x16xf32>
      %c52 = arith.constant 52 : index
      %524 = memref.load %arg2[%c52] : memref<128xf32, #tpu.memory_space<smem>>
      %525 = vector.broadcast %524 : f32 to vector<16x16xf32>
      %526 = arith.mulf %1, %525 : vector<16x16xf32>
      %c53 = arith.constant 53 : index
      %527 = memref.load %arg2[%c53] : memref<128xf32, #tpu.memory_space<smem>>
      %528 = vector.broadcast %527 : f32 to vector<16x16xf32>
      %529 = arith.mulf %3, %528 : vector<16x16xf32>
      %530 = arith.addf %526, %529 : vector<16x16xf32>
      %c54 = arith.constant 54 : index
      %531 = memref.load %arg2[%c54] : memref<128xf32, #tpu.memory_space<smem>>
      %532 = vector.broadcast %531 : f32 to vector<16x16xf32>
      %533 = arith.mulf %5, %532 : vector<16x16xf32>
      %534 = arith.addf %530, %533 : vector<16x16xf32>
      %c55 = arith.constant 55 : index
      %535 = memref.load %arg2[%c55] : memref<128xf32, #tpu.memory_space<smem>>
      %536 = vector.broadcast %535 : f32 to vector<16x16xf32>
      %537 = arith.mulf %53, %536 : vector<16x16xf32>
      %538 = arith.addf %534, %537 : vector<16x16xf32>
      %c13_94 = arith.constant 13 : index
      %539 = memref.load %arg3[%c13_94] : memref<32xf32, #tpu.memory_space<smem>>
      %540 = vector.broadcast %539 : f32 to vector<16x16xf32>
      %541 = arith.addf %538, %540 : vector<16x16xf32>
      %cst_95 = arith.constant 0.000000e+00 : f32
      %542 = vector.broadcast %cst_95 : f32 to vector<16x16xf32>
      %543 = arith.maximumf %541, %542 : vector<16x16xf32>
      %c13_96 = arith.constant 13 : index
      %544 = memref.load %arg4[%c13_96] : memref<96xf32, #tpu.memory_space<smem>>
      %545 = vector.broadcast %544 : f32 to vector<16x16xf32>
      %546 = arith.mulf %543, %545 : vector<16x16xf32>
      %547 = arith.addf %515, %546 : vector<16x16xf32>
      %c45_97 = arith.constant 45 : index
      %548 = memref.load %arg4[%c45_97] : memref<96xf32, #tpu.memory_space<smem>>
      %549 = vector.broadcast %548 : f32 to vector<16x16xf32>
      %550 = arith.mulf %543, %549 : vector<16x16xf32>
      %551 = arith.addf %519, %550 : vector<16x16xf32>
      %c77 = arith.constant 77 : index
      %552 = memref.load %arg4[%c77] : memref<96xf32, #tpu.memory_space<smem>>
      %553 = vector.broadcast %552 : f32 to vector<16x16xf32>
      %554 = arith.mulf %543, %553 : vector<16x16xf32>
      %555 = arith.addf %523, %554 : vector<16x16xf32>
      %c56 = arith.constant 56 : index
      %556 = memref.load %arg2[%c56] : memref<128xf32, #tpu.memory_space<smem>>
      %557 = vector.broadcast %556 : f32 to vector<16x16xf32>
      %558 = arith.mulf %1, %557 : vector<16x16xf32>
      %c57 = arith.constant 57 : index
      %559 = memref.load %arg2[%c57] : memref<128xf32, #tpu.memory_space<smem>>
      %560 = vector.broadcast %559 : f32 to vector<16x16xf32>
      %561 = arith.mulf %3, %560 : vector<16x16xf32>
      %562 = arith.addf %558, %561 : vector<16x16xf32>
      %c58 = arith.constant 58 : index
      %563 = memref.load %arg2[%c58] : memref<128xf32, #tpu.memory_space<smem>>
      %564 = vector.broadcast %563 : f32 to vector<16x16xf32>
      %565 = arith.mulf %5, %564 : vector<16x16xf32>
      %566 = arith.addf %562, %565 : vector<16x16xf32>
      %c59 = arith.constant 59 : index
      %567 = memref.load %arg2[%c59] : memref<128xf32, #tpu.memory_space<smem>>
      %568 = vector.broadcast %567 : f32 to vector<16x16xf32>
      %569 = arith.mulf %53, %568 : vector<16x16xf32>
      %570 = arith.addf %566, %569 : vector<16x16xf32>
      %c14_98 = arith.constant 14 : index
      %571 = memref.load %arg3[%c14_98] : memref<32xf32, #tpu.memory_space<smem>>
      %572 = vector.broadcast %571 : f32 to vector<16x16xf32>
      %573 = arith.addf %570, %572 : vector<16x16xf32>
      %cst_99 = arith.constant 0.000000e+00 : f32
      %574 = vector.broadcast %cst_99 : f32 to vector<16x16xf32>
      %575 = arith.maximumf %573, %574 : vector<16x16xf32>
      %c14_100 = arith.constant 14 : index
      %576 = memref.load %arg4[%c14_100] : memref<96xf32, #tpu.memory_space<smem>>
      %577 = vector.broadcast %576 : f32 to vector<16x16xf32>
      %578 = arith.mulf %575, %577 : vector<16x16xf32>
      %579 = arith.addf %547, %578 : vector<16x16xf32>
      %c46_101 = arith.constant 46 : index
      %580 = memref.load %arg4[%c46_101] : memref<96xf32, #tpu.memory_space<smem>>
      %581 = vector.broadcast %580 : f32 to vector<16x16xf32>
      %582 = arith.mulf %575, %581 : vector<16x16xf32>
      %583 = arith.addf %551, %582 : vector<16x16xf32>
      %c78 = arith.constant 78 : index
      %584 = memref.load %arg4[%c78] : memref<96xf32, #tpu.memory_space<smem>>
      %585 = vector.broadcast %584 : f32 to vector<16x16xf32>
      %586 = arith.mulf %575, %585 : vector<16x16xf32>
      %587 = arith.addf %555, %586 : vector<16x16xf32>
      %c60 = arith.constant 60 : index
      %588 = memref.load %arg2[%c60] : memref<128xf32, #tpu.memory_space<smem>>
      %589 = vector.broadcast %588 : f32 to vector<16x16xf32>
      %590 = arith.mulf %1, %589 : vector<16x16xf32>
      %c61 = arith.constant 61 : index
      %591 = memref.load %arg2[%c61] : memref<128xf32, #tpu.memory_space<smem>>
      %592 = vector.broadcast %591 : f32 to vector<16x16xf32>
      %593 = arith.mulf %3, %592 : vector<16x16xf32>
      %594 = arith.addf %590, %593 : vector<16x16xf32>
      %c62 = arith.constant 62 : index
      %595 = memref.load %arg2[%c62] : memref<128xf32, #tpu.memory_space<smem>>
      %596 = vector.broadcast %595 : f32 to vector<16x16xf32>
      %597 = arith.mulf %5, %596 : vector<16x16xf32>
      %598 = arith.addf %594, %597 : vector<16x16xf32>
      %c63 = arith.constant 63 : index
      %599 = memref.load %arg2[%c63] : memref<128xf32, #tpu.memory_space<smem>>
      %600 = vector.broadcast %599 : f32 to vector<16x16xf32>
      %601 = arith.mulf %53, %600 : vector<16x16xf32>
      %602 = arith.addf %598, %601 : vector<16x16xf32>
      %c15_102 = arith.constant 15 : index
      %603 = memref.load %arg3[%c15_102] : memref<32xf32, #tpu.memory_space<smem>>
      %604 = vector.broadcast %603 : f32 to vector<16x16xf32>
      %605 = arith.addf %602, %604 : vector<16x16xf32>
      %cst_103 = arith.constant 0.000000e+00 : f32
      %606 = vector.broadcast %cst_103 : f32 to vector<16x16xf32>
      %607 = arith.maximumf %605, %606 : vector<16x16xf32>
      %c15_104 = arith.constant 15 : index
      %608 = memref.load %arg4[%c15_104] : memref<96xf32, #tpu.memory_space<smem>>
      %609 = vector.broadcast %608 : f32 to vector<16x16xf32>
      %610 = arith.mulf %607, %609 : vector<16x16xf32>
      %611 = arith.addf %579, %610 : vector<16x16xf32>
      %c47_105 = arith.constant 47 : index
      %612 = memref.load %arg4[%c47_105] : memref<96xf32, #tpu.memory_space<smem>>
      %613 = vector.broadcast %612 : f32 to vector<16x16xf32>
      %614 = arith.mulf %607, %613 : vector<16x16xf32>
      %615 = arith.addf %583, %614 : vector<16x16xf32>
      %c79 = arith.constant 79 : index
      %616 = memref.load %arg4[%c79] : memref<96xf32, #tpu.memory_space<smem>>
      %617 = vector.broadcast %616 : f32 to vector<16x16xf32>
      %618 = arith.mulf %607, %617 : vector<16x16xf32>
      %619 = arith.addf %587, %618 : vector<16x16xf32>
      %c64_106 = arith.constant 64 : index
      %620 = memref.load %arg2[%c64_106] : memref<128xf32, #tpu.memory_space<smem>>
      %621 = vector.broadcast %620 : f32 to vector<16x16xf32>
      %622 = arith.mulf %1, %621 : vector<16x16xf32>
      %c65_107 = arith.constant 65 : index
      %623 = memref.load %arg2[%c65_107] : memref<128xf32, #tpu.memory_space<smem>>
      %624 = vector.broadcast %623 : f32 to vector<16x16xf32>
      %625 = arith.mulf %3, %624 : vector<16x16xf32>
      %626 = arith.addf %622, %625 : vector<16x16xf32>
      %c66_108 = arith.constant 66 : index
      %627 = memref.load %arg2[%c66_108] : memref<128xf32, #tpu.memory_space<smem>>
      %628 = vector.broadcast %627 : f32 to vector<16x16xf32>
      %629 = arith.mulf %5, %628 : vector<16x16xf32>
      %630 = arith.addf %626, %629 : vector<16x16xf32>
      %c67_109 = arith.constant 67 : index
      %631 = memref.load %arg2[%c67_109] : memref<128xf32, #tpu.memory_space<smem>>
      %632 = vector.broadcast %631 : f32 to vector<16x16xf32>
      %633 = arith.mulf %53, %632 : vector<16x16xf32>
      %634 = arith.addf %630, %633 : vector<16x16xf32>
      %c16_110 = arith.constant 16 : index
      %635 = memref.load %arg3[%c16_110] : memref<32xf32, #tpu.memory_space<smem>>
      %636 = vector.broadcast %635 : f32 to vector<16x16xf32>
      %637 = arith.addf %634, %636 : vector<16x16xf32>
      %cst_111 = arith.constant 0.000000e+00 : f32
      %638 = vector.broadcast %cst_111 : f32 to vector<16x16xf32>
      %639 = arith.maximumf %637, %638 : vector<16x16xf32>
      %c16_112 = arith.constant 16 : index
      %640 = memref.load %arg4[%c16_112] : memref<96xf32, #tpu.memory_space<smem>>
      %641 = vector.broadcast %640 : f32 to vector<16x16xf32>
      %642 = arith.mulf %639, %641 : vector<16x16xf32>
      %643 = arith.addf %611, %642 : vector<16x16xf32>
      %c48_113 = arith.constant 48 : index
      %644 = memref.load %arg4[%c48_113] : memref<96xf32, #tpu.memory_space<smem>>
      %645 = vector.broadcast %644 : f32 to vector<16x16xf32>
      %646 = arith.mulf %639, %645 : vector<16x16xf32>
      %647 = arith.addf %615, %646 : vector<16x16xf32>
      %c80 = arith.constant 80 : index
      %648 = memref.load %arg4[%c80] : memref<96xf32, #tpu.memory_space<smem>>
      %649 = vector.broadcast %648 : f32 to vector<16x16xf32>
      %650 = arith.mulf %639, %649 : vector<16x16xf32>
      %651 = arith.addf %619, %650 : vector<16x16xf32>
      %c68_114 = arith.constant 68 : index
      %652 = memref.load %arg2[%c68_114] : memref<128xf32, #tpu.memory_space<smem>>
      %653 = vector.broadcast %652 : f32 to vector<16x16xf32>
      %654 = arith.mulf %1, %653 : vector<16x16xf32>
      %c69_115 = arith.constant 69 : index
      %655 = memref.load %arg2[%c69_115] : memref<128xf32, #tpu.memory_space<smem>>
      %656 = vector.broadcast %655 : f32 to vector<16x16xf32>
      %657 = arith.mulf %3, %656 : vector<16x16xf32>
      %658 = arith.addf %654, %657 : vector<16x16xf32>
      %c70_116 = arith.constant 70 : index
      %659 = memref.load %arg2[%c70_116] : memref<128xf32, #tpu.memory_space<smem>>
      %660 = vector.broadcast %659 : f32 to vector<16x16xf32>
      %661 = arith.mulf %5, %660 : vector<16x16xf32>
      %662 = arith.addf %658, %661 : vector<16x16xf32>
      %c71_117 = arith.constant 71 : index
      %663 = memref.load %arg2[%c71_117] : memref<128xf32, #tpu.memory_space<smem>>
      %664 = vector.broadcast %663 : f32 to vector<16x16xf32>
      %665 = arith.mulf %53, %664 : vector<16x16xf32>
      %666 = arith.addf %662, %665 : vector<16x16xf32>
      %c17_118 = arith.constant 17 : index
      %667 = memref.load %arg3[%c17_118] : memref<32xf32, #tpu.memory_space<smem>>
      %668 = vector.broadcast %667 : f32 to vector<16x16xf32>
      %669 = arith.addf %666, %668 : vector<16x16xf32>
      %cst_119 = arith.constant 0.000000e+00 : f32
      %670 = vector.broadcast %cst_119 : f32 to vector<16x16xf32>
      %671 = arith.maximumf %669, %670 : vector<16x16xf32>
      %c17_120 = arith.constant 17 : index
      %672 = memref.load %arg4[%c17_120] : memref<96xf32, #tpu.memory_space<smem>>
      %673 = vector.broadcast %672 : f32 to vector<16x16xf32>
      %674 = arith.mulf %671, %673 : vector<16x16xf32>
      %675 = arith.addf %643, %674 : vector<16x16xf32>
      %c49_121 = arith.constant 49 : index
      %676 = memref.load %arg4[%c49_121] : memref<96xf32, #tpu.memory_space<smem>>
      %677 = vector.broadcast %676 : f32 to vector<16x16xf32>
      %678 = arith.mulf %671, %677 : vector<16x16xf32>
      %679 = arith.addf %647, %678 : vector<16x16xf32>
      %c81 = arith.constant 81 : index
      %680 = memref.load %arg4[%c81] : memref<96xf32, #tpu.memory_space<smem>>
      %681 = vector.broadcast %680 : f32 to vector<16x16xf32>
      %682 = arith.mulf %671, %681 : vector<16x16xf32>
      %683 = arith.addf %651, %682 : vector<16x16xf32>
      %c72_122 = arith.constant 72 : index
      %684 = memref.load %arg2[%c72_122] : memref<128xf32, #tpu.memory_space<smem>>
      %685 = vector.broadcast %684 : f32 to vector<16x16xf32>
      %686 = arith.mulf %1, %685 : vector<16x16xf32>
      %c73_123 = arith.constant 73 : index
      %687 = memref.load %arg2[%c73_123] : memref<128xf32, #tpu.memory_space<smem>>
      %688 = vector.broadcast %687 : f32 to vector<16x16xf32>
      %689 = arith.mulf %3, %688 : vector<16x16xf32>
      %690 = arith.addf %686, %689 : vector<16x16xf32>
      %c74_124 = arith.constant 74 : index
      %691 = memref.load %arg2[%c74_124] : memref<128xf32, #tpu.memory_space<smem>>
      %692 = vector.broadcast %691 : f32 to vector<16x16xf32>
      %693 = arith.mulf %5, %692 : vector<16x16xf32>
      %694 = arith.addf %690, %693 : vector<16x16xf32>
      %c75_125 = arith.constant 75 : index
      %695 = memref.load %arg2[%c75_125] : memref<128xf32, #tpu.memory_space<smem>>
      %696 = vector.broadcast %695 : f32 to vector<16x16xf32>
      %697 = arith.mulf %53, %696 : vector<16x16xf32>
      %698 = arith.addf %694, %697 : vector<16x16xf32>
      %c18_126 = arith.constant 18 : index
      %699 = memref.load %arg3[%c18_126] : memref<32xf32, #tpu.memory_space<smem>>
      %700 = vector.broadcast %699 : f32 to vector<16x16xf32>
      %701 = arith.addf %698, %700 : vector<16x16xf32>
      %cst_127 = arith.constant 0.000000e+00 : f32
      %702 = vector.broadcast %cst_127 : f32 to vector<16x16xf32>
      %703 = arith.maximumf %701, %702 : vector<16x16xf32>
      %c18_128 = arith.constant 18 : index
      %704 = memref.load %arg4[%c18_128] : memref<96xf32, #tpu.memory_space<smem>>
      %705 = vector.broadcast %704 : f32 to vector<16x16xf32>
      %706 = arith.mulf %703, %705 : vector<16x16xf32>
      %707 = arith.addf %675, %706 : vector<16x16xf32>
      %c50_129 = arith.constant 50 : index
      %708 = memref.load %arg4[%c50_129] : memref<96xf32, #tpu.memory_space<smem>>
      %709 = vector.broadcast %708 : f32 to vector<16x16xf32>
      %710 = arith.mulf %703, %709 : vector<16x16xf32>
      %711 = arith.addf %679, %710 : vector<16x16xf32>
      %c82 = arith.constant 82 : index
      %712 = memref.load %arg4[%c82] : memref<96xf32, #tpu.memory_space<smem>>
      %713 = vector.broadcast %712 : f32 to vector<16x16xf32>
      %714 = arith.mulf %703, %713 : vector<16x16xf32>
      %715 = arith.addf %683, %714 : vector<16x16xf32>
      %c76_130 = arith.constant 76 : index
      %716 = memref.load %arg2[%c76_130] : memref<128xf32, #tpu.memory_space<smem>>
      %717 = vector.broadcast %716 : f32 to vector<16x16xf32>
      %718 = arith.mulf %1, %717 : vector<16x16xf32>
      %c77_131 = arith.constant 77 : index
      %719 = memref.load %arg2[%c77_131] : memref<128xf32, #tpu.memory_space<smem>>
      %720 = vector.broadcast %719 : f32 to vector<16x16xf32>
      %721 = arith.mulf %3, %720 : vector<16x16xf32>
      %722 = arith.addf %718, %721 : vector<16x16xf32>
      %c78_132 = arith.constant 78 : index
      %723 = memref.load %arg2[%c78_132] : memref<128xf32, #tpu.memory_space<smem>>
      %724 = vector.broadcast %723 : f32 to vector<16x16xf32>
      %725 = arith.mulf %5, %724 : vector<16x16xf32>
      %726 = arith.addf %722, %725 : vector<16x16xf32>
      %c79_133 = arith.constant 79 : index
      %727 = memref.load %arg2[%c79_133] : memref<128xf32, #tpu.memory_space<smem>>
      %728 = vector.broadcast %727 : f32 to vector<16x16xf32>
      %729 = arith.mulf %53, %728 : vector<16x16xf32>
      %730 = arith.addf %726, %729 : vector<16x16xf32>
      %c19_134 = arith.constant 19 : index
      %731 = memref.load %arg3[%c19_134] : memref<32xf32, #tpu.memory_space<smem>>
      %732 = vector.broadcast %731 : f32 to vector<16x16xf32>
      %733 = arith.addf %730, %732 : vector<16x16xf32>
      %cst_135 = arith.constant 0.000000e+00 : f32
      %734 = vector.broadcast %cst_135 : f32 to vector<16x16xf32>
      %735 = arith.maximumf %733, %734 : vector<16x16xf32>
      %c19_136 = arith.constant 19 : index
      %736 = memref.load %arg4[%c19_136] : memref<96xf32, #tpu.memory_space<smem>>
      %737 = vector.broadcast %736 : f32 to vector<16x16xf32>
      %738 = arith.mulf %735, %737 : vector<16x16xf32>
      %739 = arith.addf %707, %738 : vector<16x16xf32>
      %c51_137 = arith.constant 51 : index
      %740 = memref.load %arg4[%c51_137] : memref<96xf32, #tpu.memory_space<smem>>
      %741 = vector.broadcast %740 : f32 to vector<16x16xf32>
      %742 = arith.mulf %735, %741 : vector<16x16xf32>
      %743 = arith.addf %711, %742 : vector<16x16xf32>
      %c83 = arith.constant 83 : index
      %744 = memref.load %arg4[%c83] : memref<96xf32, #tpu.memory_space<smem>>
      %745 = vector.broadcast %744 : f32 to vector<16x16xf32>
      %746 = arith.mulf %735, %745 : vector<16x16xf32>
      %747 = arith.addf %715, %746 : vector<16x16xf32>
      %c80_138 = arith.constant 80 : index
      %748 = memref.load %arg2[%c80_138] : memref<128xf32, #tpu.memory_space<smem>>
      %749 = vector.broadcast %748 : f32 to vector<16x16xf32>
      %750 = arith.mulf %1, %749 : vector<16x16xf32>
      %c81_139 = arith.constant 81 : index
      %751 = memref.load %arg2[%c81_139] : memref<128xf32, #tpu.memory_space<smem>>
      %752 = vector.broadcast %751 : f32 to vector<16x16xf32>
      %753 = arith.mulf %3, %752 : vector<16x16xf32>
      %754 = arith.addf %750, %753 : vector<16x16xf32>
      %c82_140 = arith.constant 82 : index
      %755 = memref.load %arg2[%c82_140] : memref<128xf32, #tpu.memory_space<smem>>
      %756 = vector.broadcast %755 : f32 to vector<16x16xf32>
      %757 = arith.mulf %5, %756 : vector<16x16xf32>
      %758 = arith.addf %754, %757 : vector<16x16xf32>
      %c83_141 = arith.constant 83 : index
      %759 = memref.load %arg2[%c83_141] : memref<128xf32, #tpu.memory_space<smem>>
      %760 = vector.broadcast %759 : f32 to vector<16x16xf32>
      %761 = arith.mulf %53, %760 : vector<16x16xf32>
      %762 = arith.addf %758, %761 : vector<16x16xf32>
      %c20_142 = arith.constant 20 : index
      %763 = memref.load %arg3[%c20_142] : memref<32xf32, #tpu.memory_space<smem>>
      %764 = vector.broadcast %763 : f32 to vector<16x16xf32>
      %765 = arith.addf %762, %764 : vector<16x16xf32>
      %cst_143 = arith.constant 0.000000e+00 : f32
      %766 = vector.broadcast %cst_143 : f32 to vector<16x16xf32>
      %767 = arith.maximumf %765, %766 : vector<16x16xf32>
      %c20_144 = arith.constant 20 : index
      %768 = memref.load %arg4[%c20_144] : memref<96xf32, #tpu.memory_space<smem>>
      %769 = vector.broadcast %768 : f32 to vector<16x16xf32>
      %770 = arith.mulf %767, %769 : vector<16x16xf32>
      %771 = arith.addf %739, %770 : vector<16x16xf32>
      %c52_145 = arith.constant 52 : index
      %772 = memref.load %arg4[%c52_145] : memref<96xf32, #tpu.memory_space<smem>>
      %773 = vector.broadcast %772 : f32 to vector<16x16xf32>
      %774 = arith.mulf %767, %773 : vector<16x16xf32>
      %775 = arith.addf %743, %774 : vector<16x16xf32>
      %c84 = arith.constant 84 : index
      %776 = memref.load %arg4[%c84] : memref<96xf32, #tpu.memory_space<smem>>
      %777 = vector.broadcast %776 : f32 to vector<16x16xf32>
      %778 = arith.mulf %767, %777 : vector<16x16xf32>
      %779 = arith.addf %747, %778 : vector<16x16xf32>
      %c84_146 = arith.constant 84 : index
      %780 = memref.load %arg2[%c84_146] : memref<128xf32, #tpu.memory_space<smem>>
      %781 = vector.broadcast %780 : f32 to vector<16x16xf32>
      %782 = arith.mulf %1, %781 : vector<16x16xf32>
      %c85 = arith.constant 85 : index
      %783 = memref.load %arg2[%c85] : memref<128xf32, #tpu.memory_space<smem>>
      %784 = vector.broadcast %783 : f32 to vector<16x16xf32>
      %785 = arith.mulf %3, %784 : vector<16x16xf32>
      %786 = arith.addf %782, %785 : vector<16x16xf32>
      %c86 = arith.constant 86 : index
      %787 = memref.load %arg2[%c86] : memref<128xf32, #tpu.memory_space<smem>>
      %788 = vector.broadcast %787 : f32 to vector<16x16xf32>
      %789 = arith.mulf %5, %788 : vector<16x16xf32>
      %790 = arith.addf %786, %789 : vector<16x16xf32>
      %c87 = arith.constant 87 : index
      %791 = memref.load %arg2[%c87] : memref<128xf32, #tpu.memory_space<smem>>
      %792 = vector.broadcast %791 : f32 to vector<16x16xf32>
      %793 = arith.mulf %53, %792 : vector<16x16xf32>
      %794 = arith.addf %790, %793 : vector<16x16xf32>
      %c21_147 = arith.constant 21 : index
      %795 = memref.load %arg3[%c21_147] : memref<32xf32, #tpu.memory_space<smem>>
      %796 = vector.broadcast %795 : f32 to vector<16x16xf32>
      %797 = arith.addf %794, %796 : vector<16x16xf32>
      %cst_148 = arith.constant 0.000000e+00 : f32
      %798 = vector.broadcast %cst_148 : f32 to vector<16x16xf32>
      %799 = arith.maximumf %797, %798 : vector<16x16xf32>
      %c21_149 = arith.constant 21 : index
      %800 = memref.load %arg4[%c21_149] : memref<96xf32, #tpu.memory_space<smem>>
      %801 = vector.broadcast %800 : f32 to vector<16x16xf32>
      %802 = arith.mulf %799, %801 : vector<16x16xf32>
      %803 = arith.addf %771, %802 : vector<16x16xf32>
      %c53_150 = arith.constant 53 : index
      %804 = memref.load %arg4[%c53_150] : memref<96xf32, #tpu.memory_space<smem>>
      %805 = vector.broadcast %804 : f32 to vector<16x16xf32>
      %806 = arith.mulf %799, %805 : vector<16x16xf32>
      %807 = arith.addf %775, %806 : vector<16x16xf32>
      %c85_151 = arith.constant 85 : index
      %808 = memref.load %arg4[%c85_151] : memref<96xf32, #tpu.memory_space<smem>>
      %809 = vector.broadcast %808 : f32 to vector<16x16xf32>
      %810 = arith.mulf %799, %809 : vector<16x16xf32>
      %811 = arith.addf %779, %810 : vector<16x16xf32>
      %c88 = arith.constant 88 : index
      %812 = memref.load %arg2[%c88] : memref<128xf32, #tpu.memory_space<smem>>
      %813 = vector.broadcast %812 : f32 to vector<16x16xf32>
      %814 = arith.mulf %1, %813 : vector<16x16xf32>
      %c89 = arith.constant 89 : index
      %815 = memref.load %arg2[%c89] : memref<128xf32, #tpu.memory_space<smem>>
      %816 = vector.broadcast %815 : f32 to vector<16x16xf32>
      %817 = arith.mulf %3, %816 : vector<16x16xf32>
      %818 = arith.addf %814, %817 : vector<16x16xf32>
      %c90 = arith.constant 90 : index
      %819 = memref.load %arg2[%c90] : memref<128xf32, #tpu.memory_space<smem>>
      %820 = vector.broadcast %819 : f32 to vector<16x16xf32>
      %821 = arith.mulf %5, %820 : vector<16x16xf32>
      %822 = arith.addf %818, %821 : vector<16x16xf32>
      %c91 = arith.constant 91 : index
      %823 = memref.load %arg2[%c91] : memref<128xf32, #tpu.memory_space<smem>>
      %824 = vector.broadcast %823 : f32 to vector<16x16xf32>
      %825 = arith.mulf %53, %824 : vector<16x16xf32>
      %826 = arith.addf %822, %825 : vector<16x16xf32>
      %c22_152 = arith.constant 22 : index
      %827 = memref.load %arg3[%c22_152] : memref<32xf32, #tpu.memory_space<smem>>
      %828 = vector.broadcast %827 : f32 to vector<16x16xf32>
      %829 = arith.addf %826, %828 : vector<16x16xf32>
      %cst_153 = arith.constant 0.000000e+00 : f32
      %830 = vector.broadcast %cst_153 : f32 to vector<16x16xf32>
      %831 = arith.maximumf %829, %830 : vector<16x16xf32>
      %c22_154 = arith.constant 22 : index
      %832 = memref.load %arg4[%c22_154] : memref<96xf32, #tpu.memory_space<smem>>
      %833 = vector.broadcast %832 : f32 to vector<16x16xf32>
      %834 = arith.mulf %831, %833 : vector<16x16xf32>
      %835 = arith.addf %803, %834 : vector<16x16xf32>
      %c54_155 = arith.constant 54 : index
      %836 = memref.load %arg4[%c54_155] : memref<96xf32, #tpu.memory_space<smem>>
      %837 = vector.broadcast %836 : f32 to vector<16x16xf32>
      %838 = arith.mulf %831, %837 : vector<16x16xf32>
      %839 = arith.addf %807, %838 : vector<16x16xf32>
      %c86_156 = arith.constant 86 : index
      %840 = memref.load %arg4[%c86_156] : memref<96xf32, #tpu.memory_space<smem>>
      %841 = vector.broadcast %840 : f32 to vector<16x16xf32>
      %842 = arith.mulf %831, %841 : vector<16x16xf32>
      %843 = arith.addf %811, %842 : vector<16x16xf32>
      %c92 = arith.constant 92 : index
      %844 = memref.load %arg2[%c92] : memref<128xf32, #tpu.memory_space<smem>>
      %845 = vector.broadcast %844 : f32 to vector<16x16xf32>
      %846 = arith.mulf %1, %845 : vector<16x16xf32>
      %c93 = arith.constant 93 : index
      %847 = memref.load %arg2[%c93] : memref<128xf32, #tpu.memory_space<smem>>
      %848 = vector.broadcast %847 : f32 to vector<16x16xf32>
      %849 = arith.mulf %3, %848 : vector<16x16xf32>
      %850 = arith.addf %846, %849 : vector<16x16xf32>
      %c94 = arith.constant 94 : index
      %851 = memref.load %arg2[%c94] : memref<128xf32, #tpu.memory_space<smem>>
      %852 = vector.broadcast %851 : f32 to vector<16x16xf32>
      %853 = arith.mulf %5, %852 : vector<16x16xf32>
      %854 = arith.addf %850, %853 : vector<16x16xf32>
      %c95 = arith.constant 95 : index
      %855 = memref.load %arg2[%c95] : memref<128xf32, #tpu.memory_space<smem>>
      %856 = vector.broadcast %855 : f32 to vector<16x16xf32>
      %857 = arith.mulf %53, %856 : vector<16x16xf32>
      %858 = arith.addf %854, %857 : vector<16x16xf32>
      %c23_157 = arith.constant 23 : index
      %859 = memref.load %arg3[%c23_157] : memref<32xf32, #tpu.memory_space<smem>>
      %860 = vector.broadcast %859 : f32 to vector<16x16xf32>
      %861 = arith.addf %858, %860 : vector<16x16xf32>
      %cst_158 = arith.constant 0.000000e+00 : f32
      %862 = vector.broadcast %cst_158 : f32 to vector<16x16xf32>
      %863 = arith.maximumf %861, %862 : vector<16x16xf32>
      %c23_159 = arith.constant 23 : index
      %864 = memref.load %arg4[%c23_159] : memref<96xf32, #tpu.memory_space<smem>>
      %865 = vector.broadcast %864 : f32 to vector<16x16xf32>
      %866 = arith.mulf %863, %865 : vector<16x16xf32>
      %867 = arith.addf %835, %866 : vector<16x16xf32>
      %c55_160 = arith.constant 55 : index
      %868 = memref.load %arg4[%c55_160] : memref<96xf32, #tpu.memory_space<smem>>
      %869 = vector.broadcast %868 : f32 to vector<16x16xf32>
      %870 = arith.mulf %863, %869 : vector<16x16xf32>
      %871 = arith.addf %839, %870 : vector<16x16xf32>
      %c87_161 = arith.constant 87 : index
      %872 = memref.load %arg4[%c87_161] : memref<96xf32, #tpu.memory_space<smem>>
      %873 = vector.broadcast %872 : f32 to vector<16x16xf32>
      %874 = arith.mulf %863, %873 : vector<16x16xf32>
      %875 = arith.addf %843, %874 : vector<16x16xf32>
      %c96 = arith.constant 96 : index
      %876 = memref.load %arg2[%c96] : memref<128xf32, #tpu.memory_space<smem>>
      %877 = vector.broadcast %876 : f32 to vector<16x16xf32>
      %878 = arith.mulf %1, %877 : vector<16x16xf32>
      %c97 = arith.constant 97 : index
      %879 = memref.load %arg2[%c97] : memref<128xf32, #tpu.memory_space<smem>>
      %880 = vector.broadcast %879 : f32 to vector<16x16xf32>
      %881 = arith.mulf %3, %880 : vector<16x16xf32>
      %882 = arith.addf %878, %881 : vector<16x16xf32>
      %c98 = arith.constant 98 : index
      %883 = memref.load %arg2[%c98] : memref<128xf32, #tpu.memory_space<smem>>
      %884 = vector.broadcast %883 : f32 to vector<16x16xf32>
      %885 = arith.mulf %5, %884 : vector<16x16xf32>
      %886 = arith.addf %882, %885 : vector<16x16xf32>
      %c99 = arith.constant 99 : index
      %887 = memref.load %arg2[%c99] : memref<128xf32, #tpu.memory_space<smem>>
      %888 = vector.broadcast %887 : f32 to vector<16x16xf32>
      %889 = arith.mulf %53, %888 : vector<16x16xf32>
      %890 = arith.addf %886, %889 : vector<16x16xf32>
      %c24_162 = arith.constant 24 : index
      %891 = memref.load %arg3[%c24_162] : memref<32xf32, #tpu.memory_space<smem>>
      %892 = vector.broadcast %891 : f32 to vector<16x16xf32>
      %893 = arith.addf %890, %892 : vector<16x16xf32>
      %cst_163 = arith.constant 0.000000e+00 : f32
      %894 = vector.broadcast %cst_163 : f32 to vector<16x16xf32>
      %895 = arith.maximumf %893, %894 : vector<16x16xf32>
      %c24_164 = arith.constant 24 : index
      %896 = memref.load %arg4[%c24_164] : memref<96xf32, #tpu.memory_space<smem>>
      %897 = vector.broadcast %896 : f32 to vector<16x16xf32>
      %898 = arith.mulf %895, %897 : vector<16x16xf32>
      %899 = arith.addf %867, %898 : vector<16x16xf32>
      %c56_165 = arith.constant 56 : index
      %900 = memref.load %arg4[%c56_165] : memref<96xf32, #tpu.memory_space<smem>>
      %901 = vector.broadcast %900 : f32 to vector<16x16xf32>
      %902 = arith.mulf %895, %901 : vector<16x16xf32>
      %903 = arith.addf %871, %902 : vector<16x16xf32>
      %c88_166 = arith.constant 88 : index
      %904 = memref.load %arg4[%c88_166] : memref<96xf32, #tpu.memory_space<smem>>
      %905 = vector.broadcast %904 : f32 to vector<16x16xf32>
      %906 = arith.mulf %895, %905 : vector<16x16xf32>
      %907 = arith.addf %875, %906 : vector<16x16xf32>
      %c100 = arith.constant 100 : index
      %908 = memref.load %arg2[%c100] : memref<128xf32, #tpu.memory_space<smem>>
      %909 = vector.broadcast %908 : f32 to vector<16x16xf32>
      %910 = arith.mulf %1, %909 : vector<16x16xf32>
      %c101 = arith.constant 101 : index
      %911 = memref.load %arg2[%c101] : memref<128xf32, #tpu.memory_space<smem>>
      %912 = vector.broadcast %911 : f32 to vector<16x16xf32>
      %913 = arith.mulf %3, %912 : vector<16x16xf32>
      %914 = arith.addf %910, %913 : vector<16x16xf32>
      %c102 = arith.constant 102 : index
      %915 = memref.load %arg2[%c102] : memref<128xf32, #tpu.memory_space<smem>>
      %916 = vector.broadcast %915 : f32 to vector<16x16xf32>
      %917 = arith.mulf %5, %916 : vector<16x16xf32>
      %918 = arith.addf %914, %917 : vector<16x16xf32>
      %c103 = arith.constant 103 : index
      %919 = memref.load %arg2[%c103] : memref<128xf32, #tpu.memory_space<smem>>
      %920 = vector.broadcast %919 : f32 to vector<16x16xf32>
      %921 = arith.mulf %53, %920 : vector<16x16xf32>
      %922 = arith.addf %918, %921 : vector<16x16xf32>
      %c25_167 = arith.constant 25 : index
      %923 = memref.load %arg3[%c25_167] : memref<32xf32, #tpu.memory_space<smem>>
      %924 = vector.broadcast %923 : f32 to vector<16x16xf32>
      %925 = arith.addf %922, %924 : vector<16x16xf32>
      %cst_168 = arith.constant 0.000000e+00 : f32
      %926 = vector.broadcast %cst_168 : f32 to vector<16x16xf32>
      %927 = arith.maximumf %925, %926 : vector<16x16xf32>
      %c25_169 = arith.constant 25 : index
      %928 = memref.load %arg4[%c25_169] : memref<96xf32, #tpu.memory_space<smem>>
      %929 = vector.broadcast %928 : f32 to vector<16x16xf32>
      %930 = arith.mulf %927, %929 : vector<16x16xf32>
      %931 = arith.addf %899, %930 : vector<16x16xf32>
      %c57_170 = arith.constant 57 : index
      %932 = memref.load %arg4[%c57_170] : memref<96xf32, #tpu.memory_space<smem>>
      %933 = vector.broadcast %932 : f32 to vector<16x16xf32>
      %934 = arith.mulf %927, %933 : vector<16x16xf32>
      %935 = arith.addf %903, %934 : vector<16x16xf32>
      %c89_171 = arith.constant 89 : index
      %936 = memref.load %arg4[%c89_171] : memref<96xf32, #tpu.memory_space<smem>>
      %937 = vector.broadcast %936 : f32 to vector<16x16xf32>
      %938 = arith.mulf %927, %937 : vector<16x16xf32>
      %939 = arith.addf %907, %938 : vector<16x16xf32>
      %c104 = arith.constant 104 : index
      %940 = memref.load %arg2[%c104] : memref<128xf32, #tpu.memory_space<smem>>
      %941 = vector.broadcast %940 : f32 to vector<16x16xf32>
      %942 = arith.mulf %1, %941 : vector<16x16xf32>
      %c105 = arith.constant 105 : index
      %943 = memref.load %arg2[%c105] : memref<128xf32, #tpu.memory_space<smem>>
      %944 = vector.broadcast %943 : f32 to vector<16x16xf32>
      %945 = arith.mulf %3, %944 : vector<16x16xf32>
      %946 = arith.addf %942, %945 : vector<16x16xf32>
      %c106 = arith.constant 106 : index
      %947 = memref.load %arg2[%c106] : memref<128xf32, #tpu.memory_space<smem>>
      %948 = vector.broadcast %947 : f32 to vector<16x16xf32>
      %949 = arith.mulf %5, %948 : vector<16x16xf32>
      %950 = arith.addf %946, %949 : vector<16x16xf32>
      %c107 = arith.constant 107 : index
      %951 = memref.load %arg2[%c107] : memref<128xf32, #tpu.memory_space<smem>>
      %952 = vector.broadcast %951 : f32 to vector<16x16xf32>
      %953 = arith.mulf %53, %952 : vector<16x16xf32>
      %954 = arith.addf %950, %953 : vector<16x16xf32>
      %c26_172 = arith.constant 26 : index
      %955 = memref.load %arg3[%c26_172] : memref<32xf32, #tpu.memory_space<smem>>
      %956 = vector.broadcast %955 : f32 to vector<16x16xf32>
      %957 = arith.addf %954, %956 : vector<16x16xf32>
      %cst_173 = arith.constant 0.000000e+00 : f32
      %958 = vector.broadcast %cst_173 : f32 to vector<16x16xf32>
      %959 = arith.maximumf %957, %958 : vector<16x16xf32>
      %c26_174 = arith.constant 26 : index
      %960 = memref.load %arg4[%c26_174] : memref<96xf32, #tpu.memory_space<smem>>
      %961 = vector.broadcast %960 : f32 to vector<16x16xf32>
      %962 = arith.mulf %959, %961 : vector<16x16xf32>
      %963 = arith.addf %931, %962 : vector<16x16xf32>
      %c58_175 = arith.constant 58 : index
      %964 = memref.load %arg4[%c58_175] : memref<96xf32, #tpu.memory_space<smem>>
      %965 = vector.broadcast %964 : f32 to vector<16x16xf32>
      %966 = arith.mulf %959, %965 : vector<16x16xf32>
      %967 = arith.addf %935, %966 : vector<16x16xf32>
      %c90_176 = arith.constant 90 : index
      %968 = memref.load %arg4[%c90_176] : memref<96xf32, #tpu.memory_space<smem>>
      %969 = vector.broadcast %968 : f32 to vector<16x16xf32>
      %970 = arith.mulf %959, %969 : vector<16x16xf32>
      %971 = arith.addf %939, %970 : vector<16x16xf32>
      %c108 = arith.constant 108 : index
      %972 = memref.load %arg2[%c108] : memref<128xf32, #tpu.memory_space<smem>>
      %973 = vector.broadcast %972 : f32 to vector<16x16xf32>
      %974 = arith.mulf %1, %973 : vector<16x16xf32>
      %c109 = arith.constant 109 : index
      %975 = memref.load %arg2[%c109] : memref<128xf32, #tpu.memory_space<smem>>
      %976 = vector.broadcast %975 : f32 to vector<16x16xf32>
      %977 = arith.mulf %3, %976 : vector<16x16xf32>
      %978 = arith.addf %974, %977 : vector<16x16xf32>
      %c110 = arith.constant 110 : index
      %979 = memref.load %arg2[%c110] : memref<128xf32, #tpu.memory_space<smem>>
      %980 = vector.broadcast %979 : f32 to vector<16x16xf32>
      %981 = arith.mulf %5, %980 : vector<16x16xf32>
      %982 = arith.addf %978, %981 : vector<16x16xf32>
      %c111 = arith.constant 111 : index
      %983 = memref.load %arg2[%c111] : memref<128xf32, #tpu.memory_space<smem>>
      %984 = vector.broadcast %983 : f32 to vector<16x16xf32>
      %985 = arith.mulf %53, %984 : vector<16x16xf32>
      %986 = arith.addf %982, %985 : vector<16x16xf32>
      %c27_177 = arith.constant 27 : index
      %987 = memref.load %arg3[%c27_177] : memref<32xf32, #tpu.memory_space<smem>>
      %988 = vector.broadcast %987 : f32 to vector<16x16xf32>
      %989 = arith.addf %986, %988 : vector<16x16xf32>
      %cst_178 = arith.constant 0.000000e+00 : f32
      %990 = vector.broadcast %cst_178 : f32 to vector<16x16xf32>
      %991 = arith.maximumf %989, %990 : vector<16x16xf32>
      %c27_179 = arith.constant 27 : index
      %992 = memref.load %arg4[%c27_179] : memref<96xf32, #tpu.memory_space<smem>>
      %993 = vector.broadcast %992 : f32 to vector<16x16xf32>
      %994 = arith.mulf %991, %993 : vector<16x16xf32>
      %995 = arith.addf %963, %994 : vector<16x16xf32>
      %c59_180 = arith.constant 59 : index
      %996 = memref.load %arg4[%c59_180] : memref<96xf32, #tpu.memory_space<smem>>
      %997 = vector.broadcast %996 : f32 to vector<16x16xf32>
      %998 = arith.mulf %991, %997 : vector<16x16xf32>
      %999 = arith.addf %967, %998 : vector<16x16xf32>
      %c91_181 = arith.constant 91 : index
      %1000 = memref.load %arg4[%c91_181] : memref<96xf32, #tpu.memory_space<smem>>
      %1001 = vector.broadcast %1000 : f32 to vector<16x16xf32>
      %1002 = arith.mulf %991, %1001 : vector<16x16xf32>
      %1003 = arith.addf %971, %1002 : vector<16x16xf32>
      %c112 = arith.constant 112 : index
      %1004 = memref.load %arg2[%c112] : memref<128xf32, #tpu.memory_space<smem>>
      %1005 = vector.broadcast %1004 : f32 to vector<16x16xf32>
      %1006 = arith.mulf %1, %1005 : vector<16x16xf32>
      %c113 = arith.constant 113 : index
      %1007 = memref.load %arg2[%c113] : memref<128xf32, #tpu.memory_space<smem>>
      %1008 = vector.broadcast %1007 : f32 to vector<16x16xf32>
      %1009 = arith.mulf %3, %1008 : vector<16x16xf32>
      %1010 = arith.addf %1006, %1009 : vector<16x16xf32>
      %c114 = arith.constant 114 : index
      %1011 = memref.load %arg2[%c114] : memref<128xf32, #tpu.memory_space<smem>>
      %1012 = vector.broadcast %1011 : f32 to vector<16x16xf32>
      %1013 = arith.mulf %5, %1012 : vector<16x16xf32>
      %1014 = arith.addf %1010, %1013 : vector<16x16xf32>
      %c115 = arith.constant 115 : index
      %1015 = memref.load %arg2[%c115] : memref<128xf32, #tpu.memory_space<smem>>
      %1016 = vector.broadcast %1015 : f32 to vector<16x16xf32>
      %1017 = arith.mulf %53, %1016 : vector<16x16xf32>
      %1018 = arith.addf %1014, %1017 : vector<16x16xf32>
      %c28_182 = arith.constant 28 : index
      %1019 = memref.load %arg3[%c28_182] : memref<32xf32, #tpu.memory_space<smem>>
      %1020 = vector.broadcast %1019 : f32 to vector<16x16xf32>
      %1021 = arith.addf %1018, %1020 : vector<16x16xf32>
      %cst_183 = arith.constant 0.000000e+00 : f32
      %1022 = vector.broadcast %cst_183 : f32 to vector<16x16xf32>
      %1023 = arith.maximumf %1021, %1022 : vector<16x16xf32>
      %c28_184 = arith.constant 28 : index
      %1024 = memref.load %arg4[%c28_184] : memref<96xf32, #tpu.memory_space<smem>>
      %1025 = vector.broadcast %1024 : f32 to vector<16x16xf32>
      %1026 = arith.mulf %1023, %1025 : vector<16x16xf32>
      %1027 = arith.addf %995, %1026 : vector<16x16xf32>
      %c60_185 = arith.constant 60 : index
      %1028 = memref.load %arg4[%c60_185] : memref<96xf32, #tpu.memory_space<smem>>
      %1029 = vector.broadcast %1028 : f32 to vector<16x16xf32>
      %1030 = arith.mulf %1023, %1029 : vector<16x16xf32>
      %1031 = arith.addf %999, %1030 : vector<16x16xf32>
      %c92_186 = arith.constant 92 : index
      %1032 = memref.load %arg4[%c92_186] : memref<96xf32, #tpu.memory_space<smem>>
      %1033 = vector.broadcast %1032 : f32 to vector<16x16xf32>
      %1034 = arith.mulf %1023, %1033 : vector<16x16xf32>
      %1035 = arith.addf %1003, %1034 : vector<16x16xf32>
      %c116 = arith.constant 116 : index
      %1036 = memref.load %arg2[%c116] : memref<128xf32, #tpu.memory_space<smem>>
      %1037 = vector.broadcast %1036 : f32 to vector<16x16xf32>
      %1038 = arith.mulf %1, %1037 : vector<16x16xf32>
      %c117 = arith.constant 117 : index
      %1039 = memref.load %arg2[%c117] : memref<128xf32, #tpu.memory_space<smem>>
      %1040 = vector.broadcast %1039 : f32 to vector<16x16xf32>
      %1041 = arith.mulf %3, %1040 : vector<16x16xf32>
      %1042 = arith.addf %1038, %1041 : vector<16x16xf32>
      %c118 = arith.constant 118 : index
      %1043 = memref.load %arg2[%c118] : memref<128xf32, #tpu.memory_space<smem>>
      %1044 = vector.broadcast %1043 : f32 to vector<16x16xf32>
      %1045 = arith.mulf %5, %1044 : vector<16x16xf32>
      %1046 = arith.addf %1042, %1045 : vector<16x16xf32>
      %c119 = arith.constant 119 : index
      %1047 = memref.load %arg2[%c119] : memref<128xf32, #tpu.memory_space<smem>>
      %1048 = vector.broadcast %1047 : f32 to vector<16x16xf32>
      %1049 = arith.mulf %53, %1048 : vector<16x16xf32>
      %1050 = arith.addf %1046, %1049 : vector<16x16xf32>
      %c29_187 = arith.constant 29 : index
      %1051 = memref.load %arg3[%c29_187] : memref<32xf32, #tpu.memory_space<smem>>
      %1052 = vector.broadcast %1051 : f32 to vector<16x16xf32>
      %1053 = arith.addf %1050, %1052 : vector<16x16xf32>
      %cst_188 = arith.constant 0.000000e+00 : f32
      %1054 = vector.broadcast %cst_188 : f32 to vector<16x16xf32>
      %1055 = arith.maximumf %1053, %1054 : vector<16x16xf32>
      %c29_189 = arith.constant 29 : index
      %1056 = memref.load %arg4[%c29_189] : memref<96xf32, #tpu.memory_space<smem>>
      %1057 = vector.broadcast %1056 : f32 to vector<16x16xf32>
      %1058 = arith.mulf %1055, %1057 : vector<16x16xf32>
      %1059 = arith.addf %1027, %1058 : vector<16x16xf32>
      %c61_190 = arith.constant 61 : index
      %1060 = memref.load %arg4[%c61_190] : memref<96xf32, #tpu.memory_space<smem>>
      %1061 = vector.broadcast %1060 : f32 to vector<16x16xf32>
      %1062 = arith.mulf %1055, %1061 : vector<16x16xf32>
      %1063 = arith.addf %1031, %1062 : vector<16x16xf32>
      %c93_191 = arith.constant 93 : index
      %1064 = memref.load %arg4[%c93_191] : memref<96xf32, #tpu.memory_space<smem>>
      %1065 = vector.broadcast %1064 : f32 to vector<16x16xf32>
      %1066 = arith.mulf %1055, %1065 : vector<16x16xf32>
      %1067 = arith.addf %1035, %1066 : vector<16x16xf32>
      %c120 = arith.constant 120 : index
      %1068 = memref.load %arg2[%c120] : memref<128xf32, #tpu.memory_space<smem>>
      %1069 = vector.broadcast %1068 : f32 to vector<16x16xf32>
      %1070 = arith.mulf %1, %1069 : vector<16x16xf32>
      %c121 = arith.constant 121 : index
      %1071 = memref.load %arg2[%c121] : memref<128xf32, #tpu.memory_space<smem>>
      %1072 = vector.broadcast %1071 : f32 to vector<16x16xf32>
      %1073 = arith.mulf %3, %1072 : vector<16x16xf32>
      %1074 = arith.addf %1070, %1073 : vector<16x16xf32>
      %c122 = arith.constant 122 : index
      %1075 = memref.load %arg2[%c122] : memref<128xf32, #tpu.memory_space<smem>>
      %1076 = vector.broadcast %1075 : f32 to vector<16x16xf32>
      %1077 = arith.mulf %5, %1076 : vector<16x16xf32>
      %1078 = arith.addf %1074, %1077 : vector<16x16xf32>
      %c123 = arith.constant 123 : index
      %1079 = memref.load %arg2[%c123] : memref<128xf32, #tpu.memory_space<smem>>
      %1080 = vector.broadcast %1079 : f32 to vector<16x16xf32>
      %1081 = arith.mulf %53, %1080 : vector<16x16xf32>
      %1082 = arith.addf %1078, %1081 : vector<16x16xf32>
      %c30_192 = arith.constant 30 : index
      %1083 = memref.load %arg3[%c30_192] : memref<32xf32, #tpu.memory_space<smem>>
      %1084 = vector.broadcast %1083 : f32 to vector<16x16xf32>
      %1085 = arith.addf %1082, %1084 : vector<16x16xf32>
      %cst_193 = arith.constant 0.000000e+00 : f32
      %1086 = vector.broadcast %cst_193 : f32 to vector<16x16xf32>
      %1087 = arith.maximumf %1085, %1086 : vector<16x16xf32>
      %c30_194 = arith.constant 30 : index
      %1088 = memref.load %arg4[%c30_194] : memref<96xf32, #tpu.memory_space<smem>>
      %1089 = vector.broadcast %1088 : f32 to vector<16x16xf32>
      %1090 = arith.mulf %1087, %1089 : vector<16x16xf32>
      %1091 = arith.addf %1059, %1090 : vector<16x16xf32>
      %c62_195 = arith.constant 62 : index
      %1092 = memref.load %arg4[%c62_195] : memref<96xf32, #tpu.memory_space<smem>>
      %1093 = vector.broadcast %1092 : f32 to vector<16x16xf32>
      %1094 = arith.mulf %1087, %1093 : vector<16x16xf32>
      %1095 = arith.addf %1063, %1094 : vector<16x16xf32>
      %c94_196 = arith.constant 94 : index
      %1096 = memref.load %arg4[%c94_196] : memref<96xf32, #tpu.memory_space<smem>>
      %1097 = vector.broadcast %1096 : f32 to vector<16x16xf32>
      %1098 = arith.mulf %1087, %1097 : vector<16x16xf32>
      %1099 = arith.addf %1067, %1098 : vector<16x16xf32>
      %c124 = arith.constant 124 : index
      %1100 = memref.load %arg2[%c124] : memref<128xf32, #tpu.memory_space<smem>>
      %1101 = vector.broadcast %1100 : f32 to vector<16x16xf32>
      %1102 = arith.mulf %1, %1101 : vector<16x16xf32>
      %c125 = arith.constant 125 : index
      %1103 = memref.load %arg2[%c125] : memref<128xf32, #tpu.memory_space<smem>>
      %1104 = vector.broadcast %1103 : f32 to vector<16x16xf32>
      %1105 = arith.mulf %3, %1104 : vector<16x16xf32>
      %1106 = arith.addf %1102, %1105 : vector<16x16xf32>
      %c126 = arith.constant 126 : index
      %1107 = memref.load %arg2[%c126] : memref<128xf32, #tpu.memory_space<smem>>
      %1108 = vector.broadcast %1107 : f32 to vector<16x16xf32>
      %1109 = arith.mulf %5, %1108 : vector<16x16xf32>
      %1110 = arith.addf %1106, %1109 : vector<16x16xf32>
      %c127 = arith.constant 127 : index
      %1111 = memref.load %arg2[%c127] : memref<128xf32, #tpu.memory_space<smem>>
      %1112 = vector.broadcast %1111 : f32 to vector<16x16xf32>
      %1113 = arith.mulf %53, %1112 : vector<16x16xf32>
      %1114 = arith.addf %1110, %1113 : vector<16x16xf32>
      %c31_197 = arith.constant 31 : index
      %1115 = memref.load %arg3[%c31_197] : memref<32xf32, #tpu.memory_space<smem>>
      %1116 = vector.broadcast %1115 : f32 to vector<16x16xf32>
      %1117 = arith.addf %1114, %1116 : vector<16x16xf32>
      %cst_198 = arith.constant 0.000000e+00 : f32
      %1118 = vector.broadcast %cst_198 : f32 to vector<16x16xf32>
      %1119 = arith.maximumf %1117, %1118 : vector<16x16xf32>
      %c31_199 = arith.constant 31 : index
      %1120 = memref.load %arg4[%c31_199] : memref<96xf32, #tpu.memory_space<smem>>
      %1121 = vector.broadcast %1120 : f32 to vector<16x16xf32>
      %1122 = arith.mulf %1119, %1121 : vector<16x16xf32>
      %1123 = arith.addf %1091, %1122 : vector<16x16xf32>
      %c63_200 = arith.constant 63 : index
      %1124 = memref.load %arg4[%c63_200] : memref<96xf32, #tpu.memory_space<smem>>
      %1125 = vector.broadcast %1124 : f32 to vector<16x16xf32>
      %1126 = arith.mulf %1119, %1125 : vector<16x16xf32>
      %1127 = arith.addf %1095, %1126 : vector<16x16xf32>
      %c95_201 = arith.constant 95 : index
      %1128 = memref.load %arg4[%c95_201] : memref<96xf32, #tpu.memory_space<smem>>
      %1129 = vector.broadcast %1128 : f32 to vector<16x16xf32>
      %1130 = arith.mulf %1119, %1129 : vector<16x16xf32>
      %1131 = arith.addf %1099, %1130 : vector<16x16xf32>
      %c0_202 = arith.constant 0 : index
      %1132 = memref.load %arg5[%c0_202] : memref<3xf32, #tpu.memory_space<smem>>
      %1133 = vector.broadcast %1132 : f32 to vector<16x16xf32>
      %1134 = arith.addf %1123, %1133 : vector<16x16xf32>
      %1135 = arith.negf %1134 : vector<16x16xf32>
      %1136 = math.exp %1135 : vector<16x16xf32>
      %cst_203 = arith.constant 1.000000e+00 : f32
      %1137 = vector.broadcast %cst_203 : f32 to vector<16x16xf32>
      %1138 = arith.addf %1137, %1136 : vector<16x16xf32>
      %1139 = arith.divf %1137, %1138 : vector<16x16xf32>
      %cst_204 = arith.constant 2.550000e+02 : f32
      %1140 = vector.broadcast %cst_204 : f32 to vector<16x16xf32>
      %1141 = arith.mulf %1139, %1140 : vector<16x16xf32>
      %c0_205 = arith.constant 0 : index
      %c0_206 = arith.constant 0 : index
      %c0_207 = arith.constant 0 : index
      %1142 = vector.load %arg7[%c0_205, %c0_206, %c0_207] : memref<3x16x16xf32, #tpu.memory_space<vmem>>, vector<1x16x16xf32>
      %1143 = vector.shape_cast %1142 : vector<1x16x16xf32> to vector<16x16xf32>
      %1144 = vector.shape_cast %1141 : vector<16x16xf32> to vector<1x16x16xf32>
      tpu.vector_store %arg7[%c0_205, %c0_206, %c0_207], %1144 {strides = array<i32>} : memref<3x16x16xf32, #tpu.memory_space<vmem>>, vector<1x16x16xf32>,
      %c1_208 = arith.constant 1 : index
      %1145 = memref.load %arg5[%c1_208] : memref<3xf32, #tpu.memory_space<smem>>
      %1146 = vector.broadcast %1145 : f32 to vector<16x16xf32>
      %1147 = arith.addf %1127, %1146 : vector<16x16xf32>
      %1148 = arith.negf %1147 : vector<16x16xf32>
      %1149 = math.exp %1148 : vector<16x16xf32>
      %cst_209 = arith.constant 1.000000e+00 : f32
      %1150 = vector.broadcast %cst_209 : f32 to vector<16x16xf32>
      %1151 = arith.addf %1150, %1149 : vector<16x16xf32>
      %1152 = arith.divf %1150, %1151 : vector<16x16xf32>
      %cst_210 = arith.constant 2.550000e+02 : f32
      %1153 = vector.broadcast %cst_210 : f32 to vector<16x16xf32>
      %1154 = arith.mulf %1152, %1153 : vector<16x16xf32>
      %c1_211 = arith.constant 1 : index
      %c0_212 = arith.constant 0 : index
      %c0_213 = arith.constant 0 : index
      %1155 = vector.load %arg7[%c1_211, %c0_212, %c0_213] : memref<3x16x16xf32, #tpu.memory_space<vmem>>, vector<1x16x16xf32>
      %1156 = vector.shape_cast %1155 : vector<1x16x16xf32> to vector<16x16xf32>
      %1157 = vector.shape_cast %1154 : vector<16x16xf32> to vector<1x16x16xf32>
      tpu.vector_store %arg7[%c1_211, %c0_212, %c0_213], %1157 {strides = array<i32>} : memref<3x16x16xf32, #tpu.memory_space<vmem>>, vector<1x16x16xf32>,
      %c2_214 = arith.constant 2 : index
      %1158 = memref.load %arg5[%c2_214] : memref<3xf32, #tpu.memory_space<smem>>
      %1159 = vector.broadcast %1158 : f32 to vector<16x16xf32>
      %1160 = arith.addf %1131, %1159 : vector<16x16xf32>
      %1161 = arith.negf %1160 : vector<16x16xf32>
      %1162 = math.exp %1161 : vector<16x16xf32>
      %cst_215 = arith.constant 1.000000e+00 : f32
      %1163 = vector.broadcast %cst_215 : f32 to vector<16x16xf32>
      %1164 = arith.addf %1163, %1162 : vector<16x16xf32>
      %1165 = arith.divf %1163, %1164 : vector<16x16xf32>
      %cst_216 = arith.constant 2.550000e+02 : f32
      %1166 = vector.broadcast %cst_216 : f32 to vector<16x16xf32>
      %1167 = arith.mulf %1165, %1166 : vector<16x16xf32>
      %c2_217 = arith.constant 2 : index
      %c0_218 = arith.constant 0 : index
      %c0_219 = arith.constant 0 : index
      %1168 = vector.load %arg7[%c2_217, %c0_218, %c0_219] : memref<3x16x16xf32, #tpu.memory_space<vmem>>, vector<1x16x16xf32>
      %1169 = vector.shape_cast %1168 : vector<1x16x16xf32> to vector<16x16xf32>
      %1170 = vector.shape_cast %1167 : vector<16x16xf32> to vector<1x16x16xf32>
      tpu.vector_store %arg7[%c2_217, %c0_218, %c0_219], %1170 {strides = array<i32>} : memref<3x16x16xf32, #tpu.memory_space<vmem>>, vector<1x16x16xf32>,
    } else {
    }
    return
  }
  func.func @transform_0(%arg0: i32) -> (i32, i32, i32, i32) {
    %c0_i32 = arith.constant 0 : i32
    %c0_i32_0 = arith.constant 0 : i32
    %c0_i32_1 = arith.constant 0 : i32
    %c0_i32_2 = arith.constant 0 : i32
    return %arg0, %c0_i32, %c0_i32_0, %c0_i32_1 : i32, i32, i32, i32
  }
  func.func @transform_1(%arg0: i32) -> i32 {
    %c0_i32 = arith.constant 0 : i32
    %c0_i32_0 = arith.constant 0 : i32
    return %c0_i32 : i32
  }
  func.func @transform_2(%arg0: i32) -> i32 {
    %c0_i32 = arith.constant 0 : i32
    %c0_i32_0 = arith.constant 0 : i32
    return %c0_i32 : i32
  }
  func.func @transform_3(%arg0: i32) -> i32 {
    %c0_i32 = arith.constant 0 : i32
    %c0_i32_0 = arith.constant 0 : i32
    return %c0_i32 : i32
  }
  func.func @transform_4(%arg0: i32) -> i32 {
    %c0_i32 = arith.constant 0 : i32
    %c0_i32_0 = arith.constant 0 : i32
    return %c0_i32 : i32
  }
  func.func @transform_5(%arg0: i32) -> (i32, i32, i32) {
    %c0_i32 = arith.constant 0 : i32
    %c0_i32_0 = arith.constant 0 : i32
    %c0_i32_1 = arith.constant 0 : i32
    return %arg0, %c0_i32, %c0_i32_0 : i32, i32, i32
  }
  func.func @transform_6(%arg0: i32) -> (i32, i32, i32) {
    %c0_i32 = arith.constant 0 : i32
    %c0_i32_0 = arith.constant 0 : i32
    %c0_i32_1 = arith.constant 0 : i32
    %c0_i32_2 = arith.constant 0 : i32
    return %c0_i32, %c0_i32_0, %c0_i32_1 : i32, i32, i32
  }
}

module attributes {stable_mosaic.version = 11 : i64} {
  func.func @_fused_dehaze_kernel(%arg0: i32, %arg1: memref<1x3x16x16xf32, #tpu.memory_space<vmem>>, %arg2: memref<2x3xf32, #tpu.memory_space<smem>>, %arg3: memref<3x16x16xf32, #tpu.memory_space<vmem>>, %arg4: memref<1x3x16x16xf32, #tpu.memory_space<vmem>>, %arg5: memref<1x3x16x16xf32, #tpu.memory_space<vmem>>, %arg6: memref<1x1x1xf32, #tpu.memory_space<vmem>>) attributes {dimension_semantics = [#tpu.dimension_semantics<parallel>], iteration_bounds = array<i64: 2>, scalar_prefetch = 0 : i64, scratch_operands = 0 : i64, tpu.core_type = #tpu.core_type<tc>, window_params = [{transform_indices = @transform_0, window_bounds = array<i64: 1, 3, 16, 16>}, {transform_indices = @transform_1, window_bounds = array<i64: 2, 3>}, {pipeline_mode = #tpu.pipeline_mode<synchronous>, transform_indices = @transform_2, window_bounds = array<i64: 3, 16, 16>}, {transform_indices = @transform_3, window_bounds = array<i64: 1, 3, 16, 16>}, {transform_indices = @transform_4, window_bounds = array<i64: 1, 3, 16, 16>}, {transform_indices = @transform_5, window_bounds = array<i64: 1, 1, 1>}]} {
    %c0 = arith.constant 0 : index
    %c0_0 = arith.constant 0 : index
    %c0_1 = arith.constant 0 : index
    %c0_2 = arith.constant 0 : index
    %0 = vector.load %arg1[%c0, %c0_0, %c0_1, %c0_2] : memref<1x3x16x16xf32, #tpu.memory_space<vmem>>, vector<1x1x16x16xf32>
    %1 = vector.shape_cast %0 : vector<1x1x16x16xf32> to vector<16x16xf32>
    %cst = arith.constant 2.250000e-01 : f32
    %2 = vector.broadcast %cst : f32 to vector<16x16xf32>
    %3 = arith.mulf %1, %2 : vector<16x16xf32>
    %cst_3 = arith.constant 4.500000e-01 : f32
    %4 = vector.broadcast %cst_3 : f32 to vector<16x16xf32>
    %5 = arith.addf %3, %4 : vector<16x16xf32>
    %cst_4 = arith.constant 2.550000e+02 : f32
    %6 = vector.broadcast %cst_4 : f32 to vector<16x16xf32>
    %7 = arith.mulf %5, %6 : vector<16x16xf32>
    %cst_5 = arith.constant 0.000000e+00 : f32
    %cst_6 = arith.constant 2.550000e+02 : f32
    %8 = vector.broadcast %cst_5 : f32 to vector<16x16xf32>
    %9 = arith.maximumf %8, %7 : vector<16x16xf32>
    %10 = vector.broadcast %cst_6 : f32 to vector<16x16xf32>
    %11 = arith.minimumf %10, %9 : vector<16x16xf32>
    %c0_7 = arith.constant 0 : index
    %c1 = arith.constant 1 : index
    %c0_8 = arith.constant 0 : index
    %c0_9 = arith.constant 0 : index
    %12 = vector.load %arg1[%c0_7, %c1, %c0_8, %c0_9] : memref<1x3x16x16xf32, #tpu.memory_space<vmem>>, vector<1x1x16x16xf32>
    %13 = vector.shape_cast %12 : vector<1x1x16x16xf32> to vector<16x16xf32>
    %cst_10 = arith.constant 2.250000e-01 : f32
    %14 = vector.broadcast %cst_10 : f32 to vector<16x16xf32>
    %15 = arith.mulf %13, %14 : vector<16x16xf32>
    %cst_11 = arith.constant 4.500000e-01 : f32
    %16 = vector.broadcast %cst_11 : f32 to vector<16x16xf32>
    %17 = arith.addf %15, %16 : vector<16x16xf32>
    %cst_12 = arith.constant 2.550000e+02 : f32
    %18 = vector.broadcast %cst_12 : f32 to vector<16x16xf32>
    %19 = arith.mulf %17, %18 : vector<16x16xf32>
    %cst_13 = arith.constant 0.000000e+00 : f32
    %cst_14 = arith.constant 2.550000e+02 : f32
    %20 = vector.broadcast %cst_13 : f32 to vector<16x16xf32>
    %21 = arith.maximumf %20, %19 : vector<16x16xf32>
    %22 = vector.broadcast %cst_14 : f32 to vector<16x16xf32>
    %23 = arith.minimumf %22, %21 : vector<16x16xf32>
    %c0_15 = arith.constant 0 : index
    %c2 = arith.constant 2 : index
    %c0_16 = arith.constant 0 : index
    %c0_17 = arith.constant 0 : index
    %24 = vector.load %arg1[%c0_15, %c2, %c0_16, %c0_17] : memref<1x3x16x16xf32, #tpu.memory_space<vmem>>, vector<1x1x16x16xf32>
    %25 = vector.shape_cast %24 : vector<1x1x16x16xf32> to vector<16x16xf32>
    %cst_18 = arith.constant 2.250000e-01 : f32
    %26 = vector.broadcast %cst_18 : f32 to vector<16x16xf32>
    %27 = arith.mulf %25, %26 : vector<16x16xf32>
    %cst_19 = arith.constant 4.500000e-01 : f32
    %28 = vector.broadcast %cst_19 : f32 to vector<16x16xf32>
    %29 = arith.addf %27, %28 : vector<16x16xf32>
    %cst_20 = arith.constant 2.550000e+02 : f32
    %30 = vector.broadcast %cst_20 : f32 to vector<16x16xf32>
    %31 = arith.mulf %29, %30 : vector<16x16xf32>
    %cst_21 = arith.constant 0.000000e+00 : f32
    %cst_22 = arith.constant 2.550000e+02 : f32
    %32 = vector.broadcast %cst_21 : f32 to vector<16x16xf32>
    %33 = arith.maximumf %32, %31 : vector<16x16xf32>
    %34 = vector.broadcast %cst_22 : f32 to vector<16x16xf32>
    %35 = arith.minimumf %34, %33 : vector<16x16xf32>
    %36 = arith.index_cast %arg0 : i32 to index
    %c0_23 = arith.constant 0 : index
    %37 = memref.load %arg2[%36, %c0_23] : memref<2x3xf32, #tpu.memory_space<smem>>
    %38 = arith.index_cast %arg0 : i32 to index
    %c1_24 = arith.constant 1 : index
    %39 = memref.load %arg2[%38, %c1_24] : memref<2x3xf32, #tpu.memory_space<smem>>
    %40 = arith.index_cast %arg0 : i32 to index
    %c2_25 = arith.constant 2 : index
    %41 = memref.load %arg2[%40, %c2_25] : memref<2x3xf32, #tpu.memory_space<smem>>
    %cst_26 = arith.constant 1.000000e+00 : f32
    %42 = arith.divf %cst_26, %37 : f32
    %43 = vector.broadcast %42 : f32 to vector<16x16xf32>
    %44 = arith.mulf %11, %43 : vector<16x16xf32>
    %cst_27 = arith.constant 1.000000e+00 : f32
    %45 = arith.divf %cst_27, %39 : f32
    %46 = vector.broadcast %45 : f32 to vector<16x16xf32>
    %47 = arith.mulf %23, %46 : vector<16x16xf32>
    %48 = arith.minimumf %44, %47 : vector<16x16xf32>
    %cst_28 = arith.constant 1.000000e+00 : f32
    %49 = arith.divf %cst_28, %41 : f32
    %50 = vector.broadcast %49 : f32 to vector<16x16xf32>
    %51 = arith.mulf %35, %50 : vector<16x16xf32>
    %52 = arith.minimumf %48, %51 : vector<16x16xf32>
    %53 = vector.extract_strided_slice %52 {offsets = [0, 0], sizes = [16, 1], strides = [1, 1]} : vector<16x16xf32> to vector<16x1xf32>
    %54 = vector.extract_strided_slice %52 {offsets = [0, 0], sizes = [16, 15], strides = [1, 1]} : vector<16x16xf32> to vector<16x15xf32>
    %55 = tpu.concatenate %53, %54 in 1 : vector<16x1xf32>, vector<16x15xf32> -> vector<16x16xf32>
    %56 = vector.extract_strided_slice %52 {offsets = [0, 1], sizes = [16, 15], strides = [1, 1]} : vector<16x16xf32> to vector<16x15xf32>
    %57 = vector.extract_strided_slice %52 {offsets = [0, 15], sizes = [16, 1], strides = [1, 1]} : vector<16x16xf32> to vector<16x1xf32>
    %58 = tpu.concatenate %56, %57 in 1 : vector<16x15xf32>, vector<16x1xf32> -> vector<16x16xf32>
    %59 = arith.minimumf %55, %52 : vector<16x16xf32>
    %60 = arith.minimumf %59, %58 : vector<16x16xf32>
    %61 = vector.extract_strided_slice %60 {offsets = [0, 0], sizes = [1, 16], strides = [1, 1]} : vector<16x16xf32> to vector<1x16xf32>
    %62 = vector.extract_strided_slice %60 {offsets = [0, 0], sizes = [15, 16], strides = [1, 1]} : vector<16x16xf32> to vector<15x16xf32>
    %63 = tpu.concatenate %61, %62 in 0 : vector<1x16xf32>, vector<15x16xf32> -> vector<16x16xf32>
    %64 = vector.extract_strided_slice %60 {offsets = [1, 0], sizes = [15, 16], strides = [1, 1]} : vector<16x16xf32> to vector<15x16xf32>
    %65 = vector.extract_strided_slice %60 {offsets = [15, 0], sizes = [1, 16], strides = [1, 1]} : vector<16x16xf32> to vector<1x16xf32>
    %66 = tpu.concatenate %64, %65 in 0 : vector<15x16xf32>, vector<1x16xf32> -> vector<16x16xf32>
    %67 = arith.minimumf %63, %60 : vector<16x16xf32>
    %68 = arith.minimumf %67, %66 : vector<16x16xf32>
    %cst_29 = arith.constant 0.949999988 : f32
    %69 = vector.broadcast %cst_29 : f32 to vector<16x16xf32>
    %70 = arith.mulf %69, %68 : vector<16x16xf32>
    %cst_30 = arith.constant 1.000000e+00 : f32
    %71 = vector.broadcast %cst_30 : f32 to vector<16x16xf32>
    %72 = arith.subf %71, %70 : vector<16x16xf32>
    %cst_31 = arith.constant 1.000000e-01 : f32
    %73 = vector.broadcast %cst_31 : f32 to vector<16x16xf32>
    %74 = arith.maximumf %72, %73 : vector<16x16xf32>
    %cst_32 = arith.constant 1.000000e+00 : f32
    %75 = vector.broadcast %cst_32 : f32 to vector<16x16xf32>
    %76 = arith.divf %75, %74 : vector<16x16xf32>
    %c0_33 = arith.constant 0 : index
    %c0_34 = arith.constant 0 : index
    %c0_35 = arith.constant 0 : index
    %77 = vector.load %arg3[%c0_33, %c0_34, %c0_35] : memref<3x16x16xf32, #tpu.memory_space<vmem>>, vector<1x16x16xf32>
    %78 = vector.shape_cast %77 : vector<1x16x16xf32> to vector<16x16xf32>
    %c1_36 = arith.constant 1 : index
    %c0_37 = arith.constant 0 : index
    %c0_38 = arith.constant 0 : index
    %79 = vector.load %arg3[%c1_36, %c0_37, %c0_38] : memref<3x16x16xf32, #tpu.memory_space<vmem>>, vector<1x16x16xf32>
    %80 = vector.shape_cast %79 : vector<1x16x16xf32> to vector<16x16xf32>
    %c2_39 = arith.constant 2 : index
    %c0_40 = arith.constant 0 : index
    %c0_41 = arith.constant 0 : index
    %81 = vector.load %arg3[%c2_39, %c0_40, %c0_41] : memref<3x16x16xf32, #tpu.memory_space<vmem>>, vector<1x16x16xf32>
    %82 = vector.shape_cast %81 : vector<1x16x16xf32> to vector<16x16xf32>
    %83 = vector.broadcast %37 : f32 to vector<16x16xf32>
    %84 = arith.subf %11, %83 : vector<16x16xf32>
    %85 = arith.mulf %84, %76 : vector<16x16xf32>
    %86 = vector.broadcast %37 : f32 to vector<16x16xf32>
    %87 = arith.addf %85, %86 : vector<16x16xf32>
    %c0_42 = arith.constant 0 : index
    %c0_43 = arith.constant 0 : index
    %c0_44 = arith.constant 0 : index
    %c0_45 = arith.constant 0 : index
    %88 = vector.load %arg4[%c0_42, %c0_43, %c0_44, %c0_45] : memref<1x3x16x16xf32, #tpu.memory_space<vmem>>, vector<1x1x16x16xf32>
    %89 = vector.shape_cast %88 : vector<1x1x16x16xf32> to vector<16x16xf32>
    %90 = vector.shape_cast %87 : vector<16x16xf32> to vector<1x1x16x16xf32>
    tpu.vector_store %arg4[%c0_42, %c0_43, %c0_44, %c0_45], %90 {strides = array<i32>} : memref<1x3x16x16xf32, #tpu.memory_space<vmem>>, vector<1x1x16x16xf32>,
    %91 = vector.broadcast %39 : f32 to vector<16x16xf32>
    %92 = arith.subf %23, %91 : vector<16x16xf32>
    %93 = arith.mulf %92, %76 : vector<16x16xf32>
    %94 = vector.broadcast %39 : f32 to vector<16x16xf32>
    %95 = arith.addf %93, %94 : vector<16x16xf32>
    %c0_46 = arith.constant 0 : index
    %c1_47 = arith.constant 1 : index
    %c0_48 = arith.constant 0 : index
    %c0_49 = arith.constant 0 : index
    %96 = vector.load %arg4[%c0_46, %c1_47, %c0_48, %c0_49] : memref<1x3x16x16xf32, #tpu.memory_space<vmem>>, vector<1x1x16x16xf32>
    %97 = vector.shape_cast %96 : vector<1x1x16x16xf32> to vector<16x16xf32>
    %98 = vector.shape_cast %95 : vector<16x16xf32> to vector<1x1x16x16xf32>
    tpu.vector_store %arg4[%c0_46, %c1_47, %c0_48, %c0_49], %98 {strides = array<i32>} : memref<1x3x16x16xf32, #tpu.memory_space<vmem>>, vector<1x1x16x16xf32>,
    %99 = vector.broadcast %41 : f32 to vector<16x16xf32>
    %100 = arith.subf %35, %99 : vector<16x16xf32>
    %101 = arith.mulf %100, %76 : vector<16x16xf32>
    %102 = vector.broadcast %41 : f32 to vector<16x16xf32>
    %103 = arith.addf %101, %102 : vector<16x16xf32>
    %c0_50 = arith.constant 0 : index
    %c2_51 = arith.constant 2 : index
    %c0_52 = arith.constant 0 : index
    %c0_53 = arith.constant 0 : index
    %104 = vector.load %arg4[%c0_50, %c2_51, %c0_52, %c0_53] : memref<1x3x16x16xf32, #tpu.memory_space<vmem>>, vector<1x1x16x16xf32>
    %105 = vector.shape_cast %104 : vector<1x1x16x16xf32> to vector<16x16xf32>
    %106 = vector.shape_cast %103 : vector<16x16xf32> to vector<1x1x16x16xf32>
    tpu.vector_store %arg4[%c0_50, %c2_51, %c0_52, %c0_53], %106 {strides = array<i32>} : memref<1x3x16x16xf32, #tpu.memory_space<vmem>>, vector<1x1x16x16xf32>,
    %107 = arith.subf %11, %78 : vector<16x16xf32>
    %108 = arith.mulf %107, %76 : vector<16x16xf32>
    %109 = arith.addf %108, %78 : vector<16x16xf32>
    %c0_54 = arith.constant 0 : index
    %c0_55 = arith.constant 0 : index
    %c0_56 = arith.constant 0 : index
    %c0_57 = arith.constant 0 : index
    %110 = vector.load %arg5[%c0_54, %c0_55, %c0_56, %c0_57] : memref<1x3x16x16xf32, #tpu.memory_space<vmem>>, vector<1x1x16x16xf32>
    %111 = vector.shape_cast %110 : vector<1x1x16x16xf32> to vector<16x16xf32>
    %112 = vector.shape_cast %109 : vector<16x16xf32> to vector<1x1x16x16xf32>
    tpu.vector_store %arg5[%c0_54, %c0_55, %c0_56, %c0_57], %112 {strides = array<i32>} : memref<1x3x16x16xf32, #tpu.memory_space<vmem>>, vector<1x1x16x16xf32>,
    %113 = arith.subf %23, %80 : vector<16x16xf32>
    %114 = arith.mulf %113, %76 : vector<16x16xf32>
    %115 = arith.addf %114, %80 : vector<16x16xf32>
    %c0_58 = arith.constant 0 : index
    %c1_59 = arith.constant 1 : index
    %c0_60 = arith.constant 0 : index
    %c0_61 = arith.constant 0 : index
    %116 = vector.load %arg5[%c0_58, %c1_59, %c0_60, %c0_61] : memref<1x3x16x16xf32, #tpu.memory_space<vmem>>, vector<1x1x16x16xf32>
    %117 = vector.shape_cast %116 : vector<1x1x16x16xf32> to vector<16x16xf32>
    %118 = vector.shape_cast %115 : vector<16x16xf32> to vector<1x1x16x16xf32>
    tpu.vector_store %arg5[%c0_58, %c1_59, %c0_60, %c0_61], %118 {strides = array<i32>} : memref<1x3x16x16xf32, #tpu.memory_space<vmem>>, vector<1x1x16x16xf32>,
    %119 = arith.subf %35, %82 : vector<16x16xf32>
    %120 = arith.mulf %119, %76 : vector<16x16xf32>
    %121 = arith.addf %120, %82 : vector<16x16xf32>
    %c0_62 = arith.constant 0 : index
    %c2_63 = arith.constant 2 : index
    %c0_64 = arith.constant 0 : index
    %c0_65 = arith.constant 0 : index
    %122 = vector.load %arg5[%c0_62, %c2_63, %c0_64, %c0_65] : memref<1x3x16x16xf32, #tpu.memory_space<vmem>>, vector<1x1x16x16xf32>
    %123 = vector.shape_cast %122 : vector<1x1x16x16xf32> to vector<16x16xf32>
    %124 = vector.shape_cast %121 : vector<16x16xf32> to vector<1x1x16x16xf32>
    tpu.vector_store %arg5[%c0_62, %c2_63, %c0_64, %c0_65], %124 {strides = array<i32>} : memref<1x3x16x16xf32, #tpu.memory_space<vmem>>, vector<1x1x16x16xf32>,
    %cst_66 = arith.constant 1.000000e+00 : f32
    %125 = vector.broadcast %cst_66 : f32 to vector<16x16xf32>
    %126 = arith.subf %76, %125 : vector<16x16xf32>
    %127 = vector.broadcast %37 : f32 to vector<16x16xf32>
    %128 = arith.subf %127, %78 : vector<16x16xf32>
    %129 = arith.mulf %128, %126 : vector<16x16xf32>
    %130 = vector.broadcast %39 : f32 to vector<16x16xf32>
    %131 = arith.subf %130, %80 : vector<16x16xf32>
    %132 = arith.mulf %131, %126 : vector<16x16xf32>
    %133 = vector.broadcast %41 : f32 to vector<16x16xf32>
    %134 = arith.subf %133, %82 : vector<16x16xf32>
    %135 = arith.mulf %134, %126 : vector<16x16xf32>
    %136 = arith.mulf %129, %129 : vector<16x16xf32>
    %137 = arith.mulf %132, %132 : vector<16x16xf32>
    %138 = arith.addf %136, %137 : vector<16x16xf32>
    %139 = arith.mulf %135, %135 : vector<16x16xf32>
    %140 = arith.addf %138, %139 : vector<16x16xf32>
    %141 = vector.shape_cast %140 : vector<16x16xf32> to vector<1x16x16xf32>
    %cst_67 = arith.constant dense<0.000000e+00> : vector<1xf32>
    %142 = vector.multi_reduction <add>, %141, %cst_67 [1, 2] : vector<1x16x16xf32> to vector<1xf32>
    %143 = vector.shape_cast %142 : vector<1xf32> to vector<1x1x1xf32>
    %144 = vector.extract %143[0, 0, 0] : f32 from vector<1x1x1xf32>
    %145 = vector.broadcast %144 : f32 to vector<1x1xf32>
    %c0_68 = arith.constant 0 : index
    %c0_69 = arith.constant 0 : index
    %c0_70 = arith.constant 0 : index
    %146 = vector.load %arg6[%c0_68, %c0_69, %c0_70] : memref<1x1x1xf32, #tpu.memory_space<vmem>>, vector<1x1x1xf32>
    %147 = vector.shape_cast %146 : vector<1x1x1xf32> to vector<1x1xf32>
    %148 = vector.shape_cast %145 : vector<1x1xf32> to vector<1x1x1xf32>
    tpu.vector_store %arg6[%c0_68, %c0_69, %c0_70], %148 {strides = array<i32>} : memref<1x1x1xf32, #tpu.memory_space<vmem>>, vector<1x1x1xf32>,
    return
  }
  func.func @transform_0(%arg0: i32) -> (i32, i32, i32, i32) {
    %c0_i32 = arith.constant 0 : i32
    %c0_i32_0 = arith.constant 0 : i32
    %c0_i32_1 = arith.constant 0 : i32
    %c0_i32_2 = arith.constant 0 : i32
    return %arg0, %c0_i32, %c0_i32_0, %c0_i32_1 : i32, i32, i32, i32
  }
  func.func @transform_1(%arg0: i32) -> (i32, i32) {
    %c0_i32 = arith.constant 0 : i32
    %c0_i32_0 = arith.constant 0 : i32
    %c0_i32_1 = arith.constant 0 : i32
    return %c0_i32, %c0_i32_0 : i32, i32
  }
  func.func @transform_2(%arg0: i32) -> (i32, i32, i32) {
    %c0_i32 = arith.constant 0 : i32
    %c0_i32_0 = arith.constant 0 : i32
    %c0_i32_1 = arith.constant 0 : i32
    %c0_i32_2 = arith.constant 0 : i32
    return %c0_i32, %c0_i32_0, %c0_i32_1 : i32, i32, i32
  }
  func.func @transform_3(%arg0: i32) -> (i32, i32, i32, i32) {
    %c0_i32 = arith.constant 0 : i32
    %c0_i32_0 = arith.constant 0 : i32
    %c0_i32_1 = arith.constant 0 : i32
    %c0_i32_2 = arith.constant 0 : i32
    return %arg0, %c0_i32, %c0_i32_0, %c0_i32_1 : i32, i32, i32, i32
  }
  func.func @transform_4(%arg0: i32) -> (i32, i32, i32, i32) {
    %c0_i32 = arith.constant 0 : i32
    %c0_i32_0 = arith.constant 0 : i32
    %c0_i32_1 = arith.constant 0 : i32
    %c0_i32_2 = arith.constant 0 : i32
    return %arg0, %c0_i32, %c0_i32_0, %c0_i32_1 : i32, i32, i32, i32
  }
  func.func @transform_5(%arg0: i32) -> (i32, i32, i32) {
    %c0_i32 = arith.constant 0 : i32
    %c0_i32_0 = arith.constant 0 : i32
    %c0_i32_1 = arith.constant 0 : i32
    return %arg0, %c0_i32, %c0_i32_0 : i32, i32, i32
  }
}

</mosaic_0001>

<llo_original>
// kernel: trainer_forward.3
$region0: #{trainer_forward.3}
  #allocation0 [shape = 'u32[]', space=smem, size = 0x4, offset = 0x4, fixed_abs, tag = 'smem constant byte address 0x4 - core index']
  #allocation1 [shape = 'u32[144,128]{1,0:T(1,128)}', space=vmem, size = 0x12000, scoped, tag = 'internal scratch']
  %s0 = inlined_call_operand.vmem [shape: f32[2,3,16,16], index: 0, kind: input, shape index: {}]
  %s1 = inlined_call_operand.vmem [shape: f32[2,3], index: 1, kind: input, shape index: {}]
  %s2 = inlined_call_operand.vmem [shape: f32[3,16,16], index: 2, kind: input, shape index: {}]
  %s3 = inlined_call_operand.hbm [shape: f32[2,3,16,16], index: 3, kind: output, shape index: {0}]
  %s4 = inlined_call_operand.hbm [shape: f32[2,3,16,16], index: 4, kind: output, shape index: {1}]
  %s5 = inlined_call_operand.vmem [shape: f32[2,1,1], index: 5, kind: output, shape index: {2}]
  %6 = xla_tuple %s3, %s4, %s5
  %s7 = sld [smem:[#allocation0]]
  $region65: #{trainer_forward.3} parent=0
    _
  %s9 = ssub.s32 1, %s7
  %s10 = scalar_select 0, %s9, %s7
  $region1: #{trainer_forward.3} parent=0
    #allocation2 [shape = 'u8[1024]{0}', space=smem, size = 0x400, scoped, tag = 'input window, operand 1, single buffered']
    #allocation3 [shape = 's32[2]{0}', space=sflag, size = 0x8, scoped, tag = 'scoped memory for trainer_forward.3']
    #allocation4 [shape = 's32[2]{0}', space=sflag, size = 0x8, scoped, tag = 'scoped memory for trainer_forward.3']
    #allocation5 [shape = 'u8[49152]{0}', space=vmem, size = 0xc000, scoped, tag = 'output window, operand 0']
    #allocation6 [shape = 'u8[49152]{0}', space=vmem, size = 0xc000, scoped, tag = 'output window, operand 1']
    #allocation7 [shape = 's32[2]{0}', space=sflag, size = 0x8, scoped, tag = 'scoped memory for trainer_forward.3']
    %11 = vsyncpa [#allocation4], 0
    %12 = vsyncpa [#allocation3], 0
    %s13 = scalar_lea.sflag [#allocation3], 1
    %14 = vsyncpa %s13, 0
    %15 = vsyncpa [#allocation7], 0
    %s16 = scalar_lea.sflag [#allocation7], 1
    %17 = vsyncpa %s16, 0
    loop: start=0, step=1, limit=4
    $region2: #{trainer_forward.3} parent=1 // loop_pre_header
      _
    $region3: #{trainer_forward.3} parent=1 // loop_header
      %s19 = sphi 0, %s23
      %p20 = scmp.ge.s32.totalorder %s19, 4
      %s29 = sphi 0, %s31
      %s32 = sphi 0, %s29
      %s33 = sphi 0, %s32
      %s49 = sphi 0, %s33
      %s53 = sphi 0, %s53
      %s55 = sphi 0, %s53
      %s56 = sphi 0, %s55
      %s70 = sphi 0, %s56
      %s74 = sphi 0, %s74
      %s76 = sphi 0, %s74
      %s77 = sphi 0, %s76
      %s91 = sphi 0, %s77
      %s97 = sphi 0, %s99
      %s100 = sphi 0, %s97
      %s101 = sphi 0, %s100
      %s117 = sphi 0, %s101
      %s123 = sphi 0, %s125
      %s126 = sphi 0, %s123
      %s127 = sphi 0, %s126
      %s143 = sphi 0, %s127
      %s149 = sphi 0, %s151
      %s152 = sphi 0, %s149
      %s153 = sphi 0, %s152
      %s169 = sphi 0, %s153
    $region4: #{trainer_forward.3} parent=1 // loop_header_branch
      %22 = sbr.rel (%p20) target = $region8
    $region5: #{trainer_forward.3} parent=1 // loop_body
      %s24 = ssub.s32 %s19, 1
      %s25 = ssub.s32 %s19, 2
      %s26 = sadd.s32 %s19, 1
      %s27 = ssub.s32 %s19, %s26
      %p28 = scmp.eq.s32.totalorder %s27, 0
      %s30 = sadd.s32 %s29, 1
      %s31 = scalar_select %p28, %s29, %s30
      %p34 = pneg %p28
      %p35 = scmp.eq.s32.totalorder %s19, 1
      %p36 = por %p34, %p35
      %p37 = scmp.ne.s32.totalorder %s29, %s32
      %p38 = scmp.eq.s32.totalorder %s19, 0
      %p39 = por %p37, %p38
      %p40 = scmp.ne.s32.totalorder %s29, %s32
      %p41 = scmp.eq.s32.totalorder %s24, 1
      %p42 = por %p40, %p41
      %p43 = scmp.ne.s32.totalorder %s32, %s33
      %p44 = scmp.eq.s32.totalorder %s24, 0
      %p45 = por %p43, %p44
      %p46 = scmp.ne.s32.totalorder %s32, %s33
      %p47 = scmp.eq.s32.totalorder %s25, 1
      %p48 = por %p46, %p47
      %p50 = scmp.ne.s32.totalorder %s33, %s49
      %p51 = scmp.eq.s32.totalorder %s25, 0
      %p52 = por %p50, %p51
      %s54 = sadd.s32 %s53, 1
      %p57 = scmp.eq.s32.totalorder %s19, 1
      %p58 = scmp.ne.s32.totalorder %s53, %s55
      %p59 = scmp.eq.s32.totalorder %s19, 0
      %p60 = por %p58, %p59
      %p61 = scmp.ne.s32.totalorder %s53, %s55
      %p62 = scmp.eq.s32.totalorder %s24, 1
      %p63 = por %p61, %p62
      %p64 = scmp.ne.s32.totalorder %s55, %s56
      %p65 = scmp.eq.s32.totalorder %s24, 0
      %p66 = por %p64, %p65
      %p67 = scmp.ne.s32.totalorder %s55, %s56
      %p68 = scmp.eq.s32.totalorder %s25, 1
      %p69 = por %p67, %p68
      %p71 = scmp.ne.s32.totalorder %s56, %s70
      %p72 = scmp.eq.s32.totalorder %s25, 0
      %p73 = por %p71, %p72
      %s75 = sadd.s32 %s74, 1
      %p78 = scmp.eq.s32.totalorder %s19, 1
      %p79 = scmp.ne.s32.totalorder %s74, %s76
      %p80 = scmp.eq.s32.totalorder %s19, 0
      %p81 = por %p79, %p80
      %p82 = scmp.ne.s32.totalorder %s74, %s76
      %p83 = scmp.eq.s32.totalorder %s24, 1
      %p84 = por %p82, %p83
      %p85 = scmp.ne.s32.totalorder %s76, %s77
      %p86 = scmp.eq.s32.totalorder %s24, 0
      %p87 = por %p85, %p86
      %p88 = scmp.ne.s32.totalorder %s76, %s77
      %p89 = scmp.eq.s32.totalorder %s25, 1
      %p90 = por %p88, %p89
      %p92 = scmp.ne.s32.totalorder %s77, %s91
      %p93 = scmp.eq.s32.totalorder %s25, 0
      %p94 = por %p92, %p93
      %s95 = ssub.s32 %s19, %s26
      %p96 = scmp.eq.s32.totalorder %s95, 0
      %s98 = sadd.s32 %s97, 1
      %s99 = scalar_select %p96, %s97, %s98
      %p102 = pneg %p96
      %p103 = scmp.eq.s32.totalorder %s19, 1
      %p104 = por %p102, %p103
      %p105 = scmp.ne.s32.totalorder %s97, %s100
      %p106 = scmp.eq.s32.totalorder %s19, 0
      %p107 = por %p105, %p106
      %p108 = scmp.ne.s32.totalorder %s97, %s100
      %p109 = scmp.eq.s32.totalorder %s24, 1
      %p110 = por %p108, %p109
      %p111 = scmp.ne.s32.totalorder %s100, %s101
      %p112 = scmp.eq.s32.totalorder %s24, 0
      %p113 = por %p111, %p112
      %p114 = scmp.ne.s32.totalorder %s100, %s101
      %p115 = scmp.eq.s32.totalorder %s25, 1
      %p116 = por %p114, %p115
      %p118 = scmp.ne.s32.totalorder %s101, %s117
      %p119 = scmp.eq.s32.totalorder %s25, 0
      %p120 = por %p118, %p119
      %s121 = ssub.s32 %s19, %s26
      %p122 = scmp.eq.s32.totalorder %s121, 0
      %s124 = sadd.s32 %s123, 1
      %s125 = scalar_select %p122, %s123, %s124
      %p128 = pneg %p122
      %p129 = scmp.eq.s32.totalorder %s19, 1
      %p130 = por %p128, %p129
      %p131 = scmp.ne.s32.totalorder %s123, %s126
      %p132 = scmp.eq.s32.totalorder %s19, 0
      %p133 = por %p131, %p132
      %p134 = scmp.ne.s32.totalorder %s123, %s126
      %p135 = scmp.eq.s32.totalorder %s24, 1
      %p136 = por %p134, %p135
      %p137 = scmp.ne.s32.totalorder %s126, %s127
      %p138 = scmp.eq.s32.totalorder %s24, 0
      %p139 = por %p137, %p138
      %p140 = scmp.ne.s32.totalorder %s126, %s127
      %p141 = scmp.eq.s32.totalorder %s25, 1
      %p142 = por %p140, %p141
      %p144 = scmp.ne.s32.totalorder %s127, %s143
      %p145 = scmp.eq.s32.totalorder %s25, 0
      %p146 = por %p144, %p145
      %s147 = ssub.s32 %s19, %s26
      %p148 = scmp.eq.s32.totalorder %s147, 0
      %s150 = sadd.s32 %s149, 1
      %s151 = scalar_select %p148, %s149, %s150
      %p154 = pneg %p148
      %p155 = scmp.eq.s32.totalorder %s19, 1
      %p156 = por %p154, %p155
      %p157 = scmp.ne.s32.totalorder %s149, %s152
      %p158 = scmp.eq.s32.totalorder %s19, 0
      %p159 = por %p157, %p158
      %p160 = scmp.ne.s32.totalorder %s149, %s152
      %p161 = scmp.eq.s32.totalorder %s24, 1
      %p162 = por %p160, %p161
      %p163 = scmp.ne.s32.totalorder %s152, %s153
      %p164 = scmp.eq.s32.totalorder %s24, 0
      %p165 = por %p163, %p164
      %p166 = scmp.ne.s32.totalorder %s152, %s153
      %p167 = scmp.eq.s32.totalorder %s25, 1
      %p168 = por %p166, %p167
      %p170 = scmp.ne.s32.totalorder %s153, %s169
      %p171 = scmp.eq.s32.totalorder %s25, 0
      %p172 = por %p170, %p171
      %p173 = scmp.le.s32.totalorder 1, %s19
      %p174 = scmp.lt.s32.totalorder %s19, 3
      %p175 = pnand %p173, %p174
      %p176 = pneg %p175
      // Predicated region
      $region9: #{trainer_forward.3} parent=5 // pred_check
        _
      $region10: #{trainer_forward.3} parent=5 // pred_check_branch
        %178 = sbr.rel (%p175) target = $region12
      $region11: #{trainer_forward.3} parent=5 // pred_region
        %s179 = ssub.s32 %s19, 1
        // Predicated region
        $region13: #{trainer_forward.3} parent=11 // pred_check
          %p180 = pneg %p66
        $region14: #{trainer_forward.3} parent=11 // pred_check_branch
          %182 = sbr.rel (%p180) target = $region16
        $region15: #{trainer_forward.3} parent=11 // pred_region
          %s184 = ssub.s32 32, 32
          %185 = vsyncadd [#allocation4], %s184
          %s187 = sshll.u32 %s1, 4
          %s188 = int_to_ptr.vmem [resolvable:$true] %s187
          %190 = dma.vmem_to_smem %s188, 32, [#allocation2], [#allocation4]
        $region16: #{trainer_forward.3} parent=11 // pred_fallthru
          _
        // Predicated region
        $region17: #{trainer_forward.3} parent=11 // pred_check
          %p191 = pneg %p87
        $region18: #{trainer_forward.3} parent=11 // pred_check_branch
          %193 = sbr.rel (%p191) target = $region20
        $region19: #{trainer_forward.3} parent=11 // pred_region
          _
        $region20: #{trainer_forward.3} parent=11 // pred_fallthru
          _
      $region12: #{trainer_forward.3} parent=5 // pred_fallthru
        _
      %p194 = scmp.lt.s32.totalorder %s19, 2
      // Predicated region
      $region21: #{trainer_forward.3} parent=5 // pred_check
        %p195 = pneg %p194
      $region22: #{trainer_forward.3} parent=5 // pred_check_branch
        %197 = sbr.rel (%p195) target = $region24
      $region23: #{trainer_forward.3} parent=5 // pred_region
        // Predicated region
        $region25: #{trainer_forward.3} parent=23 // pred_check
          %p198 = pneg %p39
        $region26: #{trainer_forward.3} parent=23 // pred_check_branch
          %200 = sbr.rel (%p198) target = $region28
        $region27: #{trainer_forward.3} parent=23 // pred_region
          %p201 = scmp.lt.s32.totalorder %s19, 1
          %s202 = scalar_select %p201, %s19, 1
          %s203 = smul.addr %s202, 6
          %s204 = smul.addr %s203, 8
          %s205 = scalar_lea.vmem %s0, %s204
        $region28: #{trainer_forward.3} parent=23 // pred_fallthru
          _
      $region24: #{trainer_forward.3} parent=5 // pred_fallthru
        _
      %p206 = scmp.le.s32.totalorder 1, %s19
      %p207 = scmp.lt.s32.totalorder %s19, 3
      %p208 = pnand %p206, %p207
      %p209 = pneg %p208
      // Predicated region
      $region29: #{trainer_forward.3} parent=5 // pred_check
        _
      $region30: #{trainer_forward.3} parent=5 // pred_check_branch
        %211 = sbr.rel (%p208) target = $region32
      $region31: #{trainer_forward.3} parent=5 // pred_region
        %s212 = ssub.s32 %s19, 1
        // Predicated region
        $region33: #{trainer_forward.3} parent=31 // pred_check
          %p213 = pneg %p66
        $region34: #{trainer_forward.3} parent=31 // pred_check_branch
          %215 = sbr.rel (%p213) target = $region36
        $region35: #{trainer_forward.3} parent=31 // pred_region
          %216 = dma.done [#allocation4], 32
        $region36: #{trainer_forward.3} parent=31 // pred_fallthru
          _
        %217 = sfence
        %p218 = scmp.lt.s32.totalorder %s24, 1
        %s219 = scalar_select %p218, %s24, 1
        %s220 = smul.addr %s219, 6
        %s221 = smul.addr %s220, 8
        %s222 = scalar_lea.vmem %s0, %s221
        %p223 = pneg %p45
        %p224 = pneg %p42
        %p225 = pneg %p66
        %p226 = pneg %p63
        %p227 = pneg %p87
        %p228 = pneg %p84
        %p229 = pneg %p113
        %p230 = pneg %p110
        %s231 = sand.u32 %s100, 1
        %s232 = scalar_lea.sflag [#allocation3], %s231
        %s233 = sand.u32 %s100, 1
        %s234 = smul.addr %s233, 48
        %s235 = scalar_lea.vmem [#allocation5], %s234
        %p236 = pneg %p139
        %p237 = pneg %p136
        %s238 = sand.u32 %s126, 1
        %s239 = scalar_lea.sflag [#allocation7], %s238
        %s240 = sand.u32 %s126, 1
        %s241 = smul.addr %s240, 48
        %s242 = scalar_lea.vmem [#allocation6], %s241
        %p243 = pneg %p165
        %p244 = pneg %p162
        %p245 = scmp.lt.s32.totalorder %s24, 1
        %s246 = scalar_select %p245, %s24, 1
        %s247 = scalar_lea.vmem %s5, %s246
        %p248 = scmp.lt.s32.totalorder %s24, 1
        %s249 = scalar_select %p248, %s24, 1
        %s250 = smul.addr %s249, 6
        %s251 = smul.addr %s250, 8
        %s252 = scalar_lea.vmem %s0, %s251
        %p253 = scmp.lt.s32.totalorder %s24, 1
        %s254 = scalar_select %p253, %s24, 1
        %s255 = scalar_lea.vmem %s5, %s254
        %v256 = vld [vmem:[%s252] sm:$0xff]
        %v257 = vld [vmem:[%s252 + $0x8] sm:$0xff]
        %v258 = vmul.f32 %v256, 0.225
        %v259 = vmul.f32 %v257, 0.225
        %v260 = vadd.f32 %v258, 0.45
        %v261 = vadd.f32 %v259, 0.45
        %v262 = vmul.f32 %v260, 255.0
        %v263 = vmul.f32 %v261, 255.0
        %v264 = vmax.f32 %v262, 0.0
        %v265 = vmax.f32 %v263, 0.0
        %v266 = vmin.f32 %v264, 255.0
        %v267 = vmin.f32 %v265, 255.0
        %s268 = scalar_lea.vmem %s252, 16
        %v269 = vld [vmem:[%s268] sm:$0xff]
        %v270 = vld [vmem:[%s268 + $0x8] sm:$0xff]
        %v271 = vmul.f32 %v269, 0.225
        %v272 = vmul.f32 %v270, 0.225
        %v273 = vadd.f32 %v271, 0.45
        %v274 = vadd.f32 %v272, 0.45
        %v275 = vmul.f32 %v273, 255.0
        %v276 = vmul.f32 %v274, 255.0
        %v277 = vmax.f32 %v275, 0.0
        %v278 = vmax.f32 %v276, 0.0
        %v279 = vmin.f32 %v277, 255.0
        %v280 = vmin.f32 %v278, 255.0
        %s281 = scalar_lea.vmem %s252, 32
        %v282 = vld [vmem:[%s281] sm:$0xff]
        %v283 = vld [vmem:[%s281 + $0x8] sm:$0xff]
        %v284 = vmul.f32 %v282, 0.225
        %v285 = vmul.f32 %v283, 0.225
        %v286 = vadd.f32 %v284, 0.45
        %v287 = vadd.f32 %v285, 0.45
        %v288 = vmul.f32 %v286, 255.0
        %v289 = vmul.f32 %v287, 255.0
        %v290 = vmax.f32 %v288, 0.0
        %v291 = vmax.f32 %v289, 0.0
        %v292 = vmin.f32 %v290, 255.0
        %v293 = vmin.f32 %v291, 255.0
        %s294 = smul.u32 %s24, 128
        %s295 = sld [smem:[#allocation2 + %s294]]
        %s296 = sadd.s32 %s294, 1
        %s297 = sld [smem:[#allocation2 + %s296]]
        %s298 = sadd.s32 %s294, 2
        %s299 = sld [smem:[#allocation2 + %s298]]
        %v300 = vstv %s295
        %v301 = vrcp.pop %v300
        %s302 = vtos %v301
        %v303 = vstv %s302
        %v304 = vmul.f32 %v266, %v303
        %v305 = vmul.f32 %v267, %v303
        %v306 = vstv %s297
        %v307 = vrcp.pop %v306
        %s308 = vtos %v307
        %v309 = vstv %s308
        %v310 = vmul.f32 %v279, %v309
        %v311 = vmul.f32 %v280, %v309
        %v312 = vmin.f32 %v304, %v310
        %v313 = vmin.f32 %v305, %v311
        %v314 = vstv %s299
        %v315 = vrcp.pop %v314
        %s316 = vtos %v315
        %v317 = vstv %s316
        %v318 = vmul.f32 %v292, %v317
        %v319 = vmul.f32 %v293, %v317
        %v320 = vmin.f32 %v312, %v318
        %v321 = vmin.f32 %v313, %v319
        %324 = vrot.lane.b32.xlu0 %v320, 1
        %v325 = vpop.permute.xlu0 %324
        %326 = vrot.lane.b32.xlu0 %v321, 1
        %v327 = vpop.permute.xlu0 %326
        %vm330 = vcmask 7168
        %v331 = vsel %vm330, %v320, %v325
        %v332 = vsel %vm330, %v321, %v327
        %333 = vrot.lane.b32.xlu0 %v320, 127
        %v334 = vpop.permute.xlu0 %333
        %335 = vrot.lane.b32.xlu0 %v321, 127
        %v336 = vpop.permute.xlu0 %335
        %vm339 = vcmask 121856
        %v340 = vsel %vm339, %v334, %v320
        %v341 = vsel %vm339, %v336, %v321
        %v342 = vmin.f32 %v331, %v320
        %v343 = vmin.f32 %v332, %v321
        %v344 = vmin.f32 %v342, %v340
        %v345 = vmin.f32 %v343, %v341
        %vm348 = vcmask 1040384
        %v349 = vrot.slane %v344, 7
        %v350 = vrot.slane %v345, 7
        %v351 = vsel %vm348, %v349, %v350
        %v354 = vsel %vm348, %v344, %v349
        %vm355 = vcmask 1046528
        %v356 = vrot.slane %v344, 1
        %v357 = vrot.slane %v345, 1
        %v358 = vsel %vm355, %v356, %v357
        %v361 = vsel %vm355, %v357, %v345
        %v362 = vmin.f32 %v354, %v344
        %v363 = vmin.f32 %v351, %v345
        %v364 = vmin.f32 %v362, %v358
        %v365 = vmin.f32 %v363, %v361
        %v366 = vmul.f32 %v364, 0.95
        %v367 = vmul.f32 %v365, 0.95
        %v368 = vsub.f32 1.0, %v366
        %v369 = vsub.f32 1.0, %v367
        %v370 = vmax.f32 %v368, 0.1
        %v371 = vmax.f32 %v369, 0.1
        %v372 = vrcp.pop %v370
        %v373 = vmul.f32 1.0, %v372
        %v374 = vrcp.pop %v371
        %v375 = vmul.f32 1.0, %v374
        %v376 = vld [vmem:[%s2] sm:$0xff]
        %v377 = vld [vmem:[%s2 + $0x8] sm:$0xff]
        %s378 = scalar_lea.vmem %s2, 16
        %v379 = vld [vmem:[%s378] sm:$0xff]
        %v380 = vld [vmem:[%s378 + $0x8] sm:$0xff]
        %s381 = scalar_lea.vmem %s2, 32
        %v382 = vld [vmem:[%s381] sm:$0xff]
        %v383 = vld [vmem:[%s381 + $0x8] sm:$0xff]
        %v384 = vstv %s295
        %v385 = vsub.f32 %v266, %v384
        %v386 = vsub.f32 %v267, %v384
        %v387 = vmul.f32 %v385, %v373
        %v388 = vmul.f32 %v386, %v375
        %v389 = vadd.f32 %v387, %v384
        %v390 = vadd.f32 %v388, %v384
        %vm391 = vcmask 130048
        %392 = vst.msk [vmem:[%s235] sm:$0xff] %vm391, %v389
        %393 = vst.msk [vmem:[%s235 + $0x8] sm:$0xff] %vm391, %v390
        %v394 = vstv %s297
        %v395 = vsub.f32 %v279, %v394
        %v396 = vsub.f32 %v280, %v394
        %v397 = vmul.f32 %v395, %v373
        %v398 = vmul.f32 %v396, %v375
        %v399 = vadd.f32 %v397, %v394
        %v400 = vadd.f32 %v398, %v394
        %s401 = scalar_lea.vmem %s235, 16 [#allocation5]
        %402 = vst.msk [vmem:[%s401] sm:$0xff] %vm391, %v399
        %403 = vst.msk [vmem:[%s401 + $0x8] sm:$0xff] %vm391, %v400
        %v404 = vstv %s299
        %v405 = vsub.f32 %v292, %v404
        %v406 = vsub.f32 %v293, %v404
        %v407 = vmul.f32 %v405, %v373
        %v408 = vmul.f32 %v406, %v375
        %v409 = vadd.f32 %v407, %v404
        %v410 = vadd.f32 %v408, %v404
        %s411 = scalar_lea.vmem %s235, 32 [#allocation5]
        %412 = vst.msk [vmem:[%s411] sm:$0xff] %vm391, %v409
        %413 = vst.msk [vmem:[%s411 + $0x8] sm:$0xff] %vm391, %v410
        %v414 = vsub.f32 %v266, %v376
        %v415 = vsub.f32 %v267, %v377
        %v416 = vmul.f32 %v414, %v373
        %v417 = vmul.f32 %v415, %v375
        %v418 = vadd.f32 %v416, %v376
        %v419 = vadd.f32 %v417, %v377
        %420 = vst.msk [vmem:[%s242] sm:$0xff] %vm391, %v418
        %421 = vst.msk [vmem:[%s242 + $0x8] sm:$0xff] %vm391, %v419
        %v422 = vsub.f32 %v279, %v379
        %v423 = vsub.f32 %v280, %v380
        %v424 = vmul.f32 %v422, %v373
        %v425 = vmul.f32 %v423, %v375
        %v426 = vadd.f32 %v424, %v379
        %v427 = vadd.f32 %v425, %v380
        %s428 = scalar_lea.vmem %s242, 16 [#allocation6]
        %429 = vst.msk [vmem:[%s428] sm:$0xff] %vm391, %v426
        %430 = vst.msk [vmem:[%s428 + $0x8] sm:$0xff] %vm391, %v427
        %v431 = vsub.f32 %v292, %v382
        %v432 = vsub.f32 %v293, %v383
        %v433 = vmul.f32 %v431, %v373
        %v434 = vmul.f32 %v432, %v375
        %v435 = vadd.f32 %v433, %v382
        %v436 = vadd.f32 %v434, %v383
        %s437 = scalar_lea.vmem %s242, 32 [#allocation6]
        %438 = vst.msk [vmem:[%s437] sm:$0xff] %vm391, %v435
        %439 = vst.msk [vmem:[%s437 + $0x8] sm:$0xff] %vm391, %v436
        %v440 = vsub.f32 %v373, 1.0
        %v441 = vsub.f32 %v375, 1.0
        %v442 = vsub.f32 %v384, %v376
        %v443 = vsub.f32 %v384, %v377
        %v444 = vmul.f32 %v442, %v440
        %v445 = vmul.f32 %v443, %v441
        %v446 = vsub.f32 %v394, %v379
        %v447 = vsub.f32 %v394, %v380
        %v448 = vmul.f32 %v446, %v440
        %v449 = vmul.f32 %v447, %v441
        %v450 = vsub.f32 %v404, %v382
        %v451 = vsub.f32 %v404, %v383
        %v452 = vmul.f32 %v450, %v440
        %v453 = vmul.f32 %v451, %v441
        %v454 = vmul.f32 %v444, %v444
        %v455 = vmul.f32 %v445, %v445
        %v456 = vmul.f32 %v448, %v448
        %v457 = vmul.f32 %v449, %v449
        %v458 = vadd.f32 %v454, %v456
        %v459 = vadd.f32 %v455, %v457
        %v460 = vmul.f32 %v452, %v452
        %v461 = vmul.f32 %v453, %v453
        %v462 = vadd.f32 %v458, %v460
        %v463 = vadd.f32 %v459, %v461
        %v464 = vsel %vm391, %v462, 0.0
        %v465 = vsel %vm391, %v463, 0.0
        %v466 = vadd.f32 %v464, %v465
        %467 = vadd.xlane.f32.xlu0 %v466
        %v468 = vpop.xlane.xlu0 %467
        %v469 = vrot.slane %v468, 4
        %v470 = vadd.f32 %v468, %v469
        %v471 = vrot.slane %v470, 2
        %v472 = vadd.f32 %v470, %v471
        %v473 = vrot.slane %v472, 1
        %v474 = vadd.f32 %v472, %v473
        %s475 = vtos %v474
        %v476 = vstv %s475
        %vm477 = vcmask 0
        %478 = vst.msk [vmem:[%s255] sm:$0x1] %vm477, %v476
        %s479 = sand.u32 %s100, 1
        %s480 = scalar_lea.sflag [#allocation3], %s479
        %s481 = sand.u32 %s100, 1
        %s482 = smul.addr %s481, 48
        %s483 = scalar_lea.vmem [#allocation5], %s482
        %s484 = sand.u32 %s126, 1
        %s485 = scalar_lea.sflag [#allocation7], %s484
        %s486 = sand.u32 %s126, 1
        %s487 = smul.addr %s486, 48
        %s488 = scalar_lea.vmem [#allocation6], %s487
        %p489 = scmp.lt.s32.totalorder %s24, 1
        %s490 = scalar_select %p489, %s24, 1
        %s491 = scalar_lea.vmem %s5, %s490
        // Predicated region
        $region37: #{trainer_forward.3} parent=31 // pred_check
          %p492 = pneg %p110
        $region38: #{trainer_forward.3} parent=31 // pred_check_branch
          %494 = sbr.rel (%p492) target = $region40
        $region39: #{trainer_forward.3} parent=31 // pred_region
          %s496 = ssub.s32 768, 768
          %497 = vsyncadd %s480, %s496
          %s498 = smul.addr %s24, 6
          %s499 = smul.addr %s498, 128
          %s500 = scalar_lea.hbm %s3, %s499
          %s501 = sshll.u32 %s483, 4
          %s502 = int_to_ptr.vmem [resolvable:$true] %s501
          %507 = dma.vmem_to_hbm [thread:$0]  %s502, 768, %s500, %s480, 128, 128, 8
        $region40: #{trainer_forward.3} parent=31 // pred_fallthru
          _
        // Predicated region
        $region41: #{trainer_forward.3} parent=31 // pred_check
          %p508 = pneg %p136
        $region42: #{trainer_forward.3} parent=31 // pred_check_branch
          %510 = sbr.rel (%p508) target = $region44
        $region43: #{trainer_forward.3} parent=31 // pred_region
          %s512 = ssub.s32 768, 768
          %513 = vsyncadd %s485, %s512
          %s514 = smul.addr %s24, 6
          %s515 = smul.addr %s514, 128
          %s516 = scalar_lea.hbm %s4, %s515
          %s517 = sshll.u32 %s488, 4
          %s518 = int_to_ptr.vmem [resolvable:$true] %s517
          %523 = dma.vmem_to_hbm [thread:$0]  %s518, 768, %s516, %s485, 128, 128, 8
        $region44: #{trainer_forward.3} parent=31 // pred_fallthru
          _
        // Predicated region
        $region45: #{trainer_forward.3} parent=31 // pred_check
          %p524 = pneg %p162
        $region46: #{trainer_forward.3} parent=31 // pred_check_branch
          %526 = sbr.rel (%p524) target = $region48
        $region47: #{trainer_forward.3} parent=31 // pred_region
          _
        $region48: #{trainer_forward.3} parent=31 // pred_fallthru
          _
      $region32: #{trainer_forward.3} parent=5 // pred_fallthru
        _
      %p527 = scmp.le.s32.totalorder 2, %s19
      // Predicated region
      $region49: #{trainer_forward.3} parent=5 // pred_check
        %p528 = pneg %p527
      $region50: #{trainer_forward.3} parent=5 // pred_check_branch
        %530 = sbr.rel (%p528) target = $region52
      $region51: #{trainer_forward.3} parent=5 // pred_region
        %s531 = ssub.s32 %s19, 2
        // Predicated region
        $region53: #{trainer_forward.3} parent=51 // pred_check
          %p532 = pneg %p116
        $region54: #{trainer_forward.3} parent=51 // pred_check_branch
          %534 = sbr.rel (%p532) target = $region56
        $region55: #{trainer_forward.3} parent=51 // pred_region
          %s535 = sand.u32 %s101, 1
          %s536 = scalar_lea.sflag [#allocation3], %s535
          %s537 = sand.u32 %s101, 1
          %s538 = smul.addr %s537, 48
          %s539 = scalar_lea.vmem [#allocation5], %s538
          %540 = dma.done %s536, 768
        $region56: #{trainer_forward.3} parent=51 // pred_fallthru
          _
        // Predicated region
        $region57: #{trainer_forward.3} parent=51 // pred_check
          %p541 = pneg %p142
        $region58: #{trainer_forward.3} parent=51 // pred_check_branch
          %543 = sbr.rel (%p541) target = $region60
        $region59: #{trainer_forward.3} parent=51 // pred_region
          %s544 = sand.u32 %s127, 1
          %s545 = scalar_lea.sflag [#allocation7], %s544
          %s546 = sand.u32 %s127, 1
          %s547 = smul.addr %s546, 48
          %s548 = scalar_lea.vmem [#allocation6], %s547
          %549 = dma.done %s545, 768
        $region60: #{trainer_forward.3} parent=51 // pred_fallthru
          _
        // Predicated region
        $region61: #{trainer_forward.3} parent=51 // pred_check
          %p550 = pneg %p168
        $region62: #{trainer_forward.3} parent=51 // pred_check_branch
          %552 = sbr.rel (%p550) target = $region64
        $region63: #{trainer_forward.3} parent=51 // pred_region
          %p553 = scmp.lt.s32.totalorder %s25, 1
          %s554 = scalar_select %p553, %s25, 1
          %s555 = scalar_lea.vmem %s5, %s554
        $region64: #{trainer_forward.3} parent=51 // pred_fallthru
          _
      $region52: #{trainer_forward.3} parent=5 // pred_fallthru
        _
    $region6: #{trainer_forward.3} parent=1 // loop_footer
      %s23 = sadd.s32 1, %s19
    $region7: #{trainer_forward.3} parent=1 // loop_footer_branch
      %18 = sbr.rel target = $region3
    $region8: #{trainer_forward.3} parent=1 // loop_exit
      _
    %556 = vsyncpa [#allocation3], 1
    %s557 = scalar_lea.sflag [#allocation3], 1
    %558 = vsyncpa %s557, 1
    %559 = vsyncpa [#allocation7], 1
    %s560 = scalar_lea.sflag [#allocation7], 1
    %561 = vsyncpa %s560, 1
    %562 = vsyncpa [#allocation4], 1
    %s563 = scalar_lea.sflag [#allocation4], 1
    %564 = vsyncpa %s563, 1

// kernel: trainer_forward.2
$region0: #{trainer_forward.2}
  #allocation0 [shape = 'u32[]', space=smem, size = 0x4, offset = 0x4, fixed_abs, tag = 'smem constant byte address 0x4 - core index']
  #allocation1 [shape = 'u32[144,128]{1,0:T(1,128)}', space=vmem, size = 0x12000, scoped, tag = 'internal scratch']
  %s0 = inlined_call_operand.hbm [shape: f32[2,3,16,16], index: 0, kind: input, shape index: {}]
  %s1 = inlined_call_operand.vmem [shape: f32[128], index: 1, kind: input, shape index: {}]
  %s2 = inlined_call_operand.hbm [shape: f32[32], index: 2, kind: input, shape index: {}]
  %s3 = inlined_call_operand.vmem [shape: f32[96], index: 3, kind: input, shape index: {}]
  %s4 = inlined_call_operand.hbm [shape: f32[3], index: 4, kind: input, shape index: {}]
  %s5 = inlined_call_operand.vmem [shape: f32[2,1,3], index: 5, kind: output, shape index: {0}]
  %s6 = inlined_call_operand.vmem [shape: f32[3,16,16], index: 6, kind: output, shape index: {1}]
  %7 = xla_tuple %s5, %s6
  %s8 = sld [smem:[#allocation0]]
  $region85: #{trainer_forward.2} parent=0
    _
  %s10 = ssub.s32 1, %s8
  %s11 = scalar_select 0, %s10, %s8
  $region1: #{trainer_forward.2} parent=0
    #allocation2 [shape = 'u8[49152]{0}', space=vmem, size = 0xc000, scoped, tag = 'input window, operand 0']
    #allocation3 [shape = 's32[2]{0}', space=sflag, size = 0x8, scoped, tag = 'scoped memory for trainer_forward.2']
    #allocation4 [shape = 's32[2]{0}', space=sflag, size = 0x8, scoped, tag = 'scoped memory for trainer_forward.2']
    #allocation5 [shape = 's32[2]{0}', space=sflag, size = 0x8, scoped, tag = 'scoped memory for trainer_forward.2']
    #allocation6 [shape = 'u8[512]{0}', space=smem, size = 0x200, scoped, tag = 'input window, operand 1, single buffered']
    #allocation7 [shape = 'u8[512]{0}', space=smem, size = 0x200, scoped, tag = 'input window, operand 2, single buffered']
    #allocation8 [shape = 'u8[512]{0}', space=smem, size = 0x200, scoped, tag = 'input window, operand 3, single buffered']
    #allocation9 [shape = 's32[1]{0}', space=sflag, size = 0x4, scoped, tag = 'scoped memory for trainer_forward.2']
    #allocation10 [shape = 'u8[512]{0}', space=smem, size = 0x200, scoped, tag = 'input window, operand 4, single buffered']
    #allocation11 [shape = 's32[1]{0}', space=sflag, size = 0x4, scoped, tag = 'scoped memory for trainer_forward.2']
    %12 = vsyncpa [#allocation3], 0
    %s13 = scalar_lea.sflag [#allocation3], 1
    %14 = vsyncpa %s13, 0
    %15 = vsyncpa [#allocation5], 0
    %16 = vsyncpa [#allocation4], 0
    %17 = vsyncpa [#allocation9], 0
    %18 = vsyncpa [#allocation11], 0
    loop: start=0, step=1, limit=4
    $region2: #{trainer_forward.2} parent=1 // loop_pre_header
      _
    $region3: #{trainer_forward.2} parent=1 // loop_header
      %s20 = sphi 0, %s24
      %p21 = scmp.ge.s32.totalorder %s20, 4
      %s30 = sphi 0, %s32
      %s33 = sphi 0, %s30
      %s34 = sphi 0, %s33
      %s50 = sphi 0, %s34
      %s54 = sphi 0, %s54
      %s56 = sphi 0, %s54
      %s57 = sphi 0, %s56
      %s71 = sphi 0, %s57
      %s75 = sphi 0, %s75
      %s77 = sphi 0, %s75
      %s78 = sphi 0, %s77
      %s92 = sphi 0, %s78
      %s96 = sphi 0, %s96
      %s98 = sphi 0, %s96
      %s99 = sphi 0, %s98
      %s113 = sphi 0, %s99
      %s117 = sphi 0, %s117
      %s119 = sphi 0, %s117
      %s120 = sphi 0, %s119
      %s134 = sphi 0, %s120
      %s140 = sphi 0, %s142
      %s143 = sphi 0, %s140
      %s144 = sphi 0, %s143
      %s160 = sphi 0, %s144
      %s164 = sphi 0, %s164
      %s166 = sphi 0, %s164
      %s167 = sphi 0, %s166
      %s181 = sphi 0, %s167
    $region4: #{trainer_forward.2} parent=1 // loop_header_branch
      %23 = sbr.rel (%p21) target = $region8
    $region5: #{trainer_forward.2} parent=1 // loop_body
      %s25 = ssub.s32 %s20, 1
      %s26 = ssub.s32 %s20, 2
      %s27 = sadd.s32 %s20, 1
      %s28 = ssub.s32 %s20, %s27
      %p29 = scmp.eq.s32.totalorder %s28, 0
      %s31 = sadd.s32 %s30, 1
      %s32 = scalar_select %p29, %s30, %s31
      %p35 = pneg %p29
      %p36 = scmp.eq.s32.totalorder %s20, 1
      %p37 = por %p35, %p36
      %p38 = scmp.ne.s32.totalorder %s30, %s33
      %p39 = scmp.eq.s32.totalorder %s20, 0
      %p40 = por %p38, %p39
      %p41 = scmp.ne.s32.totalorder %s30, %s33
      %p42 = scmp.eq.s32.totalorder %s25, 1
      %p43 = por %p41, %p42
      %p44 = scmp.ne.s32.totalorder %s33, %s34
      %p45 = scmp.eq.s32.totalorder %s25, 0
      %p46 = por %p44, %p45
      %p47 = scmp.ne.s32.totalorder %s33, %s34
      %p48 = scmp.eq.s32.totalorder %s26, 1
      %p49 = por %p47, %p48
      %p51 = scmp.ne.s32.totalorder %s34, %s50
      %p52 = scmp.eq.s32.totalorder %s26, 0
      %p53 = por %p51, %p52
      %s55 = sadd.s32 %s54, 1
      %p58 = scmp.eq.s32.totalorder %s20, 1
      %p59 = scmp.ne.s32.totalorder %s54, %s56
      %p60 = scmp.eq.s32.totalorder %s20, 0
      %p61 = por %p59, %p60
      %p62 = scmp.ne.s32.totalorder %s54, %s56
      %p63 = scmp.eq.s32.totalorder %s25, 1
      %p64 = por %p62, %p63
      %p65 = scmp.ne.s32.totalorder %s56, %s57
      %p66 = scmp.eq.s32.totalorder %s25, 0
      %p67 = por %p65, %p66
      %p68 = scmp.ne.s32.totalorder %s56, %s57
      %p69 = scmp.eq.s32.totalorder %s26, 1
      %p70 = por %p68, %p69
      %p72 = scmp.ne.s32.totalorder %s57, %s71
      %p73 = scmp.eq.s32.totalorder %s26, 0
      %p74 = por %p72, %p73
      %s76 = sadd.s32 %s75, 1
      %p79 = scmp.eq.s32.totalorder %s20, 1
      %p80 = scmp.ne.s32.totalorder %s75, %s77
      %p81 = scmp.eq.s32.totalorder %s20, 0
      %p82 = por %p80, %p81
      %p83 = scmp.ne.s32.totalorder %s75, %s77
      %p84 = scmp.eq.s32.totalorder %s25, 1
      %p85 = por %p83, %p84
      %p86 = scmp.ne.s32.totalorder %s77, %s78
      %p87 = scmp.eq.s32.totalorder %s25, 0
      %p88 = por %p86, %p87
      %p89 = scmp.ne.s32.totalorder %s77, %s78
      %p90 = scmp.eq.s32.totalorder %s26, 1
      %p91 = por %p89, %p90
      %p93 = scmp.ne.s32.totalorder %s78, %s92
      %p94 = scmp.eq.s32.totalorder %s26, 0
      %p95 = por %p93, %p94
      %s97 = sadd.s32 %s96, 1
      %p100 = scmp.eq.s32.totalorder %s20, 1
      %p101 = scmp.ne.s32.totalorder %s96, %s98
      %p102 = scmp.eq.s32.totalorder %s20, 0
      %p103 = por %p101, %p102
      %p104 = scmp.ne.s32.totalorder %s96, %s98
      %p105 = scmp.eq.s32.totalorder %s25, 1
      %p106 = por %p104, %p105
      %p107 = scmp.ne.s32.totalorder %s98, %s99
      %p108 = scmp.eq.s32.totalorder %s25, 0
      %p109 = por %p107, %p108
      %p110 = scmp.ne.s32.totalorder %s98, %s99
      %p111 = scmp.eq.s32.totalorder %s26, 1
      %p112 = por %p110, %p111
      %p114 = scmp.ne.s32.totalorder %s99, %s113
      %p115 = scmp.eq.s32.totalorder %s26, 0
      %p116 = por %p114, %p115
      %s118 = sadd.s32 %s117, 1
      %p121 = scmp.eq.s32.totalorder %s20, 1
      %p122 = scmp.ne.s32.totalorder %s117, %s119
      %p123 = scmp.eq.s32.totalorder %s20, 0
      %p124 = por %p122, %p123
      %p125 = scmp.ne.s32.totalorder %s117, %s119
      %p126 = scmp.eq.s32.totalorder %s25, 1
      %p127 = por %p125, %p126
      %p128 = scmp.ne.s32.totalorder %s119, %s120
      %p129 = scmp.eq.s32.totalorder %s25, 0
      %p130 = por %p128, %p129
      %p131 = scmp.ne.s32.totalorder %s119, %s120
      %p132 = scmp.eq.s32.totalorder %s26, 1
      %p133 = por %p131, %p132
      %p135 = scmp.ne.s32.totalorder %s120, %s134
      %p136 = scmp.eq.s32.totalorder %s26, 0
      %p137 = por %p135, %p136
      %s138 = ssub.s32 %s20, %s27
      %p139 = scmp.eq.s32.totalorder %s138, 0
      %s141 = sadd.s32 %s140, 1
      %s142 = scalar_select %p139, %s140, %s141
      %p145 = pneg %p139
      %p146 = scmp.eq.s32.totalorder %s20, 1
      %p147 = por %p145, %p146
      %p148 = scmp.ne.s32.totalorder %s140, %s143
      %p149 = scmp.eq.s32.totalorder %s20, 0
      %p150 = por %p148, %p149
      %p151 = scmp.ne.s32.totalorder %s140, %s143
      %p152 = scmp.eq.s32.totalorder %s25, 1
      %p153 = por %p151, %p152
      %p154 = scmp.ne.s32.totalorder %s143, %s144
      %p155 = scmp.eq.s32.totalorder %s25, 0
      %p156 = por %p154, %p155
      %p157 = scmp.ne.s32.totalorder %s143, %s144
      %p158 = scmp.eq.s32.totalorder %s26, 1
      %p159 = por %p157, %p158
      %p161 = scmp.ne.s32.totalorder %s144, %s160
      %p162 = scmp.eq.s32.totalorder %s26, 0
      %p163 = por %p161, %p162
      %s165 = sadd.s32 %s164, 1
      %p168 = scmp.eq.s32.totalorder %s20, 1
      %p169 = scmp.ne.s32.totalorder %s164, %s166
      %p170 = scmp.eq.s32.totalorder %s20, 0
      %p171 = por %p169, %p170
      %p172 = scmp.ne.s32.totalorder %s164, %s166
      %p173 = scmp.eq.s32.totalorder %s25, 1
      %p174 = por %p172, %p173
      %p175 = scmp.ne.s32.totalorder %s166, %s167
      %p176 = scmp.eq.s32.totalorder %s25, 0
      %p177 = por %p175, %p176
      %p178 = scmp.ne.s32.totalorder %s166, %s167
      %p179 = scmp.eq.s32.totalorder %s26, 1
      %p180 = por %p178, %p179
      %p182 = scmp.ne.s32.totalorder %s167, %s181
      %p183 = scmp.eq.s32.totalorder %s26, 0
      %p184 = por %p182, %p183
      %p185 = scmp.le.s32.totalorder 1, %s20
      %p186 = scmp.lt.s32.totalorder %s20, 3
      %p187 = pnand %p185, %p186
      %p188 = pneg %p187
      // Predicated region
      $region9: #{trainer_forward.2} parent=5 // pred_check
        _
      $region10: #{trainer_forward.2} parent=5 // pred_check_branch
        %190 = sbr.rel (%p187) target = $region12
      $region11: #{trainer_forward.2} parent=5 // pred_region
        %s191 = ssub.s32 %s20, 1
        // Predicated region
        $region13: #{trainer_forward.2} parent=11 // pred_check
          %p192 = pneg %p67
        $region14: #{trainer_forward.2} parent=11 // pred_check_branch
          %194 = sbr.rel (%p192) target = $region16
        $region15: #{trainer_forward.2} parent=11 // pred_region
          %s196 = ssub.s32 16, 16
          %197 = vsyncadd [#allocation5], %s196
          %s199 = sshll.u32 %s1, 4
          %s200 = int_to_ptr.vmem [resolvable:$true] %s199
          %202 = dma.vmem_to_smem %s200, 16, [#allocation6], [#allocation5]
        $region16: #{trainer_forward.2} parent=11 // pred_fallthru
          _
        // Predicated region
        $region17: #{trainer_forward.2} parent=11 // pred_check
          %p203 = pneg %p88
        $region18: #{trainer_forward.2} parent=11 // pred_check_branch
          %205 = sbr.rel (%p203) target = $region20
        $region19: #{trainer_forward.2} parent=11 // pred_region
          %s207 = ssub.s32 16, 16
          %208 = vsyncadd [#allocation4], %s207
          %211 = dma.hbm_to_smem %s2, 16, [#allocation7], [#allocation4]
        $region20: #{trainer_forward.2} parent=11 // pred_fallthru
          _
        // Predicated region
        $region21: #{trainer_forward.2} parent=11 // pred_check
          %p212 = pneg %p109
        $region22: #{trainer_forward.2} parent=11 // pred_check_branch
          %214 = sbr.rel (%p212) target = $region24
        $region23: #{trainer_forward.2} parent=11 // pred_region
          %s216 = ssub.s32 16, 16
          %217 = vsyncadd [#allocation9], %s216
          %s219 = sshll.u32 %s3, 4
          %s220 = int_to_ptr.vmem [resolvable:$true] %s219
          %222 = dma.vmem_to_smem %s220, 16, [#allocation8], [#allocation9]
        $region24: #{trainer_forward.2} parent=11 // pred_fallthru
          _
        // Predicated region
        $region25: #{trainer_forward.2} parent=11 // pred_check
          %p223 = pneg %p130
        $region26: #{trainer_forward.2} parent=11 // pred_check_branch
          %225 = sbr.rel (%p223) target = $region28
        $region27: #{trainer_forward.2} parent=11 // pred_region
          %s227 = ssub.s32 16, 16
          %228 = vsyncadd [#allocation11], %s227
          %231 = dma.hbm_to_smem %s4, 16, [#allocation10], [#allocation11]
        $region28: #{trainer_forward.2} parent=11 // pred_fallthru
          _
      $region12: #{trainer_forward.2} parent=5 // pred_fallthru
        _
      %p232 = scmp.lt.s32.totalorder %s20, 2
      // Predicated region
      $region29: #{trainer_forward.2} parent=5 // pred_check
        %p233 = pneg %p232
      $region30: #{trainer_forward.2} parent=5 // pred_check_branch
        %235 = sbr.rel (%p233) target = $region32
      $region31: #{trainer_forward.2} parent=5 // pred_region
        // Predicated region
        $region33: #{trainer_forward.2} parent=31 // pred_check
          %p236 = pneg %p40
        $region34: #{trainer_forward.2} parent=31 // pred_check_branch
          %238 = sbr.rel (%p236) target = $region36
        $region35: #{trainer_forward.2} parent=31 // pred_region
          %s239 = sand.u32 %s30, 1
          %s240 = scalar_lea.sflag [#allocation3], %s239
          %s241 = sand.u32 %s30, 1
          %s242 = smul.addr %s241, 48
          %s243 = scalar_lea.vmem [#allocation2], %s242
          %s245 = ssub.s32 768, 768
          %246 = vsyncadd %s240, %s245
          %s247 = smul.addr %s20, 6
          %s248 = smul.addr %s247, 128
          %s249 = scalar_lea.hbm %s0, %s248
          %s250 = sshll.u32 %s243, 4
          %s251 = int_to_ptr.vmem [resolvable:$true] %s250
          %256 = dma.hbm_to_vmem [thread:$0]  %s249, 768, %s251, %s240, 128, 128, 8
        $region36: #{trainer_forward.2} parent=31 // pred_fallthru
          _
      $region32: #{trainer_forward.2} parent=5 // pred_fallthru
        _
      %p257 = scmp.le.s32.totalorder 1, %s20
      %p258 = scmp.lt.s32.totalorder %s20, 3
      %p259 = pnand %p257, %p258
      %p260 = pneg %p259
      // Predicated region
      $region37: #{trainer_forward.2} parent=5 // pred_check
        _
      $region38: #{trainer_forward.2} parent=5 // pred_check_branch
        %262 = sbr.rel (%p259) target = $region40
      $region39: #{trainer_forward.2} parent=5 // pred_region
        %s263 = ssub.s32 %s20, 1
        %s264 = sand.u32 %s33, 1
        %s265 = scalar_lea.sflag [#allocation3], %s264
        %s266 = sand.u32 %s33, 1
        %s267 = smul.addr %s266, 48
        %s268 = scalar_lea.vmem [#allocation2], %s267
        // Predicated region
        $region41: #{trainer_forward.2} parent=39 // pred_check
          %p269 = pneg %p46
        $region42: #{trainer_forward.2} parent=39 // pred_check_branch
          %271 = sbr.rel (%p269) target = $region44
        $region43: #{trainer_forward.2} parent=39 // pred_region
          %272 = dma.done %s265, 768
        $region44: #{trainer_forward.2} parent=39 // pred_fallthru
          _
        // Predicated region
        $region45: #{trainer_forward.2} parent=39 // pred_check
          %p273 = pneg %p67
        $region46: #{trainer_forward.2} parent=39 // pred_check_branch
          %275 = sbr.rel (%p273) target = $region48
        $region47: #{trainer_forward.2} parent=39 // pred_region
          %276 = dma.done [#allocation5], 16
        $region48: #{trainer_forward.2} parent=39 // pred_fallthru
          _
        // Predicated region
        $region49: #{trainer_forward.2} parent=39 // pred_check
          %p277 = pneg %p88
        $region50: #{trainer_forward.2} parent=39 // pred_check_branch
          %279 = sbr.rel (%p277) target = $region52
        $region51: #{trainer_forward.2} parent=39 // pred_region
          %280 = dma.done [#allocation4], 16
        $region52: #{trainer_forward.2} parent=39 // pred_fallthru
          _
        // Predicated region
        $region53: #{trainer_forward.2} parent=39 // pred_check
          %p281 = pneg %p109
        $region54: #{trainer_forward.2} parent=39 // pred_check_branch
          %283 = sbr.rel (%p281) target = $region56
        $region55: #{trainer_forward.2} parent=39 // pred_region
          %284 = dma.done [#allocation9], 16
        $region56: #{trainer_forward.2} parent=39 // pred_fallthru
          _
        // Predicated region
        $region57: #{trainer_forward.2} parent=39 // pred_check
          %p285 = pneg %p130
        $region58: #{trainer_forward.2} parent=39 // pred_check_branch
          %287 = sbr.rel (%p285) target = $region60
        $region59: #{trainer_forward.2} parent=39 // pred_region
          %288 = dma.done [#allocation11], 16
        $region60: #{trainer_forward.2} parent=39 // pred_fallthru
          _
        %289 = sfence
        %s290 = sand.u32 %s33, 1
        %s291 = scalar_lea.sflag [#allocation3], %s290
        %s292 = sand.u32 %s33, 1
        %s293 = smul.addr %s292, 48
        %s294 = scalar_lea.vmem [#allocation2], %s293
        %p295 = pneg %p46
        %p296 = pneg %p43
        %p297 = pneg %p67
        %p298 = pneg %p64
        %p299 = pneg %p88
        %p300 = pneg %p85
        %p301 = pneg %p109
        %p302 = pneg %p106
        %p303 = pneg %p130
        %p304 = pneg %p127
        %p305 = pneg %p156
        %p306 = pneg %p153
        %p307 = scmp.lt.s32.totalorder %s25, 1
        %s308 = scalar_select %p307, %s25, 1
        %s309 = scalar_lea.vmem %s5, %s308
        %p310 = pneg %p177
        %p311 = pneg %p174
        %p312 = scmp.lt.s32.totalorder %s25, 1
        %s313 = scalar_select %p312, %s25, 1
        %s314 = scalar_lea.vmem %s5, %s313
        %v315 = vld [vmem:[%s268] sm:$0xff]
        %v316 = vld [vmem:[%s268 + $0x8] sm:$0xff]
        %s317 = scalar_lea.vmem %s268, 16 [#allocation2]
        %v318 = vld [vmem:[%s317] sm:$0xff]
        %v319 = vld [vmem:[%s317 + $0x8] sm:$0xff]
        %s320 = scalar_lea.vmem %s268, 32 [#allocation2]
        %v321 = vld [vmem:[%s320] sm:$0xff]
        %v322 = vld [vmem:[%s320 + $0x8] sm:$0xff]
        %v323 = vmul.f32 %v315, 0.225
        %v324 = vmul.f32 %v316, 0.225
        %v325 = vadd.f32 %v323, 0.45
        %v326 = vadd.f32 %v324, 0.45
        %v327 = vmul.f32 %v325, 255.0
        %v328 = vmul.f32 %v326, 255.0
        %v329 = vmax.f32 %v327, 0.0
        %v330 = vmax.f32 %v328, 0.0
        %v331 = vmin.f32 %v329, 255.0
        %v332 = vmin.f32 %v330, 255.0
        %v333 = vmul.f32 %v318, 0.225
        %v334 = vmul.f32 %v319, 0.225
        %v335 = vadd.f32 %v333, 0.45
        %v336 = vadd.f32 %v334, 0.45
        %v337 = vmul.f32 %v335, 255.0
        %v338 = vmul.f32 %v336, 255.0
        %v339 = vmax.f32 %v337, 0.0
        %v340 = vmax.f32 %v338, 0.0
        %v341 = vmin.f32 %v339, 255.0
        %v342 = vmin.f32 %v340, 255.0
        %v343 = vmul.f32 %v321, 0.225
        %v344 = vmul.f32 %v322, 0.225
        %v345 = vadd.f32 %v343, 0.45
        %v346 = vadd.f32 %v344, 0.45
        %v347 = vmul.f32 %v345, 255.0
        %v348 = vmul.f32 %v346, 255.0
        %v349 = vmax.f32 %v347, 0.0
        %v350 = vmax.f32 %v348, 0.0
        %v351 = vmin.f32 %v349, 255.0
        %v352 = vmin.f32 %v350, 255.0
        %v353 = vmin.f32 %v331, %v341
        %v354 = vmin.f32 %v332, %v342
        %v355 = vmin.f32 %v353, %v351
        %v356 = vmin.f32 %v354, %v352
        %359 = vrot.lane.b32.xlu0 %v355, 1
        %v360 = vpop.permute.xlu0 %359
        %361 = vrot.lane.b32.xlu0 %v356, 1
        %v362 = vpop.permute.xlu0 %361
        %vm365 = vcmask 7168
        %v366 = vsel %vm365, %v355, %v360
        %v367 = vsel %vm365, %v356, %v362
        %368 = vrot.lane.b32.xlu0 %v355, 127
        %v369 = vpop.permute.xlu0 %368
        %370 = vrot.lane.b32.xlu0 %v356, 127
        %v371 = vpop.permute.xlu0 %370
        %vm374 = vcmask 121856
        %v375 = vsel %vm374, %v369, %v355
        %v376 = vsel %vm374, %v371, %v356
        %v377 = vmin.f32 %v366, %v355
        %v378 = vmin.f32 %v367, %v356
        %v379 = vmin.f32 %v377, %v375
        %v380 = vmin.f32 %v378, %v376
        %vm383 = vcmask 1040384
        %v384 = vrot.slane %v379, 7
        %v385 = vrot.slane %v380, 7
        %v386 = vsel %vm383, %v384, %v385
        %v389 = vsel %vm383, %v379, %v384
        %vm390 = vcmask 1046528
        %v391 = vrot.slane %v379, 1
        %v392 = vrot.slane %v380, 1
        %v393 = vsel %vm390, %v391, %v392
        %v396 = vsel %vm390, %v392, %v380
        %v397 = vmin.f32 %v389, %v379
        %v398 = vmin.f32 %v386, %v380
        %v399 = vmin.f32 %v397, %v393
        %v400 = vmin.f32 %v398, %v396
        %v401 = vlaneseq
        %v402 = vshrl.u32 %v401, 7
        %v403 = vadd.s32 %v402, 8
        %v404 = vlaneseq
        %v405 = vand.u32 %v404, 127
        %v406 = vmul.u32 %v402, 16
        %v407 = vmul.u32 %v403, 16
        %v408 = vadd.s32 %v406, %v405
        %v409 = vadd.s32 %v407, %v405
        %vm410 = vcmask 130048
        %v411 = vsel %vm410, %v399, -inf
        %v412 = vsel %vm410, %v400, -inf
        %v413 = vmax.f32 %v411, %v412
        %414 = vmax.xlane.f32.xlu0 %v413
        %v415 = vpop.xlane.xlu0 %414
        %v416 = vrot.slane %v415, 4
        %v417 = vmax.f32 %v415, %v416
        %v418 = vrot.slane %v417, 2
        %v419 = vmax.f32 %v417, %v418
        %v420 = vrot.slane %v419, 1
        %v421 = vmax.f32 %v419, %v420
        %s422 = vtos %v421
        %v423 = vstv %s422
        %vm424 = vcmp.ge.f32.partialorder %v399, %v423
        %vm425 = vcmp.ge.f32.partialorder %v400, %v423
        %v426 = vsel %vm424, %v408, 256
        %v427 = vsel %vm425, %v409, 256
        %v428 = vsel %vm410, %v426, 2147483647
        %v429 = vsel %vm410, %v427, 2147483647
        %vm430 = vcmp.lt.s32.totalorder %v428, %v429
        %v431 = vsel %vm430, %v428, %v429
        %v432 = vand.u32 %v431, 65535
        %v433 = vshra.s32 %v431, 16
        %v434 = vcvt.s32.f32 %v432
        %v435 = vcvt.s32.f32 %v433
        %436 = vmin.xlane.f32.xlu0 %v435
        %v437 = vpop.xlane.xlu0 %436
        %vm438 = vcmp.eq.f32.partialorder %v435, %v437
        %v439 = vsel %vm438, %v434, inf
        %440 = vmin.xlane.f32.xlu0 %v439
        %v441 = vpop.xlane.xlu0 %440
        %v442 = vcvt.f32.s32 %v441
        %v443 = vcvt.f32.s32 %v437
        %v444 = vshll.u32 %v443, 16
        %v445 = vadd.s32 %v444, %v442
        %v446 = vrot.slane %v445, 4
        %vm447 = vcmp.lt.s32.totalorder %v445, %v446
        %v448 = vsel %vm447, %v445, %v446
        %v449 = vrot.slane %v448, 2
        %vm450 = vcmp.lt.s32.totalorder %v448, %v449
        %v451 = vsel %vm450, %v448, %v449
        %v452 = vrot.slane %v451, 1
        %vm453 = vcmp.lt.s32.totalorder %v451, %v452
        %v454 = vsel %vm453, %v451, %v452
        %s455 = vtos %v454
        %v456 = vstv %s455
        %vm457 = vcmp.eq.s32.totalorder %v408, %v456
        %vm458 = vcmp.eq.s32.totalorder %v409, %v456
        %v459 = vsel %vm457, %v331, 0.0
        %v460 = vsel %vm458, %v332, 0.0
        %v461 = vsel %vm410, %v459, 0.0
        %v462 = vsel %vm410, %v460, 0.0
        %v463 = vadd.f32 %v461, %v462
        %464 = vadd.xlane.f32.xlu0 %v463
        %v465 = vpop.xlane.xlu0 %464
        %v466 = vrot.slane %v465, 4
        %v467 = vadd.f32 %v465, %v466
        %v468 = vrot.slane %v467, 2
        %v469 = vadd.f32 %v467, %v468
        %v470 = vrot.slane %v469, 1
        %v471 = vadd.f32 %v469, %v470
        %s472 = vtos %v471
        %v473 = vstv %s472
        %v474 = vsel %vm457, %v341, 0.0
        %v475 = vsel %vm458, %v342, 0.0
        %v476 = vsel %vm410, %v474, 0.0
        %v477 = vsel %vm410, %v475, 0.0
        %v478 = vadd.f32 %v476, %v477
        %479 = vadd.xlane.f32.xlu0 %v478
        %v480 = vpop.xlane.xlu0 %479
        %v481 = vrot.slane %v480, 4
        %v482 = vadd.f32 %v480, %v481
        %v483 = vrot.slane %v482, 2
        %v484 = vadd.f32 %v482, %v483
        %v485 = vrot.slane %v484, 1
        %v486 = vadd.f32 %v484, %v485
        %s487 = vtos %v486
        %v488 = vstv %s487
        %v489 = vsel %vm457, %v351, 0.0
        %v490 = vsel %vm458, %v352, 0.0
        %v491 = vsel %vm410, %v489, 0.0
        %v492 = vsel %vm410, %v490, 0.0
        %v493 = vadd.f32 %v491, %v492
        %494 = vadd.xlane.f32.xlu0 %v493
        %v495 = vpop.xlane.xlu0 %494
        %v496 = vrot.slane %v495, 4
        %v497 = vadd.f32 %v495, %v496
        %v498 = vrot.slane %v497, 2
        %v499 = vadd.f32 %v497, %v498
        %v500 = vrot.slane %v499, 1
        %v501 = vadd.f32 %v499, %v500
        %s502 = vtos %v501
        %v503 = vstv %s502
        %v504 = vsel %vm365, %v473, %v488
        %vm505 = vcmask 15360
        %v506 = vsel %vm505, %v504, %v503
        %v507 = vmax.f32 %v506, 1.0
        %vm508 = vcmask 16384
        %509 = vst.msk [vmem:[%s314] sm:$0x1] %vm508, %v507
        %p510 = scmp.eq.s32.totalorder %s25, 0
        // Predicated region
        $region61: #{trainer_forward.2} parent=39 // pred_check
          %p511 = pneg %p510
        $region62: #{trainer_forward.2} parent=39 // pred_check_branch
          %513 = sbr.rel (%p511) target = $region64
        $region63: #{trainer_forward.2} parent=39 // pred_region
          %s514 = sld [smem:[#allocation6]]
          %v515 = vstv %s514
          %v516 = vmul.f32 %v315, %v515
          %v517 = vmul.f32 %v316, %v515
          %s518 = sld [smem:[#allocation6 + $0x1]]
          %v519 = vstv %s518
          %v520 = vmul.f32 %v318, %v519
          %v521 = vmul.f32 %v319, %v519
          %v522 = vadd.f32 %v516, %v520
          %v523 = vadd.f32 %v517, %v521
          %s524 = sld [smem:[#allocation6 + $0x2]]
          %v525 = vstv %s524
          %v526 = vmul.f32 %v321, %v525
          %v527 = vmul.f32 %v322, %v525
          %v528 = vadd.f32 %v522, %v526
          %v529 = vadd.f32 %v523, %v527
          %s530 = sld [smem:[#allocation6 + $0x3]]
          %v531 = vstv %s530
          %v532 = vmul.f32 %v399, %v531
          %v533 = vmul.f32 %v400, %v531
          %v534 = vadd.f32 %v528, %v532
          %v535 = vadd.f32 %v529, %v533
          %s536 = sld [smem:[#allocation7]]
          %v537 = vstv %s536
          %v538 = vadd.f32 %v534, %v537
          %v539 = vadd.f32 %v535, %v537
          %v540 = vmax.f32 %v538, 0.0
          %v541 = vmax.f32 %v539, 0.0
          %s542 = sld [smem:[#allocation8]]
          %v543 = vstv %s542
          %v544 = vmul.f32 %v540, %v543
          %v545 = vmul.f32 %v541, %v543
          %v546 = vadd.f32 %v544, 0.0
          %v547 = vadd.f32 %v545, 0.0
          %s548 = sld [smem:[#allocation8 + $0x20]]
          %v549 = vstv %s548
          %v550 = vmul.f32 %v540, %v549
          %v551 = vmul.f32 %v541, %v549
          %v552 = vadd.f32 %v550, 0.0
          %v553 = vadd.f32 %v551, 0.0
          %s554 = sld [smem:[#allocation8 + $0x40]]
          %v555 = vstv %s554
          %v556 = vmul.f32 %v540, %v555
          %v557 = vmul.f32 %v541, %v555
          %v558 = vadd.f32 %v556, 0.0
          %v559 = vadd.f32 %v557, 0.0
          %s560 = sld [smem:[#allocation6 + $0x4]]
          %v561 = vstv %s560
          %v562 = vmul.f32 %v315, %v561
          %v563 = vmul.f32 %v316, %v561
          %s564 = sld [smem:[#allocation6 + $0x5]]
          %v565 = vstv %s564
          %v566 = vmul.f32 %v318, %v565
          %v567 = vmul.f32 %v319, %v565
          %v568 = vadd.f32 %v562, %v566
          %v569 = vadd.f32 %v563, %v567
          %s570 = sld [smem:[#allocation6 + $0x6]]
          %v571 = vstv %s570
          %v572 = vmul.f32 %v321, %v571
          %v573 = vmul.f32 %v322, %v571
          %v574 = vadd.f32 %v568, %v572
          %v575 = vadd.f32 %v569, %v573
          %s576 = sld [smem:[#allocation6 + $0x7]]
          %v577 = vstv %s576
          %v578 = vmul.f32 %v399, %v577
          %v579 = vmul.f32 %v400, %v577
          %v580 = vadd.f32 %v574, %v578
          %v581 = vadd.f32 %v575, %v579
          %s582 = sld [smem:[#allocation7 + $0x1]]
          %v583 = vstv %s582
          %v584 = vadd.f32 %v580, %v583
          %v585 = vadd.f32 %v581, %v583
          %v586 = vmax.f32 %v584, 0.0
          %v587 = vmax.f32 %v585, 0.0
          %s588 = sld [smem:[#allocation8 + $0x1]]
          %v589 = vstv %s588
          %v590 = vmul.f32 %v586, %v589
          %v591 = vmul.f32 %v587, %v589
          %v592 = vadd.f32 %v546, %v590
          %v593 = vadd.f32 %v547, %v591
          %s594 = sld [smem:[#allocation8 + $0x21]]
          %v595 = vstv %s594
          %v596 = vmul.f32 %v586, %v595
          %v597 = vmul.f32 %v587, %v595
          %v598 = vadd.f32 %v552, %v596
          %v599 = vadd.f32 %v553, %v597
          %s600 = sld [smem:[#allocation8 + $0x41]]
          %v601 = vstv %s600
          %v602 = vmul.f32 %v586, %v601
          %v603 = vmul.f32 %v587, %v601
          %v604 = vadd.f32 %v558, %v602
          %v605 = vadd.f32 %v559, %v603
          %s606 = sld [smem:[#allocation6 + $0x8]]
          %v607 = vstv %s606
          %v608 = vmul.f32 %v315, %v607
          %v609 = vmul.f32 %v316, %v607
          %s610 = sld [smem:[#allocation6 + $0x9]]
          %v611 = vstv %s610
          %v612 = vmul.f32 %v318, %v611
          %v613 = vmul.f32 %v319, %v611
          %v614 = vadd.f32 %v608, %v612
          %v615 = vadd.f32 %v609, %v613
          %s616 = sld [smem:[#allocation6 + $0xa]]
          %v617 = vstv %s616
          %v618 = vmul.f32 %v321, %v617
          %v619 = vmul.f32 %v322, %v617
          %v620 = vadd.f32 %v614, %v618
          %v621 = vadd.f32 %v615, %v619
          %s622 = sld [smem:[#allocation6 + $0xb]]
          %v623 = vstv %s622
          %v624 = vmul.f32 %v399, %v623
          %v625 = vmul.f32 %v400, %v623
          %v626 = vadd.f32 %v620, %v624
          %v627 = vadd.f32 %v621, %v625
          %s628 = sld [smem:[#allocation7 + $0x2]]
          %v629 = vstv %s628
          %v630 = vadd.f32 %v626, %v629
          %v631 = vadd.f32 %v627, %v629
          %v632 = vmax.f32 %v630, 0.0
          %v633 = vmax.f32 %v631, 0.0
          %s634 = sld [smem:[#allocation8 + $0x2]]
          %v635 = vstv %s634
          %v636 = vmul.f32 %v632, %v635
          %v637 = vmul.f32 %v633, %v635
          %v638 = vadd.f32 %v592, %v636
          %v639 = vadd.f32 %v593, %v637
          %s640 = sld [smem:[#allocation8 + $0x22]]
          %v641 = vstv %s640
          %v642 = vmul.f32 %v632, %v641
          %v643 = vmul.f32 %v633, %v641
          %v644 = vadd.f32 %v598, %v642
          %v645 = vadd.f32 %v599, %v643
          %s646 = sld [smem:[#allocation8 + $0x42]]
          %v647 = vstv %s646
          %v648 = vmul.f32 %v632, %v647
          %v649 = vmul.f32 %v633, %v647
          %v650 = vadd.f32 %v604, %v648
          %v651 = vadd.f32 %v605, %v649
          %s652 = sld [smem:[#allocation6 + $0xc]]
          %v653 = vstv %s652
          %v654 = vmul.f32 %v315, %v653
          %v655 = vmul.f32 %v316, %v653
          %s656 = sld [smem:[#allocation6 + $0xd]]
          %v657 = vstv %s656
          %v658 = vmul.f32 %v318, %v657
          %v659 = vmul.f32 %v319, %v657
          %v660 = vadd.f32 %v654, %v658
          %v661 = vadd.f32 %v655, %v659
          %s662 = sld [smem:[#allocation6 + $0xe]]
          %v663 = vstv %s662
          %v664 = vmul.f32 %v321, %v663
          %v665 = vmul.f32 %v322, %v663
          %v666 = vadd.f32 %v660, %v664
          %v667 = vadd.f32 %v661, %v665
          %s668 = sld [smem:[#allocation6 + $0xf]]
          %v669 = vstv %s668
          %v670 = vmul.f32 %v399, %v669
          %v671 = vmul.f32 %v400, %v669
          %v672 = vadd.f32 %v666, %v670
          %v673 = vadd.f32 %v667, %v671
          %s674 = sld [smem:[#allocation7 + $0x3]]
          %v675 = vstv %s674
          %v676 = vadd.f32 %v672, %v675
          %v677 = vadd.f32 %v673, %v675
          %v678 = vmax.f32 %v676, 0.0
          %v679 = vmax.f32 %v677, 0.0
          %s680 = sld [smem:[#allocation8 + $0x3]]
          %v681 = vstv %s680
          %v682 = vmul.f32 %v678, %v681
          %v683 = vmul.f32 %v679, %v681
          %v684 = vadd.f32 %v638, %v682
          %v685 = vadd.f32 %v639, %v683
          %s686 = sld [smem:[#allocation8 + $0x23]]
          %v687 = vstv %s686
          %v688 = vmul.f32 %v678, %v687
          %v689 = vmul.f32 %v679, %v687
          %v690 = vadd.f32 %v644, %v688
          %v691 = vadd.f32 %v645, %v689
          %s692 = sld [smem:[#allocation8 + $0x43]]
          %v693 = vstv %s692
          %v694 = vmul.f32 %v678, %v693
          %v695 = vmul.f32 %v679, %v693
          %v696 = vadd.f32 %v650, %v694
          %v697 = vadd.f32 %v651, %v695
          %s698 = sld [smem:[#allocation6 + $0x10]]
          %v699 = vstv %s698
          %v700 = vmul.f32 %v315, %v699
          %v701 = vmul.f32 %v316, %v699
          %s702 = sld [smem:[#allocation6 + $0x11]]
          %v703 = vstv %s702
          %v704 = vmul.f32 %v318, %v703
          %v705 = vmul.f32 %v319, %v703
          %v706 = vadd.f32 %v700, %v704
          %v707 = vadd.f32 %v701, %v705
          %s708 = sld [smem:[#allocation6 + $0x12]]
          %v709 = vstv %s708
          %v710 = vmul.f32 %v321, %v709
          %v711 = vmul.f32 %v322, %v709
          %v712 = vadd.f32 %v706, %v710
          %v713 = vadd.f32 %v707, %v711
          %s714 = sld [smem:[#allocation6 + $0x13]]
          %v715 = vstv %s714
          %v716 = vmul.f32 %v399, %v715
          %v717 = vmul.f32 %v400, %v715
          %v718 = vadd.f32 %v712, %v716
          %v719 = vadd.f32 %v713, %v717
          %s720 = sld [smem:[#allocation7 + $0x4]]
          %v721 = vstv %s720
          %v722 = vadd.f32 %v718, %v721
          %v723 = vadd.f32 %v719, %v721
          %v724 = vmax.f32 %v722, 0.0
          %v725 = vmax.f32 %v723, 0.0
          %s726 = sld [smem:[#allocation8 + $0x4]]
          %v727 = vstv %s726
          %v728 = vmul.f32 %v724, %v727
          %v729 = vmul.f32 %v725, %v727
          %v730 = vadd.f32 %v684, %v728
          %v731 = vadd.f32 %v685, %v729
          %s732 = sld [smem:[#allocation8 + $0x24]]
          %v733 = vstv %s732
          %v734 = vmul.f32 %v724, %v733
          %v735 = vmul.f32 %v725, %v733
          %v736 = vadd.f32 %v690, %v734
          %v737 = vadd.f32 %v691, %v735
          %s738 = sld [smem:[#allocation8 + $0x44]]
          %v739 = vstv %s738
          %v740 = vmul.f32 %v724, %v739
          %v741 = vmul.f32 %v725, %v739
          %v742 = vadd.f32 %v696, %v740
          %v743 = vadd.f32 %v697, %v741
          %s744 = sld [smem:[#allocation6 + $0x14]]
          %v745 = vstv %s744
          %v746 = vmul.f32 %v315, %v745
          %v747 = vmul.f32 %v316, %v745
          %s748 = sld [smem:[#allocation6 + $0x15]]
          %v749 = vstv %s748
          %v750 = vmul.f32 %v318, %v749
          %v751 = vmul.f32 %v319, %v749
          %v752 = vadd.f32 %v746, %v750
          %v753 = vadd.f32 %v747, %v751
          %s754 = sld [smem:[#allocation6 + $0x16]]
          %v755 = vstv %s754
          %v756 = vmul.f32 %v321, %v755
          %v757 = vmul.f32 %v322, %v755
          %v758 = vadd.f32 %v752, %v756
          %v759 = vadd.f32 %v753, %v757
          %s760 = sld [smem:[#allocation6 + $0x17]]
          %v761 = vstv %s760
          %v762 = vmul.f32 %v399, %v761
          %v763 = vmul.f32 %v400, %v761
          %v764 = vadd.f32 %v758, %v762
          %v765 = vadd.f32 %v759, %v763
          %s766 = sld [smem:[#allocation7 + $0x5]]
          %v767 = vstv %s766
          %v768 = vadd.f32 %v764, %v767
          %v769 = vadd.f32 %v765, %v767
          %v770 = vmax.f32 %v768, 0.0
          %v771 = vmax.f32 %v769, 0.0
          %s772 = sld [smem:[#allocation8 + $0x5]]
          %v773 = vstv %s772
          %v774 = vmul.f32 %v770, %v773
          %v775 = vmul.f32 %v771, %v773
          %v776 = vadd.f32 %v730, %v774
          %v777 = vadd.f32 %v731, %v775
          %s778 = sld [smem:[#allocation8 + $0x25]]
          %v779 = vstv %s778
          %v780 = vmul.f32 %v770, %v779
          %v781 = vmul.f32 %v771, %v779
          %v782 = vadd.f32 %v736, %v780
          %v783 = vadd.f32 %v737, %v781
          %s784 = sld [smem:[#allocation8 + $0x45]]
          %v785 = vstv %s784
          %v786 = vmul.f32 %v770, %v785
          %v787 = vmul.f32 %v771, %v785
          %v788 = vadd.f32 %v742, %v786
          %v789 = vadd.f32 %v743, %v787
          %s790 = sld [smem:[#allocation6 + $0x18]]
          %v791 = vstv %s790
          %v792 = vmul.f32 %v315, %v791
          %v793 = vmul.f32 %v316, %v791
          %s794 = sld [smem:[#allocation6 + $0x19]]
          %v795 = vstv %s794
          %v796 = vmul.f32 %v318, %v795
          %v797 = vmul.f32 %v319, %v795
          %v798 = vadd.f32 %v792, %v796
          %v799 = vadd.f32 %v793, %v797
          %s800 = sld [smem:[#allocation6 + $0x1a]]
          %v801 = vstv %s800
          %v802 = vmul.f32 %v321, %v801
          %v803 = vmul.f32 %v322, %v801
          %v804 = vadd.f32 %v798, %v802
          %v805 = vadd.f32 %v799, %v803
          %s806 = sld [smem:[#allocation6 + $0x1b]]
          %v807 = vstv %s806
          %v808 = vmul.f32 %v399, %v807
          %v809 = vmul.f32 %v400, %v807
          %v810 = vadd.f32 %v804, %v808
          %v811 = vadd.f32 %v805, %v809
          %s812 = sld [smem:[#allocation7 + $0x6]]
          %v813 = vstv %s812
          %v814 = vadd.f32 %v810, %v813
          %v815 = vadd.f32 %v811, %v813
          %v816 = vmax.f32 %v814, 0.0
          %v817 = vmax.f32 %v815, 0.0
          %s818 = sld [smem:[#allocation8 + $0x6]]
          %v819 = vstv %s818
          %v820 = vmul.f32 %v816, %v819
          %v821 = vmul.f32 %v817, %v819
          %v822 = vadd.f32 %v776, %v820
          %v823 = vadd.f32 %v777, %v821
          %s824 = sld [smem:[#allocation8 + $0x26]]
          %v825 = vstv %s824
          %v826 = vmul.f32 %v816, %v825
          %v827 = vmul.f32 %v817, %v825
          %v828 = vadd.f32 %v782, %v826
          %v829 = vadd.f32 %v783, %v827
          %s830 = sld [smem:[#allocation8 + $0x46]]
          %v831 = vstv %s830
          %v832 = vmul.f32 %v816, %v831
          %v833 = vmul.f32 %v817, %v831
          %v834 = vadd.f32 %v788, %v832
          %v835 = vadd.f32 %v789, %v833
          %s836 = sld [smem:[#allocation6 + $0x1c]]
          %v837 = vstv %s836
          %v838 = vmul.f32 %v315, %v837
          %v839 = vmul.f32 %v316, %v837
          %s840 = sld [smem:[#allocation6 + $0x1d]]
          %v841 = vstv %s840
          %v842 = vmul.f32 %v318, %v841
          %v843 = vmul.f32 %v319, %v841
          %v844 = vadd.f32 %v838, %v842
          %v845 = vadd.f32 %v839, %v843
          %s846 = sld [smem:[#allocation6 + $0x1e]]
          %v847 = vstv %s846
          %v848 = vmul.f32 %v321, %v847
          %v849 = vmul.f32 %v322, %v847
          %v850 = vadd.f32 %v844, %v848
          %v851 = vadd.f32 %v845, %v849
          %s852 = sld [smem:[#allocation6 + $0x1f]]
          %v853 = vstv %s852
          %v854 = vmul.f32 %v399, %v853
          %v855 = vmul.f32 %v400, %v853
          %v856 = vadd.f32 %v850, %v854
          %v857 = vadd.f32 %v851, %v855
          %s858 = sld [smem:[#allocation7 + $0x7]]
          %v859 = vstv %s858
          %v860 = vadd.f32 %v856, %v859
          %v861 = vadd.f32 %v857, %v859
          %v862 = vmax.f32 %v860, 0.0
          %v863 = vmax.f32 %v861, 0.0
          %s864 = sld [smem:[#allocation8 + $0x7]]
          %v865 = vstv %s864
          %v866 = vmul.f32 %v862, %v865
          %v867 = vmul.f32 %v863, %v865
          %v868 = vadd.f32 %v822, %v866
          %v869 = vadd.f32 %v823, %v867
          %s870 = sld [smem:[#allocation8 + $0x27]]
          %v871 = vstv %s870
          %v872 = vmul.f32 %v862, %v871
          %v873 = vmul.f32 %v863, %v871
          %v874 = vadd.f32 %v828, %v872
          %v875 = vadd.f32 %v829, %v873
          %s876 = sld [smem:[#allocation8 + $0x47]]
          %v877 = vstv %s876
          %v878 = vmul.f32 %v862, %v877
          %v879 = vmul.f32 %v863, %v877
          %v880 = vadd.f32 %v834, %v878
          %v881 = vadd.f32 %v835, %v879
          %s882 = sld [smem:[#allocation6 + $0x20]]
          %v883 = vstv %s882
          %v884 = vmul.f32 %v315, %v883
          %v885 = vmul.f32 %v316, %v883
          %s886 = sld [smem:[#allocation6 + $0x21]]
          %v887 = vstv %s886
          %v888 = vmul.f32 %v318, %v887
          %v889 = vmul.f32 %v319, %v887
          %v890 = vadd.f32 %v884, %v888
          %v891 = vadd.f32 %v885, %v889
          %s892 = sld [smem:[#allocation6 + $0x22]]
          %v893 = vstv %s892
          %v894 = vmul.f32 %v321, %v893
          %v895 = vmul.f32 %v322, %v893
          %v896 = vadd.f32 %v890, %v894
          %v897 = vadd.f32 %v891, %v895
          %s898 = sld [smem:[#allocation6 + $0x23]]
          %v899 = vstv %s898
          %v900 = vmul.f32 %v399, %v899
          %v901 = vmul.f32 %v400, %v899
          %v902 = vadd.f32 %v896, %v900
          %v903 = vadd.f32 %v897, %v901
          %s904 = sld [smem:[#allocation7 + $0x8]]
          %v905 = vstv %s904
          %v906 = vadd.f32 %v902, %v905
          %v907 = vadd.f32 %v903, %v905
          %v908 = vmax.f32 %v906, 0.0
          %v909 = vmax.f32 %v907, 0.0
          %s910 = sld [smem:[#allocation8 + $0x8]]
          %v911 = vstv %s910
          %v912 = vmul.f32 %v908, %v911
          %v913 = vmul.f32 %v909, %v911
          %v914 = vadd.f32 %v868, %v912
          %v915 = vadd.f32 %v869, %v913
          %s916 = sld [smem:[#allocation8 + $0x28]]
          %v917 = vstv %s916
          %v918 = vmul.f32 %v908, %v917
          %v919 = vmul.f32 %v909, %v917
          %v920 = vadd.f32 %v874, %v918
          %v921 = vadd.f32 %v875, %v919
          %s922 = sld [smem:[#allocation8 + $0x48]]
          %v923 = vstv %s922
          %v924 = vmul.f32 %v908, %v923
          %v925 = vmul.f32 %v909, %v923
          %v926 = vadd.f32 %v880, %v924
          %v927 = vadd.f32 %v881, %v925
          %s928 = sld [smem:[#allocation6 + $0x24]]
          %v929 = vstv %s928
          %v930 = vmul.f32 %v315, %v929
          %v931 = vmul.f32 %v316, %v929
          %s932 = sld [smem:[#allocation6 + $0x25]]
          %v933 = vstv %s932
          %v934 = vmul.f32 %v318, %v933
          %v935 = vmul.f32 %v319, %v933
          %v936 = vadd.f32 %v930, %v934
          %v937 = vadd.f32 %v931, %v935
          %s938 = sld [smem:[#allocation6 + $0x26]]
          %v939 = vstv %s938
          %v940 = vmul.f32 %v321, %v939
          %v941 = vmul.f32 %v322, %v939
          %v942 = vadd.f32 %v936, %v940
          %v943 = vadd.f32 %v937, %v941
          %s944 = sld [smem:[#allocation6 + $0x27]]
          %v945 = vstv %s944
          %v946 = vmul.f32 %v399, %v945
          %v947 = vmul.f32 %v400, %v945
          %v948 = vadd.f32 %v942, %v946
          %v949 = vadd.f32 %v943, %v947
          %s950 = sld [smem:[#allocation7 + $0x9]]
          %v951 = vstv %s950
          %v952 = vadd.f32 %v948, %v951
          %v953 = vadd.f32 %v949, %v951
          %v954 = vmax.f32 %v952, 0.0
          %v955 = vmax.f32 %v953, 0.0
          %s956 = sld [smem:[#allocation8 + $0x9]]
          %v957 = vstv %s956
          %v958 = vmul.f32 %v954, %v957
          %v959 = vmul.f32 %v955, %v957
          %v960 = vadd.f32 %v914, %v958
          %v961 = vadd.f32 %v915, %v959
          %s962 = sld [smem:[#allocation8 + $0x29]]
          %v963 = vstv %s962
          %v964 = vmul.f32 %v954, %v963
          %v965 = vmul.f32 %v955, %v963
          %v966 = vadd.f32 %v920, %v964
          %v967 = vadd.f32 %v921, %v965
          %s968 = sld [smem:[#allocation8 + $0x49]]
          %v969 = vstv %s968
          %v970 = vmul.f32 %v954, %v969
          %v971 = vmul.f32 %v955, %v969
          %v972 = vadd.f32 %v926, %v970
          %v973 = vadd.f32 %v927, %v971
          %s974 = sld [smem:[#allocation6 + $0x28]]
          %v975 = vstv %s974
          %v976 = vmul.f32 %v315, %v975
          %v977 = vmul.f32 %v316, %v975
          %s978 = sld [smem:[#allocation6 + $0x29]]
          %v979 = vstv %s978
          %v980 = vmul.f32 %v318, %v979
          %v981 = vmul.f32 %v319, %v979
          %v982 = vadd.f32 %v976, %v980
          %v983 = vadd.f32 %v977, %v981
          %s984 = sld [smem:[#allocation6 + $0x2a]]
          %v985 = vstv %s984
          %v986 = vmul.f32 %v321, %v985
          %v987 = vmul.f32 %v322, %v985
          %v988 = vadd.f32 %v982, %v986
          %v989 = vadd.f32 %v983, %v987
          %s990 = sld [smem:[#allocation6 + $0x2b]]
          %v991 = vstv %s990
          %v992 = vmul.f32 %v399, %v991
          %v993 = vmul.f32 %v400, %v991
          %v994 = vadd.f32 %v988, %v992
          %v995 = vadd.f32 %v989, %v993
          %s996 = sld [smem:[#allocation7 + $0xa]]
          %v997 = vstv %s996
          %v998 = vadd.f32 %v994, %v997
          %v999 = vadd.f32 %v995, %v997
          %v1000 = vmax.f32 %v998, 0.0
          %v1001 = vmax.f32 %v999, 0.0
          %s1002 = sld [smem:[#allocation8 + $0xa]]
          %v1003 = vstv %s1002
          %v1004 = vmul.f32 %v1000, %v1003
          %v1005 = vmul.f32 %v1001, %v1003
          %v1006 = vadd.f32 %v960, %v1004
          %v1007 = vadd.f32 %v961, %v1005
          %s1008 = sld [smem:[#allocation8 + $0x2a]]
          %v1009 = vstv %s1008
          %v1010 = vmul.f32 %v1000, %v1009
          %v1011 = vmul.f32 %v1001, %v1009
          %v1012 = vadd.f32 %v966, %v1010
          %v1013 = vadd.f32 %v967, %v1011
          %s1014 = sld [smem:[#allocation8 + $0x4a]]
          %v1015 = vstv %s1014
          %v1016 = vmul.f32 %v1000, %v1015
          %v1017 = vmul.f32 %v1001, %v1015
          %v1018 = vadd.f32 %v972, %v1016
          %v1019 = vadd.f32 %v973, %v1017
          %s1020 = sld [smem:[#allocation6 + $0x2c]]
          %v1021 = vstv %s1020
          %v1022 = vmul.f32 %v315, %v1021
          %v1023 = vmul.f32 %v316, %v1021
          %s1024 = sld [smem:[#allocation6 + $0x2d]]
          %v1025 = vstv %s1024
          %v1026 = vmul.f32 %v318, %v1025
          %v1027 = vmul.f32 %v319, %v1025
          %v1028 = vadd.f32 %v1022, %v1026
          %v1029 = vadd.f32 %v1023, %v1027
          %s1030 = sld [smem:[#allocation6 + $0x2e]]
          %v1031 = vstv %s1030
          %v1032 = vmul.f32 %v321, %v1031
          %v1033 = vmul.f32 %v322, %v1031
          %v1034 = vadd.f32 %v1028, %v1032
          %v1035 = vadd.f32 %v1029, %v1033
          %s1036 = sld [smem:[#allocation6 + $0x2f]]
          %v1037 = vstv %s1036
          %v1038 = vmul.f32 %v399, %v1037
          %v1039 = vmul.f32 %v400, %v1037
          %v1040 = vadd.f32 %v1034, %v1038
          %v1041 = vadd.f32 %v1035, %v1039
          %s1042 = sld [smem:[#allocation7 + $0xb]]
          %v1043 = vstv %s1042
          %v1044 = vadd.f32 %v1040, %v1043
          %v1045 = vadd.f32 %v1041, %v1043
          %v1046 = vmax.f32 %v1044, 0.0
          %v1047 = vmax.f32 %v1045, 0.0
          %s1048 = sld [smem:[#allocation8 + $0xb]]
          %v1049 = vstv %s1048
          %v1050 = vmul.f32 %v1046, %v1049
          %v1051 = vmul.f32 %v1047, %v1049
          %v1052 = vadd.f32 %v1006, %v1050
          %v1053 = vadd.f32 %v1007, %v1051
          %s1054 = sld [smem:[#allocation8 + $0x2b]]
          %v1055 = vstv %s1054
          %v1056 = vmul.f32 %v1046, %v1055
          %v1057 = vmul.f32 %v1047, %v1055
          %v1058 = vadd.f32 %v1012, %v1056
          %v1059 = vadd.f32 %v1013, %v1057
          %s1060 = sld [smem:[#allocation8 + $0x4b]]
          %v1061 = vstv %s1060
          %v1062 = vmul.f32 %v1046, %v1061
          %v1063 = vmul.f32 %v1047, %v1061
          %v1064 = vadd.f32 %v1018, %v1062
          %v1065 = vadd.f32 %v1019, %v1063
          %s1066 = sld [smem:[#allocation6 + $0x30]]
          %v1067 = vstv %s1066
          %v1068 = vmul.f32 %v315, %v1067
          %v1069 = vmul.f32 %v316, %v1067
          %s1070 = sld [smem:[#allocation6 + $0x31]]
          %v1071 = vstv %s1070
          %v1072 = vmul.f32 %v318, %v1071
          %v1073 = vmul.f32 %v319, %v1071
          %v1074 = vadd.f32 %v1068, %v1072
          %v1075 = vadd.f32 %v1069, %v1073
          %s1076 = sld [smem:[#allocation6 + $0x32]]
          %v1077 = vstv %s1076
          %v1078 = vmul.f32 %v321, %v1077
          %v1079 = vmul.f32 %v322, %v1077
          %v1080 = vadd.f32 %v1074, %v1078
          %v1081 = vadd.f32 %v1075, %v1079
          %s1082 = sld [smem:[#allocation6 + $0x33]]
          %v1083 = vstv %s1082
          %v1084 = vmul.f32 %v399, %v1083
          %v1085 = vmul.f32 %v400, %v1083
          %v1086 = vadd.f32 %v1080, %v1084
          %v1087 = vadd.f32 %v1081, %v1085
          %s1088 = sld [smem:[#allocation7 + $0xc]]
          %v1089 = vstv %s1088
          %v1090 = vadd.f32 %v1086, %v1089
          %v1091 = vadd.f32 %v1087, %v1089
          %v1092 = vmax.f32 %v1090, 0.0
          %v1093 = vmax.f32 %v1091, 0.0
          %s1094 = sld [smem:[#allocation8 + $0xc]]
          %v1095 = vstv %s1094
          %v1096 = vmul.f32 %v1092, %v1095
          %v1097 = vmul.f32 %v1093, %v1095
          %v1098 = vadd.f32 %v1052, %v1096
          %v1099 = vadd.f32 %v1053, %v1097
          %s1100 = sld [smem:[#allocation8 + $0x2c]]
          %v1101 = vstv %s1100
          %v1102 = vmul.f32 %v1092, %v1101
          %v1103 = vmul.f32 %v1093, %v1101
          %v1104 = vadd.f32 %v1058, %v1102
          %v1105 = vadd.f32 %v1059, %v1103
          %s1106 = sld [smem:[#allocation8 + $0x4c]]
          %v1107 = vstv %s1106
          %v1108 = vmul.f32 %v1092, %v1107
          %v1109 = vmul.f32 %v1093, %v1107
          %v1110 = vadd.f32 %v1064, %v1108
          %v1111 = vadd.f32 %v1065, %v1109
          %s1112 = sld [smem:[#allocation6 + $0x34]]
          %v1113 = vstv %s1112
          %v1114 = vmul.f32 %v315, %v1113
          %v1115 = vmul.f32 %v316, %v1113
          %s1116 = sld [smem:[#allocation6 + $0x35]]
          %v1117 = vstv %s1116
          %v1118 = vmul.f32 %v318, %v1117
          %v1119 = vmul.f32 %v319, %v1117
          %v1120 = vadd.f32 %v1114, %v1118
          %v1121 = vadd.f32 %v1115, %v1119
          %s1122 = sld [smem:[#allocation6 + $0x36]]
          %v1123 = vstv %s1122
          %v1124 = vmul.f32 %v321, %v1123
          %v1125 = vmul.f32 %v322, %v1123
          %v1126 = vadd.f32 %v1120, %v1124
          %v1127 = vadd.f32 %v1121, %v1125
          %s1128 = sld [smem:[#allocation6 + $0x37]]
          %v1129 = vstv %s1128
          %v1130 = vmul.f32 %v399, %v1129
          %v1131 = vmul.f32 %v400, %v1129
          %v1132 = vadd.f32 %v1126, %v1130
          %v1133 = vadd.f32 %v1127, %v1131
          %s1134 = sld [smem:[#allocation7 + $0xd]]
          %v1135 = vstv %s1134
          %v1136 = vadd.f32 %v1132, %v1135
          %v1137 = vadd.f32 %v1133, %v1135
          %v1138 = vmax.f32 %v1136, 0.0
          %v1139 = vmax.f32 %v1137, 0.0
          %s1140 = sld [smem:[#allocation8 + $0xd]]
          %v1141 = vstv %s1140
          %v1142 = vmul.f32 %v1138, %v1141
          %v1143 = vmul.f32 %v1139, %v1141
          %v1144 = vadd.f32 %v1098, %v1142
          %v1145 = vadd.f32 %v1099, %v1143
          %s1146 = sld [smem:[#allocation8 + $0x2d]]
          %v1147 = vstv %s1146
          %v1148 = vmul.f32 %v1138, %v1147
          %v1149 = vmul.f32 %v1139, %v1147
          %v1150 = vadd.f32 %v1104, %v1148
          %v1151 = vadd.f32 %v1105, %v1149
          %s1152 = sld [smem:[#allocation8 + $0x4d]]
          %v1153 = vstv %s1152
          %v1154 = vmul.f32 %v1138, %v1153
          %v1155 = vmul.f32 %v1139, %v1153
          %v1156 = vadd.f32 %v1110, %v1154
          %v1157 = vadd.f32 %v1111, %v1155
          %s1158 = sld [smem:[#allocation6 + $0x38]]
          %v1159 = vstv %s1158
          %v1160 = vmul.f32 %v315, %v1159
          %v1161 = vmul.f32 %v316, %v1159
          %s1162 = sld [smem:[#allocation6 + $0x39]]
          %v1163 = vstv %s1162
          %v1164 = vmul.f32 %v318, %v1163
          %v1165 = vmul.f32 %v319, %v1163
          %v1166 = vadd.f32 %v1160, %v1164
          %v1167 = vadd.f32 %v1161, %v1165
          %s1168 = sld [smem:[#allocation6 + $0x3a]]
          %v1169 = vstv %s1168
          %v1170 = vmul.f32 %v321, %v1169
          %v1171 = vmul.f32 %v322, %v1169
          %v1172 = vadd.f32 %v1166, %v1170
          %v1173 = vadd.f32 %v1167, %v1171
          %s1174 = sld [smem:[#allocation6 + $0x3b]]
          %v1175 = vstv %s1174
          %v1176 = vmul.f32 %v399, %v1175
          %v1177 = vmul.f32 %v400, %v1175
          %v1178 = vadd.f32 %v1172, %v1176
          %v1179 = vadd.f32 %v1173, %v1177
          %s1180 = sld [smem:[#allocation7 + $0xe]]
          %v1181 = vstv %s1180
          %v1182 = vadd.f32 %v1178, %v1181
          %v1183 = vadd.f32 %v1179, %v1181
          %v1184 = vmax.f32 %v1182, 0.0
          %v1185 = vmax.f32 %v1183, 0.0
          %s1186 = sld [smem:[#allocation8 + $0xe]]
          %v1187 = vstv %s1186
          %v1188 = vmul.f32 %v1184, %v1187
          %v1189 = vmul.f32 %v1185, %v1187
          %v1190 = vadd.f32 %v1144, %v1188
          %v1191 = vadd.f32 %v1145, %v1189
          %s1192 = sld [smem:[#allocation8 + $0x2e]]
          %v1193 = vstv %s1192
          %v1194 = vmul.f32 %v1184, %v1193
          %v1195 = vmul.f32 %v1185, %v1193
          %v1196 = vadd.f32 %v1150, %v1194
          %v1197 = vadd.f32 %v1151, %v1195
          %s1198 = sld [smem:[#allocation8 + $0x4e]]
          %v1199 = vstv %s1198
          %v1200 = vmul.f32 %v1184, %v1199
          %v1201 = vmul.f32 %v1185, %v1199
          %v1202 = vadd.f32 %v1156, %v1200
          %v1203 = vadd.f32 %v1157, %v1201
          %s1204 = sld [smem:[#allocation6 + $0x3c]]
          %v1205 = vstv %s1204
          %v1206 = vmul.f32 %v315, %v1205
          %v1207 = vmul.f32 %v316, %v1205
          %s1208 = sld [smem:[#allocation6 + $0x3d]]
          %v1209 = vstv %s1208
          %v1210 = vmul.f32 %v318, %v1209
          %v1211 = vmul.f32 %v319, %v1209
          %v1212 = vadd.f32 %v1206, %v1210
          %v1213 = vadd.f32 %v1207, %v1211
          %s1214 = sld [smem:[#allocation6 + $0x3e]]
          %v1215 = vstv %s1214
          %v1216 = vmul.f32 %v321, %v1215
          %v1217 = vmul.f32 %v322, %v1215
          %v1218 = vadd.f32 %v1212, %v1216
          %v1219 = vadd.f32 %v1213, %v1217
          %s1220 = sld [smem:[#allocation6 + $0x3f]]
          %v1221 = vstv %s1220
          %v1222 = vmul.f32 %v399, %v1221
          %v1223 = vmul.f32 %v400, %v1221
          %v1224 = vadd.f32 %v1218, %v1222
          %v1225 = vadd.f32 %v1219, %v1223
          %s1226 = sld [smem:[#allocation7 + $0xf]]
          %v1227 = vstv %s1226
          %v1228 = vadd.f32 %v1224, %v1227
          %v1229 = vadd.f32 %v1225, %v1227
          %v1230 = vmax.f32 %v1228, 0.0
          %v1231 = vmax.f32 %v1229, 0.0
          %s1232 = sld [smem:[#allocation8 + $0xf]]
          %v1233 = vstv %s1232
          %v1234 = vmul.f32 %v1230, %v1233
          %v1235 = vmul.f32 %v1231, %v1233
          %v1236 = vadd.f32 %v1190, %v1234
          %v1237 = vadd.f32 %v1191, %v1235
          %s1238 = sld [smem:[#allocation8 + $0x2f]]
          %v1239 = vstv %s1238
          %v1240 = vmul.f32 %v1230, %v1239
          %v1241 = vmul.f32 %v1231, %v1239
          %v1242 = vadd.f32 %v1196, %v1240
          %v1243 = vadd.f32 %v1197, %v1241
          %s1244 = sld [smem:[#allocation8 + $0x4f]]
          %v1245 = vstv %s1244
          %v1246 = vmul.f32 %v1230, %v1245
          %v1247 = vmul.f32 %v1231, %v1245
          %v1248 = vadd.f32 %v1202, %v1246
          %v1249 = vadd.f32 %v1203, %v1247
          %s1250 = sld [smem:[#allocation6 + $0x40]]
          %v1251 = vstv %s1250
          %v1252 = vmul.f32 %v315, %v1251
          %v1253 = vmul.f32 %v316, %v1251
          %s1254 = sld [smem:[#allocation6 + $0x41]]
          %v1255 = vstv %s1254
          %v1256 = vmul.f32 %v318, %v1255
          %v1257 = vmul.f32 %v319, %v1255
          %v1258 = vadd.f32 %v1252, %v1256
          %v1259 = vadd.f32 %v1253, %v1257
          %s1260 = sld [smem:[#allocation6 + $0x42]]
          %v1261 = vstv %s1260
          %v1262 = vmul.f32 %v321, %v1261
          %v1263 = vmul.f32 %v322, %v1261
          %v1264 = vadd.f32 %v1258, %v1262
          %v1265 = vadd.f32 %v1259, %v1263
          %s1266 = sld [smem:[#allocation6 + $0x43]]
          %v1267 = vstv %s1266
          %v1268 = vmul.f32 %v399, %v1267
          %v1269 = vmul.f32 %v400, %v1267
          %v1270 = vadd.f32 %v1264, %v1268
          %v1271 = vadd.f32 %v1265, %v1269
          %s1272 = sld [smem:[#allocation7 + $0x10]]
          %v1273 = vstv %s1272
          %v1274 = vadd.f32 %v1270, %v1273
          %v1275 = vadd.f32 %v1271, %v1273
          %v1276 = vmax.f32 %v1274, 0.0
          %v1277 = vmax.f32 %v1275, 0.0
          %s1278 = sld [smem:[#allocation8 + $0x10]]
          %v1279 = vstv %s1278
          %v1280 = vmul.f32 %v1276, %v1279
          %v1281 = vmul.f32 %v1277, %v1279
          %v1282 = vadd.f32 %v1236, %v1280
          %v1283 = vadd.f32 %v1237, %v1281
          %s1284 = sld [smem:[#allocation8 + $0x30]]
          %v1285 = vstv %s1284
          %v1286 = vmul.f32 %v1276, %v1285
          %v1287 = vmul.f32 %v1277, %v1285
          %v1288 = vadd.f32 %v1242, %v1286
          %v1289 = vadd.f32 %v1243, %v1287
          %s1290 = sld [smem:[#allocation8 + $0x50]]
          %v1291 = vstv %s1290
          %v1292 = vmul.f32 %v1276, %v1291
          %v1293 = vmul.f32 %v1277, %v1291
          %v1294 = vadd.f32 %v1248, %v1292
          %v1295 = vadd.f32 %v1249, %v1293
          %s1296 = sld [smem:[#allocation6 + $0x44]]
          %v1297 = vstv %s1296
          %v1298 = vmul.f32 %v315, %v1297
          %v1299 = vmul.f32 %v316, %v1297
          %s1300 = sld [smem:[#allocation6 + $0x45]]
          %v1301 = vstv %s1300
          %v1302 = vmul.f32 %v318, %v1301
          %v1303 = vmul.f32 %v319, %v1301
          %v1304 = vadd.f32 %v1298, %v1302
          %v1305 = vadd.f32 %v1299, %v1303
          %s1306 = sld [smem:[#allocation6 + $0x46]]
          %v1307 = vstv %s1306
          %v1308 = vmul.f32 %v321, %v1307
          %v1309 = vmul.f32 %v322, %v1307
          %v1310 = vadd.f32 %v1304, %v1308
          %v1311 = vadd.f32 %v1305, %v1309
          %s1312 = sld [smem:[#allocation6 + $0x47]]
          %v1313 = vstv %s1312
          %v1314 = vmul.f32 %v399, %v1313
          %v1315 = vmul.f32 %v400, %v1313
          %v1316 = vadd.f32 %v1310, %v1314
          %v1317 = vadd.f32 %v1311, %v1315
          %s1318 = sld [smem:[#allocation7 + $0x11]]
          %v1319 = vstv %s1318
          %v1320 = vadd.f32 %v1316, %v1319
          %v1321 = vadd.f32 %v1317, %v1319
          %v1322 = vmax.f32 %v1320, 0.0
          %v1323 = vmax.f32 %v1321, 0.0
          %s1324 = sld [smem:[#allocation8 + $0x11]]
          %v1325 = vstv %s1324
          %v1326 = vmul.f32 %v1322, %v1325
          %v1327 = vmul.f32 %v1323, %v1325
          %v1328 = vadd.f32 %v1282, %v1326
          %v1329 = vadd.f32 %v1283, %v1327
          %s1330 = sld [smem:[#allocation8 + $0x31]]
          %v1331 = vstv %s1330
          %v1332 = vmul.f32 %v1322, %v1331
          %v1333 = vmul.f32 %v1323, %v1331
          %v1334 = vadd.f32 %v1288, %v1332
          %v1335 = vadd.f32 %v1289, %v1333
          %s1336 = sld [smem:[#allocation8 + $0x51]]
          %v1337 = vstv %s1336
          %v1338 = vmul.f32 %v1322, %v1337
          %v1339 = vmul.f32 %v1323, %v1337
          %v1340 = vadd.f32 %v1294, %v1338
          %v1341 = vadd.f32 %v1295, %v1339
          %s1342 = sld [smem:[#allocation6 + $0x48]]
          %v1343 = vstv %s1342
          %v1344 = vmul.f32 %v315, %v1343
          %v1345 = vmul.f32 %v316, %v1343
          %s1346 = sld [smem:[#allocation6 + $0x49]]
          %v1347 = vstv %s1346
          %v1348 = vmul.f32 %v318, %v1347
          %v1349 = vmul.f32 %v319, %v1347
          %v1350 = vadd.f32 %v1344, %v1348
          %v1351 = vadd.f32 %v1345, %v1349
          %s1352 = sld [smem:[#allocation6 + $0x4a]]
          %v1353 = vstv %s1352
          %v1354 = vmul.f32 %v321, %v1353
          %v1355 = vmul.f32 %v322, %v1353
          %v1356 = vadd.f32 %v1350, %v1354
          %v1357 = vadd.f32 %v1351, %v1355
          %s1358 = sld [smem:[#allocation6 + $0x4b]]
          %v1359 = vstv %s1358
          %v1360 = vmul.f32 %v399, %v1359
          %v1361 = vmul.f32 %v400, %v1359
          %v1362 = vadd.f32 %v1356, %v1360
          %v1363 = vadd.f32 %v1357, %v1361
          %s1364 = sld [smem:[#allocation7 + $0x12]]
          %v1365 = vstv %s1364
          %v1366 = vadd.f32 %v1362, %v1365
          %v1367 = vadd.f32 %v1363, %v1365
          %v1368 = vmax.f32 %v1366, 0.0
          %v1369 = vmax.f32 %v1367, 0.0
          %s1370 = sld [smem:[#allocation8 + $0x12]]
          %v1371 = vstv %s1370
          %v1372 = vmul.f32 %v1368, %v1371
          %v1373 = vmul.f32 %v1369, %v1371
          %v1374 = vadd.f32 %v1328, %v1372
          %v1375 = vadd.f32 %v1329, %v1373
          %s1376 = sld [smem:[#allocation8 + $0x32]]
          %v1377 = vstv %s1376
          %v1378 = vmul.f32 %v1368, %v1377
          %v1379 = vmul.f32 %v1369, %v1377
          %v1380 = vadd.f32 %v1334, %v1378
          %v1381 = vadd.f32 %v1335, %v1379
          %s1382 = sld [smem:[#allocation8 + $0x52]]
          %v1383 = vstv %s1382
          %v1384 = vmul.f32 %v1368, %v1383
          %v1385 = vmul.f32 %v1369, %v1383
          %v1386 = vadd.f32 %v1340, %v1384
          %v1387 = vadd.f32 %v1341, %v1385
          %s1388 = sld [smem:[#allocation6 + $0x4c]]
          %v1389 = vstv %s1388
          %v1390 = vmul.f32 %v315, %v1389
          %v1391 = vmul.f32 %v316, %v1389
          %s1392 = sld [smem:[#allocation6 + $0x4d]]
          %v1393 = vstv %s1392
          %v1394 = vmul.f32 %v318, %v1393
          %v1395 = vmul.f32 %v319, %v1393
          %v1396 = vadd.f32 %v1390, %v1394
          %v1397 = vadd.f32 %v1391, %v1395
          %s1398 = sld [smem:[#allocation6 + $0x4e]]
          %v1399 = vstv %s1398
          %v1400 = vmul.f32 %v321, %v1399
          %v1401 = vmul.f32 %v322, %v1399
          %v1402 = vadd.f32 %v1396, %v1400
          %v1403 = vadd.f32 %v1397, %v1401
          %s1404 = sld [smem:[#allocation6 + $0x4f]]
          %v1405 = vstv %s1404
          %v1406 = vmul.f32 %v399, %v1405
          %v1407 = vmul.f32 %v400, %v1405
          %v1408 = vadd.f32 %v1402, %v1406
          %v1409 = vadd.f32 %v1403, %v1407
          %s1410 = sld [smem:[#allocation7 + $0x13]]
          %v1411 = vstv %s1410
          %v1412 = vadd.f32 %v1408, %v1411
          %v1413 = vadd.f32 %v1409, %v1411
          %v1414 = vmax.f32 %v1412, 0.0
          %v1415 = vmax.f32 %v1413, 0.0
          %s1416 = sld [smem:[#allocation8 + $0x13]]
          %v1417 = vstv %s1416
          %v1418 = vmul.f32 %v1414, %v1417
          %v1419 = vmul.f32 %v1415, %v1417
          %v1420 = vadd.f32 %v1374, %v1418
          %v1421 = vadd.f32 %v1375, %v1419
          %s1422 = sld [smem:[#allocation8 + $0x33]]
          %v1423 = vstv %s1422
          %v1424 = vmul.f32 %v1414, %v1423
          %v1425 = vmul.f32 %v1415, %v1423
          %v1426 = vadd.f32 %v1380, %v1424
          %v1427 = vadd.f32 %v1381, %v1425
          %s1428 = sld [smem:[#allocation8 + $0x53]]
          %v1429 = vstv %s1428
          %v1430 = vmul.f32 %v1414, %v1429
          %v1431 = vmul.f32 %v1415, %v1429
          %v1432 = vadd.f32 %v1386, %v1430
          %v1433 = vadd.f32 %v1387, %v1431
          %s1434 = sld [smem:[#allocation6 + $0x50]]
          %v1435 = vstv %s1434
          %v1436 = vmul.f32 %v315, %v1435
          %v1437 = vmul.f32 %v316, %v1435
          %s1438 = sld [smem:[#allocation6 + $0x51]]
          %v1439 = vstv %s1438
          %v1440 = vmul.f32 %v318, %v1439
          %v1441 = vmul.f32 %v319, %v1439
          %v1442 = vadd.f32 %v1436, %v1440
          %v1443 = vadd.f32 %v1437, %v1441
          %s1444 = sld [smem:[#allocation6 + $0x52]]
          %v1445 = vstv %s1444
          %v1446 = vmul.f32 %v321, %v1445
          %v1447 = vmul.f32 %v322, %v1445
          %v1448 = vadd.f32 %v1442, %v1446
          %v1449 = vadd.f32 %v1443, %v1447
          %s1450 = sld [smem:[#allocation6 + $0x53]]
          %v1451 = vstv %s1450
          %v1452 = vmul.f32 %v399, %v1451
          %v1453 = vmul.f32 %v400, %v1451
          %v1454 = vadd.f32 %v1448, %v1452
          %v1455 = vadd.f32 %v1449, %v1453
          %s1456 = sld [smem:[#allocation7 + $0x14]]
          %v1457 = vstv %s1456
          %v1458 = vadd.f32 %v1454, %v1457
          %v1459 = vadd.f32 %v1455, %v1457
          %v1460 = vmax.f32 %v1458, 0.0
          %v1461 = vmax.f32 %v1459, 0.0
          %s1462 = sld [smem:[#allocation8 + $0x14]]
          %v1463 = vstv %s1462
          %v1464 = vmul.f32 %v1460, %v1463
          %v1465 = vmul.f32 %v1461, %v1463
          %v1466 = vadd.f32 %v1420, %v1464
          %v1467 = vadd.f32 %v1421, %v1465
          %s1468 = sld [smem:[#allocation8 + $0x34]]
          %v1469 = vstv %s1468
          %v1470 = vmul.f32 %v1460, %v1469
          %v1471 = vmul.f32 %v1461, %v1469
          %v1472 = vadd.f32 %v1426, %v1470
          %v1473 = vadd.f32 %v1427, %v1471
          %s1474 = sld [smem:[#allocation8 + $0x54]]
          %v1475 = vstv %s1474
          %v1476 = vmul.f32 %v1460, %v1475
          %v1477 = vmul.f32 %v1461, %v1475
          %v1478 = vadd.f32 %v1432, %v1476
          %v1479 = vadd.f32 %v1433, %v1477
          %s1480 = sld [smem:[#allocation6 + $0x54]]
          %v1481 = vstv %s1480
          %v1482 = vmul.f32 %v315, %v1481
          %v1483 = vmul.f32 %v316, %v1481
          %s1484 = sld [smem:[#allocation6 + $0x55]]
          %v1485 = vstv %s1484
          %v1486 = vmul.f32 %v318, %v1485
          %v1487 = vmul.f32 %v319, %v1485
          %v1488 = vadd.f32 %v1482, %v1486
          %v1489 = vadd.f32 %v1483, %v1487
          %s1490 = sld [smem:[#allocation6 + $0x56]]
          %v1491 = vstv %s1490
          %v1492 = vmul.f32 %v321, %v1491
          %v1493 = vmul.f32 %v322, %v1491
          %v1494 = vadd.f32 %v1488, %v1492
          %v1495 = vadd.f32 %v1489, %v1493
          %s1496 = sld [smem:[#allocation6 + $0x57]]
          %v1497 = vstv %s1496
          %v1498 = vmul.f32 %v399, %v1497
          %v1499 = vmul.f32 %v400, %v1497
          %v1500 = vadd.f32 %v1494, %v1498
          %v1501 = vadd.f32 %v1495, %v1499
          %s1502 = sld [smem:[#allocation7 + $0x15]]
          %v1503 = vstv %s1502
          %v1504 = vadd.f32 %v1500, %v1503
          %v1505 = vadd.f32 %v1501, %v1503
          %v1506 = vmax.f32 %v1504, 0.0
          %v1507 = vmax.f32 %v1505, 0.0
          %s1508 = sld [smem:[#allocation8 + $0x15]]
          %v1509 = vstv %s1508
          %v1510 = vmul.f32 %v1506, %v1509
          %v1511 = vmul.f32 %v1507, %v1509
          %v1512 = vadd.f32 %v1466, %v1510
          %v1513 = vadd.f32 %v1467, %v1511
          %s1514 = sld [smem:[#allocation8 + $0x35]]
          %v1515 = vstv %s1514
          %v1516 = vmul.f32 %v1506, %v1515
          %v1517 = vmul.f32 %v1507, %v1515
          %v1518 = vadd.f32 %v1472, %v1516
          %v1519 = vadd.f32 %v1473, %v1517
          %s1520 = sld [smem:[#allocation8 + $0x55]]
          %v1521 = vstv %s1520
          %v1522 = vmul.f32 %v1506, %v1521
          %v1523 = vmul.f32 %v1507, %v1521
          %v1524 = vadd.f32 %v1478, %v1522
          %v1525 = vadd.f32 %v1479, %v1523
          %s1526 = sld [smem:[#allocation6 + $0x58]]
          %v1527 = vstv %s1526
          %v1528 = vmul.f32 %v315, %v1527
          %v1529 = vmul.f32 %v316, %v1527
          %s1530 = sld [smem:[#allocation6 + $0x59]]
          %v1531 = vstv %s1530
          %v1532 = vmul.f32 %v318, %v1531
          %v1533 = vmul.f32 %v319, %v1531
          %v1534 = vadd.f32 %v1528, %v1532
          %v1535 = vadd.f32 %v1529, %v1533
          %s1536 = sld [smem:[#allocation6 + $0x5a]]
          %v1537 = vstv %s1536
          %v1538 = vmul.f32 %v321, %v1537
          %v1539 = vmul.f32 %v322, %v1537
          %v1540 = vadd.f32 %v1534, %v1538
          %v1541 = vadd.f32 %v1535, %v1539
          %s1542 = sld [smem:[#allocation6 + $0x5b]]
          %v1543 = vstv %s1542
          %v1544 = vmul.f32 %v399, %v1543
          %v1545 = vmul.f32 %v400, %v1543
          %v1546 = vadd.f32 %v1540, %v1544
          %v1547 = vadd.f32 %v1541, %v1545
          %s1548 = sld [smem:[#allocation7 + $0x16]]
          %v1549 = vstv %s1548
          %v1550 = vadd.f32 %v1546, %v1549
          %v1551 = vadd.f32 %v1547, %v1549
          %v1552 = vmax.f32 %v1550, 0.0
          %v1553 = vmax.f32 %v1551, 0.0
          %s1554 = sld [smem:[#allocation8 + $0x16]]
          %v1555 = vstv %s1554
          %v1556 = vmul.f32 %v1552, %v1555
          %v1557 = vmul.f32 %v1553, %v1555
          %v1558 = vadd.f32 %v1512, %v1556
          %v1559 = vadd.f32 %v1513, %v1557
          %s1560 = sld [smem:[#allocation8 + $0x36]]
          %v1561 = vstv %s1560
          %v1562 = vmul.f32 %v1552, %v1561
          %v1563 = vmul.f32 %v1553, %v1561
          %v1564 = vadd.f32 %v1518, %v1562
          %v1565 = vadd.f32 %v1519, %v1563
          %s1566 = sld [smem:[#allocation8 + $0x56]]
          %v1567 = vstv %s1566
          %v1568 = vmul.f32 %v1552, %v1567
          %v1569 = vmul.f32 %v1553, %v1567
          %v1570 = vadd.f32 %v1524, %v1568
          %v1571 = vadd.f32 %v1525, %v1569
          %s1572 = sld [smem:[#allocation6 + $0x5c]]
          %v1573 = vstv %s1572
          %v1574 = vmul.f32 %v315, %v1573
          %v1575 = vmul.f32 %v316, %v1573
          %s1576 = sld [smem:[#allocation6 + $0x5d]]
          %v1577 = vstv %s1576
          %v1578 = vmul.f32 %v318, %v1577
          %v1579 = vmul.f32 %v319, %v1577
          %v1580 = vadd.f32 %v1574, %v1578
          %v1581 = vadd.f32 %v1575, %v1579
          %s1582 = sld [smem:[#allocation6 + $0x5e]]
          %v1583 = vstv %s1582
          %v1584 = vmul.f32 %v321, %v1583
          %v1585 = vmul.f32 %v322, %v1583
          %v1586 = vadd.f32 %v1580, %v1584
          %v1587 = vadd.f32 %v1581, %v1585
          %s1588 = sld [smem:[#allocation6 + $0x5f]]
          %v1589 = vstv %s1588
          %v1590 = vmul.f32 %v399, %v1589
          %v1591 = vmul.f32 %v400, %v1589
          %v1592 = vadd.f32 %v1586, %v1590
          %v1593 = vadd.f32 %v1587, %v1591
          %s1594 = sld [smem:[#allocation7 + $0x17]]
          %v1595 = vstv %s1594
          %v1596 = vadd.f32 %v1592, %v1595
          %v1597 = vadd.f32 %v1593, %v1595
          %v1598 = vmax.f32 %v1596, 0.0
          %v1599 = vmax.f32 %v1597, 0.0
          %s1600 = sld [smem:[#allocation8 + $0x17]]
          %v1601 = vstv %s1600
          %v1602 = vmul.f32 %v1598, %v1601
          %v1603 = vmul.f32 %v1599, %v1601
          %v1604 = vadd.f32 %v1558, %v1602
          %v1605 = vadd.f32 %v1559, %v1603
          %s1606 = sld [smem:[#allocation8 + $0x37]]
          %v1607 = vstv %s1606
          %v1608 = vmul.f32 %v1598, %v1607
          %v1609 = vmul.f32 %v1599, %v1607
          %v1610 = vadd.f32 %v1564, %v1608
          %v1611 = vadd.f32 %v1565, %v1609
          %s1612 = sld [smem:[#allocation8 + $0x57]]
          %v1613 = vstv %s1612
          %v1614 = vmul.f32 %v1598, %v1613
          %v1615 = vmul.f32 %v1599, %v1613
          %v1616 = vadd.f32 %v1570, %v1614
          %v1617 = vadd.f32 %v1571, %v1615
          %s1618 = sld [smem:[#allocation6 + $0x60]]
          %v1619 = vstv %s1618
          %v1620 = vmul.f32 %v315, %v1619
          %v1621 = vmul.f32 %v316, %v1619
          %s1622 = sld [smem:[#allocation6 + $0x61]]
          %v1623 = vstv %s1622
          %v1624 = vmul.f32 %v318, %v1623
          %v1625 = vmul.f32 %v319, %v1623
          %v1626 = vadd.f32 %v1620, %v1624
          %v1627 = vadd.f32 %v1621, %v1625
          %s1628 = sld [smem:[#allocation6 + $0x62]]
          %v1629 = vstv %s1628
          %v1630 = vmul.f32 %v321, %v1629
          %v1631 = vmul.f32 %v322, %v1629
          %v1632 = vadd.f32 %v1626, %v1630
          %v1633 = vadd.f32 %v1627, %v1631
          %s1634 = sld [smem:[#allocation6 + $0x63]]
          %v1635 = vstv %s1634
          %v1636 = vmul.f32 %v399, %v1635
          %v1637 = vmul.f32 %v400, %v1635
          %v1638 = vadd.f32 %v1632, %v1636
          %v1639 = vadd.f32 %v1633, %v1637
          %s1640 = sld [smem:[#allocation7 + $0x18]]
          %v1641 = vstv %s1640
          %v1642 = vadd.f32 %v1638, %v1641
          %v1643 = vadd.f32 %v1639, %v1641
          %v1644 = vmax.f32 %v1642, 0.0
          %v1645 = vmax.f32 %v1643, 0.0
          %s1646 = sld [smem:[#allocation8 + $0x18]]
          %v1647 = vstv %s1646
          %v1648 = vmul.f32 %v1644, %v1647
          %v1649 = vmul.f32 %v1645, %v1647
          %v1650 = vadd.f32 %v1604, %v1648
          %v1651 = vadd.f32 %v1605, %v1649
          %s1652 = sld [smem:[#allocation8 + $0x38]]
          %v1653 = vstv %s1652
          %v1654 = vmul.f32 %v1644, %v1653
          %v1655 = vmul.f32 %v1645, %v1653
          %v1656 = vadd.f32 %v1610, %v1654
          %v1657 = vadd.f32 %v1611, %v1655
          %s1658 = sld [smem:[#allocation8 + $0x58]]
          %v1659 = vstv %s1658
          %v1660 = vmul.f32 %v1644, %v1659
          %v1661 = vmul.f32 %v1645, %v1659
          %v1662 = vadd.f32 %v1616, %v1660
          %v1663 = vadd.f32 %v1617, %v1661
          %s1664 = sld [smem:[#allocation6 + $0x64]]
          %v1665 = vstv %s1664
          %v1666 = vmul.f32 %v315, %v1665
          %v1667 = vmul.f32 %v316, %v1665
          %s1668 = sld [smem:[#allocation6 + $0x65]]
          %v1669 = vstv %s1668
          %v1670 = vmul.f32 %v318, %v1669
          %v1671 = vmul.f32 %v319, %v1669
          %v1672 = vadd.f32 %v1666, %v1670
          %v1673 = vadd.f32 %v1667, %v1671
          %s1674 = sld [smem:[#allocation6 + $0x66]]
          %v1675 = vstv %s1674
          %v1676 = vmul.f32 %v321, %v1675
          %v1677 = vmul.f32 %v322, %v1675
          %v1678 = vadd.f32 %v1672, %v1676
          %v1679 = vadd.f32 %v1673, %v1677
          %s1680 = sld [smem:[#allocation6 + $0x67]]
          %v1681 = vstv %s1680
          %v1682 = vmul.f32 %v399, %v1681
          %v1683 = vmul.f32 %v400, %v1681
          %v1684 = vadd.f32 %v1678, %v1682
          %v1685 = vadd.f32 %v1679, %v1683
          %s1686 = sld [smem:[#allocation7 + $0x19]]
          %v1687 = vstv %s1686
          %v1688 = vadd.f32 %v1684, %v1687
          %v1689 = vadd.f32 %v1685, %v1687
          %v1690 = vmax.f32 %v1688, 0.0
          %v1691 = vmax.f32 %v1689, 0.0
          %s1692 = sld [smem:[#allocation8 + $0x19]]
          %v1693 = vstv %s1692
          %v1694 = vmul.f32 %v1690, %v1693
          %v1695 = vmul.f32 %v1691, %v1693
          %v1696 = vadd.f32 %v1650, %v1694
          %v1697 = vadd.f32 %v1651, %v1695
          %s1698 = sld [smem:[#allocation8 + $0x39]]
          %v1699 = vstv %s1698
          %v1700 = vmul.f32 %v1690, %v1699
          %v1701 = vmul.f32 %v1691, %v1699
          %v1702 = vadd.f32 %v1656, %v1700
          %v1703 = vadd.f32 %v1657, %v1701
          %s1704 = sld [smem:[#allocation8 + $0x59]]
          %v1705 = vstv %s1704
          %v1706 = vmul.f32 %v1690, %v1705
          %v1707 = vmul.f32 %v1691, %v1705
          %v1708 = vadd.f32 %v1662, %v1706
          %v1709 = vadd.f32 %v1663, %v1707
          %s1710 = sld [smem:[#allocation6 + $0x68]]
          %v1711 = vstv %s1710
          %v1712 = vmul.f32 %v315, %v1711
          %v1713 = vmul.f32 %v316, %v1711
          %s1714 = sld [smem:[#allocation6 + $0x69]]
          %v1715 = vstv %s1714
          %v1716 = vmul.f32 %v318, %v1715
          %v1717 = vmul.f32 %v319, %v1715
          %v1718 = vadd.f32 %v1712, %v1716
          %v1719 = vadd.f32 %v1713, %v1717
          %s1720 = sld [smem:[#allocation6 + $0x6a]]
          %v1721 = vstv %s1720
          %v1722 = vmul.f32 %v321, %v1721
          %v1723 = vmul.f32 %v322, %v1721
          %v1724 = vadd.f32 %v1718, %v1722
          %v1725 = vadd.f32 %v1719, %v1723
          %s1726 = sld [smem:[#allocation6 + $0x6b]]
          %v1727 = vstv %s1726
          %v1728 = vmul.f32 %v399, %v1727
          %v1729 = vmul.f32 %v400, %v1727
          %v1730 = vadd.f32 %v1724, %v1728
          %v1731 = vadd.f32 %v1725, %v1729
          %s1732 = sld [smem:[#allocation7 + $0x1a]]
          %v1733 = vstv %s1732
          %v1734 = vadd.f32 %v1730, %v1733
          %v1735 = vadd.f32 %v1731, %v1733
          %v1736 = vmax.f32 %v1734, 0.0
          %v1737 = vmax.f32 %v1735, 0.0
          %s1738 = sld [smem:[#allocation8 + $0x1a]]
          %v1739 = vstv %s1738
          %v1740 = vmul.f32 %v1736, %v1739
          %v1741 = vmul.f32 %v1737, %v1739
          %v1742 = vadd.f32 %v1696, %v1740
          %v1743 = vadd.f32 %v1697, %v1741
          %s1744 = sld [smem:[#allocation8 + $0x3a]]
          %v1745 = vstv %s1744
          %v1746 = vmul.f32 %v1736, %v1745
          %v1747 = vmul.f32 %v1737, %v1745
          %v1748 = vadd.f32 %v1702, %v1746
          %v1749 = vadd.f32 %v1703, %v1747
          %s1750 = sld [smem:[#allocation8 + $0x5a]]
          %v1751 = vstv %s1750
          %v1752 = vmul.f32 %v1736, %v1751
          %v1753 = vmul.f32 %v1737, %v1751
          %v1754 = vadd.f32 %v1708, %v1752
          %v1755 = vadd.f32 %v1709, %v1753
          %s1756 = sld [smem:[#allocation6 + $0x6c]]
          %v1757 = vstv %s1756
          %v1758 = vmul.f32 %v315, %v1757
          %v1759 = vmul.f32 %v316, %v1757
          %s1760 = sld [smem:[#allocation6 + $0x6d]]
          %v1761 = vstv %s1760
          %v1762 = vmul.f32 %v318, %v1761
          %v1763 = vmul.f32 %v319, %v1761
          %v1764 = vadd.f32 %v1758, %v1762
          %v1765 = vadd.f32 %v1759, %v1763
          %s1766 = sld [smem:[#allocation6 + $0x6e]]
          %v1767 = vstv %s1766
          %v1768 = vmul.f32 %v321, %v1767
          %v1769 = vmul.f32 %v322, %v1767
          %v1770 = vadd.f32 %v1764, %v1768
          %v1771 = vadd.f32 %v1765, %v1769
          %s1772 = sld [smem:[#allocation6 + $0x6f]]
          %v1773 = vstv %s1772
          %v1774 = vmul.f32 %v399, %v1773
          %v1775 = vmul.f32 %v400, %v1773
          %v1776 = vadd.f32 %v1770, %v1774
          %v1777 = vadd.f32 %v1771, %v1775
          %s1778 = sld [smem:[#allocation7 + $0x1b]]
          %v1779 = vstv %s1778
          %v1780 = vadd.f32 %v1776, %v1779
          %v1781 = vadd.f32 %v1777, %v1779
          %v1782 = vmax.f32 %v1780, 0.0
          %v1783 = vmax.f32 %v1781, 0.0
          %s1784 = sld [smem:[#allocation8 + $0x1b]]
          %v1785 = vstv %s1784
          %v1786 = vmul.f32 %v1782, %v1785
          %v1787 = vmul.f32 %v1783, %v1785
          %v1788 = vadd.f32 %v1742, %v1786
          %v1789 = vadd.f32 %v1743, %v1787
          %s1790 = sld [smem:[#allocation8 + $0x3b]]
          %v1791 = vstv %s1790
          %v1792 = vmul.f32 %v1782, %v1791
          %v1793 = vmul.f32 %v1783, %v1791
          %v1794 = vadd.f32 %v1748, %v1792
          %v1795 = vadd.f32 %v1749, %v1793
          %s1796 = sld [smem:[#allocation8 + $0x5b]]
          %v1797 = vstv %s1796
          %v1798 = vmul.f32 %v1782, %v1797
          %v1799 = vmul.f32 %v1783, %v1797
          %v1800 = vadd.f32 %v1754, %v1798
          %v1801 = vadd.f32 %v1755, %v1799
          %s1802 = sld [smem:[#allocation6 + $0x70]]
          %v1803 = vstv %s1802
          %v1804 = vmul.f32 %v315, %v1803
          %v1805 = vmul.f32 %v316, %v1803
          %s1806 = sld [smem:[#allocation6 + $0x71]]
          %v1807 = vstv %s1806
          %v1808 = vmul.f32 %v318, %v1807
          %v1809 = vmul.f32 %v319, %v1807
          %v1810 = vadd.f32 %v1804, %v1808
          %v1811 = vadd.f32 %v1805, %v1809
          %s1812 = sld [smem:[#allocation6 + $0x72]]
          %v1813 = vstv %s1812
          %v1814 = vmul.f32 %v321, %v1813
          %v1815 = vmul.f32 %v322, %v1813
          %v1816 = vadd.f32 %v1810, %v1814
          %v1817 = vadd.f32 %v1811, %v1815
          %s1818 = sld [smem:[#allocation6 + $0x73]]
          %v1819 = vstv %s1818
          %v1820 = vmul.f32 %v399, %v1819
          %v1821 = vmul.f32 %v400, %v1819
          %v1822 = vadd.f32 %v1816, %v1820
          %v1823 = vadd.f32 %v1817, %v1821
          %s1824 = sld [smem:[#allocation7 + $0x1c]]
          %v1825 = vstv %s1824
          %v1826 = vadd.f32 %v1822, %v1825
          %v1827 = vadd.f32 %v1823, %v1825
          %v1828 = vmax.f32 %v1826, 0.0
          %v1829 = vmax.f32 %v1827, 0.0
          %s1830 = sld [smem:[#allocation8 + $0x1c]]
          %v1831 = vstv %s1830
          %v1832 = vmul.f32 %v1828, %v1831
          %v1833 = vmul.f32 %v1829, %v1831
          %v1834 = vadd.f32 %v1788, %v1832
          %v1835 = vadd.f32 %v1789, %v1833
          %s1836 = sld [smem:[#allocation8 + $0x3c]]
          %v1837 = vstv %s1836
          %v1838 = vmul.f32 %v1828, %v1837
          %v1839 = vmul.f32 %v1829, %v1837
          %v1840 = vadd.f32 %v1794, %v1838
          %v1841 = vadd.f32 %v1795, %v1839
          %s1842 = sld [smem:[#allocation8 + $0x5c]]
          %v1843 = vstv %s1842
          %v1844 = vmul.f32 %v1828, %v1843
          %v1845 = vmul.f32 %v1829, %v1843
          %v1846 = vadd.f32 %v1800, %v1844
          %v1847 = vadd.f32 %v1801, %v1845
          %s1848 = sld [smem:[#allocation6 + $0x74]]
          %v1849 = vstv %s1848
          %v1850 = vmul.f32 %v315, %v1849
          %v1851 = vmul.f32 %v316, %v1849
          %s1852 = sld [smem:[#allocation6 + $0x75]]
          %v1853 = vstv %s1852
          %v1854 = vmul.f32 %v318, %v1853
          %v1855 = vmul.f32 %v319, %v1853
          %v1856 = vadd.f32 %v1850, %v1854
          %v1857 = vadd.f32 %v1851, %v1855
          %s1858 = sld [smem:[#allocation6 + $0x76]]
          %v1859 = vstv %s1858
          %v1860 = vmul.f32 %v321, %v1859
          %v1861 = vmul.f32 %v322, %v1859
          %v1862 = vadd.f32 %v1856, %v1860
          %v1863 = vadd.f32 %v1857, %v1861
          %s1864 = sld [smem:[#allocation6 + $0x77]]
          %v1865 = vstv %s1864
          %v1866 = vmul.f32 %v399, %v1865
          %v1867 = vmul.f32 %v400, %v1865
          %v1868 = vadd.f32 %v1862, %v1866
          %v1869 = vadd.f32 %v1863, %v1867
          %s1870 = sld [smem:[#allocation7 + $0x1d]]
          %v1871 = vstv %s1870
          %v1872 = vadd.f32 %v1868, %v1871
          %v1873 = vadd.f32 %v1869, %v1871
          %v1874 = vmax.f32 %v1872, 0.0
          %v1875 = vmax.f32 %v1873, 0.0
          %s1876 = sld [smem:[#allocation8 + $0x1d]]
          %v1877 = vstv %s1876
          %v1878 = vmul.f32 %v1874, %v1877
          %v1879 = vmul.f32 %v1875, %v1877
          %v1880 = vadd.f32 %v1834, %v1878
          %v1881 = vadd.f32 %v1835, %v1879
          %s1882 = sld [smem:[#allocation8 + $0x3d]]
          %v1883 = vstv %s1882
          %v1884 = vmul.f32 %v1874, %v1883
          %v1885 = vmul.f32 %v1875, %v1883
          %v1886 = vadd.f32 %v1840, %v1884
          %v1887 = vadd.f32 %v1841, %v1885
          %s1888 = sld [smem:[#allocation8 + $0x5d]]
          %v1889 = vstv %s1888
          %v1890 = vmul.f32 %v1874, %v1889
          %v1891 = vmul.f32 %v1875, %v1889
          %v1892 = vadd.f32 %v1846, %v1890
          %v1893 = vadd.f32 %v1847, %v1891
          %s1894 = sld [smem:[#allocation6 + $0x78]]
          %v1895 = vstv %s1894
          %v1896 = vmul.f32 %v315, %v1895
          %v1897 = vmul.f32 %v316, %v1895
          %s1898 = sld [smem:[#allocation6 + $0x79]]
          %v1899 = vstv %s1898
          %v1900 = vmul.f32 %v318, %v1899
          %v1901 = vmul.f32 %v319, %v1899
          %v1902 = vadd.f32 %v1896, %v1900
          %v1903 = vadd.f32 %v1897, %v1901
          %s1904 = sld [smem:[#allocation6 + $0x7a]]
          %v1905 = vstv %s1904
          %v1906 = vmul.f32 %v321, %v1905
          %v1907 = vmul.f32 %v322, %v1905
          %v1908 = vadd.f32 %v1902, %v1906
          %v1909 = vadd.f32 %v1903, %v1907
          %s1910 = sld [smem:[#allocation6 + $0x7b]]
          %v1911 = vstv %s1910
          %v1912 = vmul.f32 %v399, %v1911
          %v1913 = vmul.f32 %v400, %v1911
          %v1914 = vadd.f32 %v1908, %v1912
          %v1915 = vadd.f32 %v1909, %v1913
          %s1916 = sld [smem:[#allocation7 + $0x1e]]
          %v1917 = vstv %s1916
          %v1918 = vadd.f32 %v1914, %v1917
          %v1919 = vadd.f32 %v1915, %v1917
          %v1920 = vmax.f32 %v1918, 0.0
          %v1921 = vmax.f32 %v1919, 0.0
          %s1922 = sld [smem:[#allocation8 + $0x1e]]
          %v1923 = vstv %s1922
          %v1924 = vmul.f32 %v1920, %v1923
          %v1925 = vmul.f32 %v1921, %v1923
          %v1926 = vadd.f32 %v1880, %v1924
          %v1927 = vadd.f32 %v1881, %v1925
          %s1928 = sld [smem:[#allocation8 + $0x3e]]
          %v1929 = vstv %s1928
          %v1930 = vmul.f32 %v1920, %v1929
          %v1931 = vmul.f32 %v1921, %v1929
          %v1932 = vadd.f32 %v1886, %v1930
          %v1933 = vadd.f32 %v1887, %v1931
          %s1934 = sld [smem:[#allocation8 + $0x5e]]
          %v1935 = vstv %s1934
          %v1936 = vmul.f32 %v1920, %v1935
          %v1937 = vmul.f32 %v1921, %v1935
          %v1938 = vadd.f32 %v1892, %v1936
          %v1939 = vadd.f32 %v1893, %v1937
          %s1940 = sld [smem:[#allocation6 + $0x7c]]
          %v1941 = vstv %s1940
          %v1942 = vmul.f32 %v315, %v1941
          %v1943 = vmul.f32 %v316, %v1941
          %s1944 = sld [smem:[#allocation6 + $0x7d]]
          %v1945 = vstv %s1944
          %v1946 = vmul.f32 %v318, %v1945
          %v1947 = vmul.f32 %v319, %v1945
          %v1948 = vadd.f32 %v1942, %v1946
          %v1949 = vadd.f32 %v1943, %v1947
          %s1950 = sld [smem:[#allocation6 + $0x7e]]
          %v1951 = vstv %s1950
          %v1952 = vmul.f32 %v321, %v1951
          %v1953 = vmul.f32 %v322, %v1951
          %v1954 = vadd.f32 %v1948, %v1952
          %v1955 = vadd.f32 %v1949, %v1953
          %s1956 = sld [smem:[#allocation6 + $0x7f]]
          %v1957 = vstv %s1956
          %v1958 = vmul.f32 %v399, %v1957
          %v1959 = vmul.f32 %v400, %v1957
          %v1960 = vadd.f32 %v1954, %v1958
          %v1961 = vadd.f32 %v1955, %v1959
          %s1962 = sld [smem:[#allocation7 + $0x1f]]
          %v1963 = vstv %s1962
          %v1964 = vadd.f32 %v1960, %v1963
          %v1965 = vadd.f32 %v1961, %v1963
          %v1966 = vmax.f32 %v1964, 0.0
          %v1967 = vmax.f32 %v1965, 0.0
          %s1968 = sld [smem:[#allocation8 + $0x1f]]
          %v1969 = vstv %s1968
          %v1970 = vmul.f32 %v1966, %v1969
          %v1971 = vmul.f32 %v1967, %v1969
          %v1972 = vadd.f32 %v1926, %v1970
          %v1973 = vadd.f32 %v1927, %v1971
          %s1974 = sld [smem:[#allocation8 + $0x3f]]
          %v1975 = vstv %s1974
          %v1976 = vmul.f32 %v1966, %v1975
          %v1977 = vmul.f32 %v1967, %v1975
          %v1978 = vadd.f32 %v1932, %v1976
          %v1979 = vadd.f32 %v1933, %v1977
          %s1980 = sld [smem:[#allocation8 + $0x5f]]
          %v1981 = vstv %s1980
          %v1982 = vmul.f32 %v1966, %v1981
          %v1983 = vmul.f32 %v1967, %v1981
          %v1984 = vadd.f32 %v1938, %v1982
          %v1985 = vadd.f32 %v1939, %v1983
          %s1986 = sld [smem:[#allocation10]]
          %v1987 = vstv %s1986
          %v1988 = vadd.f32 %v1972, %v1987
          %v1989 = vadd.f32 %v1973, %v1987
          %v1990 = vxor.u32 %v1988, 2147483648
          %v1991 = vxor.u32 %v1989, 2147483648
          %v1992 = vmul.f32 %v1990, 1.442695
          %v1993 = vpow.pop %v1992
          %v1994 = vmul.f32 %v1991, 1.442695
          %v1995 = vpow.pop %v1994
          %v1996 = vadd.f32 %v1993, 1.0
          %v1997 = vadd.f32 %v1995, 1.0
          %v1998 = vrcp.pop %v1996
          %v1999 = vmul.f32 1.0, %v1998
          %v2000 = vrcp.pop %v1997
          %v2001 = vmul.f32 1.0, %v2000
          %v2002 = vmul.f32 %v1999, 255.0
          %v2003 = vmul.f32 %v2001, 255.0
          %2004 = vst.msk [vmem:[%s6] sm:$0xff] %vm410, %v2002
          %2005 = vst.msk [vmem:[%s6 + $0x8] sm:$0xff] %vm410, %v2003
          %s2006 = sld [smem:[#allocation10 + $0x1]]
          %v2007 = vstv %s2006
          %v2008 = vadd.f32 %v1978, %v2007
          %v2009 = vadd.f32 %v1979, %v2007
          %v2010 = vxor.u32 %v2008, 2147483648
          %v2011 = vxor.u32 %v2009, 2147483648
          %v2012 = vmul.f32 %v2010, 1.442695
          %v2013 = vpow.pop %v2012
          %v2014 = vmul.f32 %v2011, 1.442695
          %v2015 = vpow.pop %v2014
          %v2016 = vadd.f32 %v2013, 1.0
          %v2017 = vadd.f32 %v2015, 1.0
          %v2018 = vrcp.pop %v2016
          %v2019 = vmul.f32 1.0, %v2018
          %v2020 = vrcp.pop %v2017
          %v2021 = vmul.f32 1.0, %v2020
          %v2022 = vmul.f32 %v2019, 255.0
          %v2023 = vmul.f32 %v2021, 255.0
          %s2024 = scalar_lea.vmem %s6, 16
          %2025 = vst.msk [vmem:[%s2024] sm:$0xff] %vm410, %v2022
          %2026 = vst.msk [vmem:[%s2024 + $0x8] sm:$0xff] %vm410, %v2023
          %s2027 = sld [smem:[#allocation10 + $0x2]]
          %v2028 = vstv %s2027
          %v2029 = vadd.f32 %v1984, %v2028
          %v2030 = vadd.f32 %v1985, %v2028
          %v2031 = vxor.u32 %v2029, 2147483648
          %v2032 = vxor.u32 %v2030, 2147483648
          %v2033 = vmul.f32 %v2031, 1.442695
          %v2034 = vpow.pop %v2033
          %v2035 = vmul.f32 %v2032, 1.442695
          %v2036 = vpow.pop %v2035
          %v2037 = vadd.f32 %v2034, 1.0
          %v2038 = vadd.f32 %v2036, 1.0
          %v2039 = vrcp.pop %v2037
          %v2040 = vmul.f32 1.0, %v2039
          %v2041 = vrcp.pop %v2038
          %v2042 = vmul.f32 1.0, %v2041
          %v2043 = vmul.f32 %v2040, 255.0
          %v2044 = vmul.f32 %v2042, 255.0
          %s2045 = scalar_lea.vmem %s6, 32
          %2046 = vst.msk [vmem:[%s2045] sm:$0xff] %vm410, %v2043
          %2047 = vst.msk [vmem:[%s2045 + $0x8] sm:$0xff] %vm410, %v2044
        $region64: #{trainer_forward.2} parent=39 // pred_fallthru
          _
        %p2048 = scmp.lt.s32.totalorder %s25, 1
        %s2049 = scalar_select %p2048, %s25, 1
        %s2050 = scalar_lea.vmem %s5, %s2049
        // Predicated region
        $region65: #{trainer_forward.2} parent=39 // pred_check
          %p2051 = pneg %p153
        $region66: #{trainer_forward.2} parent=39 // pred_check_branch
          %2053 = sbr.rel (%p2051) target = $region68
        $region67: #{trainer_forward.2} parent=39 // pred_region
          _
        $region68: #{trainer_forward.2} parent=39 // pred_fallthru
          _
        // Predicated region
        $region69: #{trainer_forward.2} parent=39 // pred_check
          %p2054 = pneg %p174
        $region70: #{trainer_forward.2} parent=39 // pred_check_branch
          %2056 = sbr.rel (%p2054) target = $region72
        $region71: #{trainer_forward.2} parent=39 // pred_region
          _
        $region72: #{trainer_forward.2} parent=39 // pred_fallthru
          _
        // Predicated region
        $region73: #{trainer_forward.2} parent=39 // pred_check
          %p2057 = pneg %p174
        $region74: #{trainer_forward.2} parent=39 // pred_check_branch
          %2059 = sbr.rel (%p2057) target = $region76
        $region75: #{trainer_forward.2} parent=39 // pred_region
          _
        $region76: #{trainer_forward.2} parent=39 // pred_fallthru
          _
      $region40: #{trainer_forward.2} parent=5 // pred_fallthru
        _
      %p2060 = scmp.le.s32.totalorder 2, %s20
      // Predicated region
      $region77: #{trainer_forward.2} parent=5 // pred_check
        %p2061 = pneg %p2060
      $region78: #{trainer_forward.2} parent=5 // pred_check_branch
        %2063 = sbr.rel (%p2061) target = $region80
      $region79: #{trainer_forward.2} parent=5 // pred_region
        %s2064 = ssub.s32 %s20, 2
        // Predicated region
        $region81: #{trainer_forward.2} parent=79 // pred_check
          %p2065 = pneg %p159
        $region82: #{trainer_forward.2} parent=79 // pred_check_branch
          %2067 = sbr.rel (%p2065) target = $region84
        $region83: #{trainer_forward.2} parent=79 // pred_region
          %p2068 = scmp.lt.s32.totalorder %s26, 1
          %s2069 = scalar_select %p2068, %s26, 1
          %s2070 = scalar_lea.vmem %s5, %s2069
        $region84: #{trainer_forward.2} parent=79 // pred_fallthru
          _
      $region80: #{trainer_forward.2} parent=5 // pred_fallthru
        _
    $region6: #{trainer_forward.2} parent=1 // loop_footer
      %s24 = sadd.s32 1, %s20
    $region7: #{trainer_forward.2} parent=1 // loop_footer_branch
      %19 = sbr.rel target = $region3
    $region8: #{trainer_forward.2} parent=1 // loop_exit
      _
    %2071 = vsyncpa [#allocation3], 1
    %s2072 = scalar_lea.sflag [#allocation3], 1
    %2073 = vsyncpa %s2072, 1
    %2074 = vsyncpa [#allocation4], 1
    %s2075 = scalar_lea.sflag [#allocation4], 1
    %2076 = vsyncpa %s2075, 1
    %2077 = vsyncpa [#allocation11], 1
    %2078 = vsyncpa [#allocation5], 1
    %s2079 = scalar_lea.sflag [#allocation5], 1
    %2080 = vsyncpa %s2079, 1
    %2081 = vsyncpa [#allocation9], 1

</llo_original>
